<compile_context>
chip_gen: v7x
topology: tpu7x:2x2x1
jax: 0.10.0
libtpu: 0.0.40
codegen_flags: <defaults>
</compile_context>

<pallas_src>
import functools

import jax
import jax.numpy as jnp
from jax import lax
from jax.experimental import pallas as pl
from jax.experimental.pallas import tpu as pltpu


def _silu(z):
    return z * jax.nn.sigmoid(z)


def model_kernel(x_ref, t_ref,
                 win_x_ref, win_t_ref,
                 w1x_ref, w1t_ref, w2_ref,
                 bn_ref, wout_ref,
                 o_ref):
    """One batch tile of Model.forward (eval mode), batch on the 128-lane axis.

    Inputs arrive in their natural (batch, feature) layout; the transpose is
    absorbed into the matmuls (contraction on the feature axis of both operands),
    so no wrapper-side x.T / t.T XLA launches are needed.

      val  = W_in_x . x^T + W_in_t . t^T                       # inblock (bias=False)
      per block k (bn1 eval-folded; bn2 folded into W1; dropout p=0 = identity):
        a1   = silu(val * s1_k + sh1_k)                        # bn1 + silu
        h    = W1x_k . a1 + W1t_k . silu(t)^T + b1e_k          # linear (+ folded bn2)
        val += W2_k . silu(h)                                  # silu + linear2 + residual
      out^T = W_out . silu(val)                                # act + outblock
    """
    f32 = jnp.float32
    # (M, K) x (N, K) -> (M, N): contract the feature axis of both operands.
    dot_t = lambda w, a: lax.dot_general(
        w, a, (((1,), (1,)), ((), ())), preferred_element_type=f32)

    x = x_ref[...]                          # (tile_b, in_f)
    t = t_ref[...]                          # (tile_b, T)

    # ---- inblock: split matmul replaces cat((x, t), -1) ----
    val = dot_t(win_x_ref[...], x) + dot_t(win_t_ref[...], t)   # (H, tile_b)

    st = _silu(t)                           # silu(t), shared by every block

    H = val.shape[0]
    NB = w2_ref.shape[0] // H

    for k in range(NB):                     # static, unrolled over blocks
        lo, hi = k * H, (k + 1) * H
        # bn1 (eval mode, folded to scale/shift) + SiLU
        a1 = _silu(val * bn_ref[lo:hi, 0:1] + bn_ref[lo:hi, 1:2])
        # first linear with bn2 folded in; dropout(p=0.0) is the identity
        h = (jnp.dot(w1x_ref[lo:hi, :], a1, preferred_element_type=f32)
             + dot_t(w1t_ref[lo:hi, :], st)
             + bn_ref[lo:hi, 2:3])
        # SiLU + linear2 + residual add
        val = val + jnp.dot(w2_ref[lo:hi, :], _silu(h), preferred_element_type=f32)

    # final activation + outblock, stored lane-dense: (out_f, tile_b)
    o_ref[...] = jnp.dot(wout_ref[...], _silu(val),
                         preferred_element_type=f32).astype(o_ref.dtype)


def _fold_bn(gamma, beta, mean, var, eps=1e-5):
    scale = gamma / jnp.sqrt(var + eps)
    shift = beta - mean * scale
    return scale, shift


def _pick_tile_b(b_pad):
    """Largest lane-aligned batch tile, preferring >=4 grid steps (v7x: both
    TensorCores busy with >=2 pipelined steps each), then >=2, then whatever fits."""
    for min_steps in (4, 2, 1):
        for tb in (1024, 512, 256):
            if b_pad % tb == 0 and b_pad // tb >= min_steps:
                return tb
    return 128


@functools.partial(jax.jit, static_argnames=("tile_b",))
def model_forward(x, t, params, tile_b=None):
    """Pallas forward for Model (eval mode). x: (B, in_f), t: (B, T) -> (B, out_f)."""
    B, in_f = x.shape
    T = t.shape[1]
    H = params["w_in"].shape[0]
    out_f = params["w_out"].shape[0]
    blocks = params["blocks"]

    B_pad = pl.cdiv(B, 128) * 128
    if tile_b is None:
        tile_b = _pick_tile_b(B_pad)
    assert tile_b % 128 == 0, "tile_b must be a multiple of 128 (lane width)"
    B_pad = pl.cdiv(B_pad, tile_b) * tile_b
    if B_pad != B:                          # ragged tail only: zero-pad, slice off after
        x = jnp.pad(x, ((0, B_pad - B), (0, 0)))
        t = jnp.pad(t, ((0, B_pad - B), (0, 0)))

    # ---- fold BN (eval mode) and pack per-block params (once, at trace time) ----
    win = params["w_in"]                    # (H, in_f + T), PyTorch [out, in] layout
    win_x, win_t = win[:, :in_f], win[:, in_f:]

    w1x_l, w1t_l, w2_l, bn_l = [], [], [], []
    for bp in blocks:
        s1, sh1 = _fold_bn(bp["bn1_gamma"], bp["bn1_beta"], bp["bn1_mean"], bp["bn1_var"])
        s2, sh2 = _fold_bn(bp["bn2_gamma"], bp["bn2_beta"], bp["bn2_mean"], bp["bn2_var"])
        w1 = bp["w1"]                       # (H, H + T)
        # fold bn2 (post-linear affine) into the block's first linear
        w1x_l.append(w1[:, :H] * s2[:, None])
        w1t_l.append(w1[:, H:] * s2[:, None])
        w2_l.append(bp["w2"])               # (H, H)
        # columns: bn1 scale, bn1 shift, effective bias (= bn2 shift, bias=False)
        bn_l.append(jnp.stack([s1, sh1, sh2], axis=-1))      # (H, 3)

    w1x_all = jnp.concatenate(w1x_l, axis=0)    # (NB*H, H)
    w1t_all = jnp.concatenate(w1t_l, axis=0)    # (NB*H, T)
    w2_all = jnp.concatenate(w2_l, axis=0)      # (NB*H, H)
    bn_all = jnp.concatenate(bn_l, axis=0)      # (NB*H, 3)
    wout = params["w_out"]                       # (out_f, H)

    row_in = lambda i: (i, 0)    # batch-tiled inputs (natural (B, feat) layout)
    row_out = lambda i: (0, i)   # batch-tiled, lane-dense output (feat, B)
    rep = lambda i: (0, 0)       # replicated -> loaded once, resident across grid steps

    outT = pl.pallas_call(
        model_kernel,
        out_shape=jax.ShapeDtypeStruct((out_f, B_pad), x.dtype),
        grid=(B_pad // tile_b,),
        in_specs=[
            pl.BlockSpec((tile_b, in_f), row_in),     # x
            pl.BlockSpec((tile_b, T), row_in),        # t
            pl.BlockSpec(win_x.shape, rep),           # inblock weights (x part)
            pl.BlockSpec(win_t.shape, rep),           # inblock weights (t part)
            pl.BlockSpec(w1x_all.shape, rep),         # block linear (bn2-folded), stacked
            pl.BlockSpec(w1t_all.shape, rep),         # block time weights, stacked
            pl.BlockSpec(w2_all.shape, rep),          # block linear2, stacked
            pl.BlockSpec(bn_all.shape, rep),          # bn1 scale/shift + eff. bias, stacked
            pl.BlockSpec(wout.shape, rep),            # outblock weights
        ],
        out_specs=pl.BlockSpec((out_f, tile_b), row_out),
        compiler_params=pltpu.CompilerParams(
            dimension_semantics=("parallel",),        # batch tiles -> v7x megacore
            vmem_limit_bytes=32 * 1024 * 1024,        # explicit cap, safe on v5e/v6e/v7x
        ),
    )(x, t, win_x, win_t, w1x_all, w1t_all, w2_all, bn_all, wout)

    # Kernel output is lane-dense (out_f, B_pad); one transpose + slice restores the
    # reference (B, out_f) layout. Consumers that accept the transposed layout can
    # use outT directly and skip this.
    return outT.T[:B]


def reference_forward(x, t, params, eps=1e-5):
    """Pure-JAX reference mirroring PyTorch Model.forward in eval mode."""
    silu = lambda z: z * jax.nn.sigmoid(z)
    bn = lambda v, g, b, m, var: (v - m) / jnp.sqrt(var + eps) * g + b

    val = jnp.concatenate([x, t], axis=-1) @ params["w_in"].T          # inblock (bias=False)
    for bp in params["blocks"]:
        xb = bn(val, bp["bn1_gamma"], bp["bn1_beta"], bp["bn1_mean"], bp["bn1_var"])
        h = silu(jnp.concatenate([xb, t], axis=-1)) @ bp["w1"].T       # linear
        hb = bn(h, bp["bn2_gamma"], bp["bn2_beta"], bp["bn2_mean"], bp["bn2_var"])
        val = val + silu(hb) @ bp["w2"].T                              # linear2 + residual
    return silu(val) @ params["w_out"].T                               # act + outblock


if __name__ == "__main__":
    IN_F, OUT_F, H, T, NB = 16, 8, 64, 8, 4
    B = 1024                      # -> auto tile_b=256, grid of 4 parallel batch tiles

    key = jax.random.PRNGKey(0)
    keys = jax.random.split(key, NB + 4)

    def nrm(k, shape, scale=0.1):
        return scale * jax.random.normal(k, shape, jnp.float32)

    blocks = []
    for kb in keys[:NB]:
        ks = jax.random.split(kb, 10)
        blocks.append({
            "w1": nrm(ks[0], (H, H + T)),
            "w2": nrm(ks[1], (H, H)),
            "bn1_gamma": 1.0 + 0.05 * jax.random.normal(ks[2], (H,), jnp.float32),
            "bn1_beta": 0.05 * jax.random.normal(ks[3], (H,), jnp.float32),
            "bn1_mean": 0.1 * jax.random.normal(ks[4], (H,), jnp.float32),
            "bn1_var": jnp.abs(jax.random.normal(ks[5], (H,), jnp.float32)) + 0.5,
            "bn2_gamma": 1.0 + 0.05 * jax.random.normal(ks[6], (H,), jnp.float32),
            "bn2_beta": 0.05 * jax.random.normal(ks[7], (H,), jnp.float32),
            "bn2_mean": 0.1 * jax.random.normal(ks[8], (H,), jnp.float32),
            "bn2_var": jnp.abs(jax.random.normal(ks[9], (H,), jnp.float32)) + 0.5,
        })
    kin, kout, kx, kt = keys[NB:]
    params = {
        "w_in": nrm(kin, (H, IN_F + T)),
        "w_out": nrm(kout, (OUT_F, H)),
        "blocks": blocks,
    }

    x = jax.random.normal(kx, (B, IN_F), jnp.float32)
    t = jax.random.normal(kt, (B, T), jnp.float32)

    out = jax.block_until_ready(model_forward(x, t, params))
    ref = reference_forward(x, t, params)
    assert out.shape == (B, OUT_F), out.shape
    assert jnp.allclose(out, ref, atol=1e-4, rtol=1e-3), \
        f"max abs err {float(jnp.max(jnp.abs(out - ref)))}"

    # Ragged-batch path (pad + slice) with an explicit small tile.
    Br = 200
    out_r = jax.block_until_ready(model_forward(x[:Br], t[:Br], params, tile_b=128))
    assert out_r.shape == (Br, OUT_F), out_r.shape
    assert jnp.allclose(out_r, ref[:Br], atol=1e-4, rtol=1e-3), \
        f"ragged max abs err {float(jnp.max(jnp.abs(out_r - ref[:Br])))}"

    print("KERNEL_OK")
</pallas_src>

<mosaic_0001>
module attributes {stable_mosaic.version = 11 : i64} {
  func.func @model_kernel(%arg0: i32, %arg1: memref<256x16xf32, #tpu.memory_space<vmem>>, %arg2: memref<256x8xf32, #tpu.memory_space<vmem>>, %arg3: memref<64x16xf32, #tpu.memory_space<vmem>>, %arg4: memref<64x8xf32, #tpu.memory_space<vmem>>, %arg5: memref<256x64xf32, #tpu.memory_space<vmem>>, %arg6: memref<256x8xf32, #tpu.memory_space<vmem>>, %arg7: memref<256x64xf32, #tpu.memory_space<vmem>>, %arg8: memref<256x3xf32, #tpu.memory_space<vmem>>, %arg9: memref<8x64xf32, #tpu.memory_space<vmem>>, %arg10: memref<8x256xf32, #tpu.memory_space<vmem>>) attributes {dimension_semantics = [#tpu.dimension_semantics<parallel>], iteration_bounds = array<i64: 4>, scalar_prefetch = 0 : i64, scratch_operands = 0 : i64, tpu.core_type = #tpu.core_type<tc>, window_params = [{transform_indices = @transform_0, window_bounds = array<i64: 256, 16>}, {transform_indices = @transform_1, window_bounds = array<i64: 256, 8>}, {pipeline_mode = #tpu.pipeline_mode<synchronous>, transform_indices = @transform_2, window_bounds = array<i64: 64, 16>}, {pipeline_mode = #tpu.pipeline_mode<synchronous>, transform_indices = @transform_3, window_bounds = array<i64: 64, 8>}, {pipeline_mode = #tpu.pipeline_mode<synchronous>, transform_indices = @transform_4, window_bounds = array<i64: 256, 64>}, {pipeline_mode = #tpu.pipeline_mode<synchronous>, transform_indices = @transform_5, window_bounds = array<i64: 256, 8>}, {pipeline_mode = #tpu.pipeline_mode<synchronous>, transform_indices = @transform_6, window_bounds = array<i64: 256, 64>}, {pipeline_mode = #tpu.pipeline_mode<synchronous>, transform_indices = @transform_7, window_bounds = array<i64: 256, 3>}, {pipeline_mode = #tpu.pipeline_mode<synchronous>, transform_indices = @transform_8, window_bounds = array<i64: 8, 64>}, {transform_indices = @transform_9, window_bounds = array<i64: 8, 256>}]} {
    %c0 = arith.constant 0 : index
    %c0_0 = arith.constant 0 : index
    %0 = vector.load %arg1[%c0, %c0_0] : memref<256x16xf32, #tpu.memory_space<vmem>>, vector<256x16xf32>
    %c0_1 = arith.constant 0 : index
    %c0_2 = arith.constant 0 : index
    %1 = vector.load %arg2[%c0_1, %c0_2] : memref<256x8xf32, #tpu.memory_space<vmem>>, vector<256x8xf32>
    %c0_3 = arith.constant 0 : index
    %c0_4 = arith.constant 0 : index
    %2 = vector.load %arg3[%c0_3, %c0_4] : memref<64x16xf32, #tpu.memory_space<vmem>>, vector<64x16xf32>
    %cst = arith.constant dense<0.000000e+00> : vector<64x256xf32>
    %3 = tpu.matmul %2, %0, %cst {dimension_numbers = #tpu.dot_dimension_numbers<[1], [1], [0], [0], [0, 0, 1, 0], [], []>} : vector<64x16xf32>, vector<256x16xf32>, vector<64x256xf32> -> vector<64x256xf32>
    %c0_5 = arith.constant 0 : index
    %c0_6 = arith.constant 0 : index
    %4 = vector.load %arg4[%c0_5, %c0_6] : memref<64x8xf32, #tpu.memory_space<vmem>>, vector<64x8xf32>
    %cst_7 = arith.constant dense<0.000000e+00> : vector<64x256xf32>
    %5 = tpu.matmul %4, %1, %cst_7 {dimension_numbers = #tpu.dot_dimension_numbers<[1], [1], [0], [0], [0, 0, 1, 0], [], []>} : vector<64x8xf32>, vector<256x8xf32>, vector<64x256xf32> -> vector<64x256xf32>
    %6 = arith.addf %3, %5 : vector<64x256xf32>
    %7 = arith.negf %1 : vector<256x8xf32>
    %8 = math.exp %7 : vector<256x8xf32>
    %cst_8 = arith.constant 1.000000e+00 : f32
    %9 = vector.broadcast %cst_8 : f32 to vector<256x8xf32>
    %10 = arith.addf %9, %8 : vector<256x8xf32>
    %11 = arith.divf %9, %10 : vector<256x8xf32>
    %12 = arith.mulf %1, %11 : vector<256x8xf32>
    %c0_9 = arith.constant 0 : index
    %c0_10 = arith.constant 0 : index
    %13 = vector.load %arg8[%c0_9, %c0_10] : memref<256x3xf32, #tpu.memory_space<vmem>>, vector<64x1xf32>
    %14 = vector.broadcast %13 : vector<64x1xf32> to vector<64x256xf32>
    %15 = arith.mulf %6, %14 : vector<64x256xf32>
    %c0_11 = arith.constant 0 : index
    %c1 = arith.constant 1 : index
    %16 = vector.load %arg8[%c0_11, %c1] : memref<256x3xf32, #tpu.memory_space<vmem>>, vector<64x1xf32>
    %17 = vector.broadcast %16 : vector<64x1xf32> to vector<64x256xf32>
    %18 = arith.addf %15, %17 : vector<64x256xf32>
    %19 = arith.negf %18 : vector<64x256xf32>
    %20 = math.exp %19 : vector<64x256xf32>
    %cst_12 = arith.constant 1.000000e+00 : f32
    %21 = vector.broadcast %cst_12 : f32 to vector<64x256xf32>
    %22 = arith.addf %21, %20 : vector<64x256xf32>
    %23 = arith.divf %21, %22 : vector<64x256xf32>
    %24 = arith.mulf %18, %23 : vector<64x256xf32>
    %c0_13 = arith.constant 0 : index
    %c0_14 = arith.constant 0 : index
    %25 = vector.load %arg5[%c0_13, %c0_14] : memref<256x64xf32, #tpu.memory_space<vmem>>, vector<64x64xf32>
    %cst_15 = arith.constant dense<0.000000e+00> : vector<64x256xf32>
    %26 = tpu.matmul %25, %24, %cst_15 {dimension_numbers = #tpu.dot_dimension_numbers<[1], [0], [0], [1], [0, 0, 1, 1], [], []>} : vector<64x64xf32>, vector<64x256xf32>, vector<64x256xf32> -> vector<64x256xf32>
    %c0_16 = arith.constant 0 : index
    %c0_17 = arith.constant 0 : index
    %27 = vector.load %arg6[%c0_16, %c0_17] : memref<256x8xf32, #tpu.memory_space<vmem>>, vector<64x8xf32>
    %cst_18 = arith.constant dense<0.000000e+00> : vector<64x256xf32>
    %28 = tpu.matmul %27, %12, %cst_18 {dimension_numbers = #tpu.dot_dimension_numbers<[1], [1], [0], [0], [0, 0, 1, 0], [], []>} : vector<64x8xf32>, vector<256x8xf32>, vector<64x256xf32> -> vector<64x256xf32>
    %29 = arith.addf %26, %28 : vector<64x256xf32>
    %c0_19 = arith.constant 0 : index
    %c2 = arith.constant 2 : index
    %30 = vector.load %arg8[%c0_19, %c2] : memref<256x3xf32, #tpu.memory_space<vmem>>, vector<64x1xf32>
    %31 = vector.broadcast %30 : vector<64x1xf32> to vector<64x256xf32>
    %32 = arith.addf %29, %31 : vector<64x256xf32>
    %c0_20 = arith.constant 0 : index
    %c0_21 = arith.constant 0 : index
    %33 = vector.load %arg7[%c0_20, %c0_21] : memref<256x64xf32, #tpu.memory_space<vmem>>, vector<64x64xf32>
    %34 = arith.negf %32 : vector<64x256xf32>
    %35 = math.exp %34 : vector<64x256xf32>
    %cst_22 = arith.constant 1.000000e+00 : f32
    %36 = vector.broadcast %cst_22 : f32 to vector<64x256xf32>
    %37 = arith.addf %36, %35 : vector<64x256xf32>
    %38 = arith.divf %36, %37 : vector<64x256xf32>
    %39 = arith.mulf %32, %38 : vector<64x256xf32>
    %cst_23 = arith.constant dense<0.000000e+00> : vector<64x256xf32>
    %40 = tpu.matmul %33, %39, %cst_23 {dimension_numbers = #tpu.dot_dimension_numbers<[1], [0], [0], [1], [0, 0, 1, 1], [], []>} : vector<64x64xf32>, vector<64x256xf32>, vector<64x256xf32> -> vector<64x256xf32>
    %41 = arith.addf %6, %40 : vector<64x256xf32>
    %c64 = arith.constant 64 : index
    %c0_24 = arith.constant 0 : index
    %42 = vector.load %arg8[%c64, %c0_24] : memref<256x3xf32, #tpu.memory_space<vmem>>, vector<64x1xf32>
    %43 = vector.broadcast %42 : vector<64x1xf32> to vector<64x256xf32>
    %44 = arith.mulf %41, %43 : vector<64x256xf32>
    %c64_25 = arith.constant 64 : index
    %c1_26 = arith.constant 1 : index
    %45 = vector.load %arg8[%c64_25, %c1_26] : memref<256x3xf32, #tpu.memory_space<vmem>>, vector<64x1xf32>
    %46 = vector.broadcast %45 : vector<64x1xf32> to vector<64x256xf32>
    %47 = arith.addf %44, %46 : vector<64x256xf32>
    %48 = arith.negf %47 : vector<64x256xf32>
    %49 = math.exp %48 : vector<64x256xf32>
    %cst_27 = arith.constant 1.000000e+00 : f32
    %50 = vector.broadcast %cst_27 : f32 to vector<64x256xf32>
    %51 = arith.addf %50, %49 : vector<64x256xf32>
    %52 = arith.divf %50, %51 : vector<64x256xf32>
    %53 = arith.mulf %47, %52 : vector<64x256xf32>
    %c64_28 = arith.constant 64 : index
    %c0_29 = arith.constant 0 : index
    %54 = vector.load %arg5[%c64_28, %c0_29] : memref<256x64xf32, #tpu.memory_space<vmem>>, vector<64x64xf32>
    %cst_30 = arith.constant dense<0.000000e+00> : vector<64x256xf32>
    %55 = tpu.matmul %54, %53, %cst_30 {dimension_numbers = #tpu.dot_dimension_numbers<[1], [0], [0], [1], [0, 0, 1, 1], [], []>} : vector<64x64xf32>, vector<64x256xf32>, vector<64x256xf32> -> vector<64x256xf32>
    %c64_31 = arith.constant 64 : index
    %c0_32 = arith.constant 0 : index
    %56 = vector.load %arg6[%c64_31, %c0_32] : memref<256x8xf32, #tpu.memory_space<vmem>>, vector<64x8xf32>
    %cst_33 = arith.constant dense<0.000000e+00> : vector<64x256xf32>
    %57 = tpu.matmul %56, %12, %cst_33 {dimension_numbers = #tpu.dot_dimension_numbers<[1], [1], [0], [0], [0, 0, 1, 0], [], []>} : vector<64x8xf32>, vector<256x8xf32>, vector<64x256xf32> -> vector<64x256xf32>
    %58 = arith.addf %55, %57 : vector<64x256xf32>
    %c64_34 = arith.constant 64 : index
    %c2_35 = arith.constant 2 : index
    %59 = vector.load %arg8[%c64_34, %c2_35] : memref<256x3xf32, #tpu.memory_space<vmem>>, vector<64x1xf32>
    %60 = vector.broadcast %59 : vector<64x1xf32> to vector<64x256xf32>
    %61 = arith.addf %58, %60 : vector<64x256xf32>
    %c64_36 = arith.constant 64 : index
    %c0_37 = arith.constant 0 : index
    %62 = vector.load %arg7[%c64_36, %c0_37] : memref<256x64xf32, #tpu.memory_space<vmem>>, vector<64x64xf32>
    %63 = arith.negf %61 : vector<64x256xf32>
    %64 = math.exp %63 : vector<64x256xf32>
    %cst_38 = arith.constant 1.000000e+00 : f32
    %65 = vector.broadcast %cst_38 : f32 to vector<64x256xf32>
    %66 = arith.addf %65, %64 : vector<64x256xf32>
    %67 = arith.divf %65, %66 : vector<64x256xf32>
    %68 = arith.mulf %61, %67 : vector<64x256xf32>
    %cst_39 = arith.constant dense<0.000000e+00> : vector<64x256xf32>
    %69 = tpu.matmul %62, %68, %cst_39 {dimension_numbers = #tpu.dot_dimension_numbers<[1], [0], [0], [1], [0, 0, 1, 1], [], []>} : vector<64x64xf32>, vector<64x256xf32>, vector<64x256xf32> -> vector<64x256xf32>
    %70 = arith.addf %41, %69 : vector<64x256xf32>
    %c128 = arith.constant 128 : index
    %c0_40 = arith.constant 0 : index
    %71 = vector.load %arg8[%c128, %c0_40] : memref<256x3xf32, #tpu.memory_space<vmem>>, vector<64x1xf32>
    %72 = vector.broadcast %71 : vector<64x1xf32> to vector<64x256xf32>
    %73 = arith.mulf %70, %72 : vector<64x256xf32>
    %c128_41 = arith.constant 128 : index
    %c1_42 = arith.constant 1 : index
    %74 = vector.load %arg8[%c128_41, %c1_42] : memref<256x3xf32, #tpu.memory_space<vmem>>, vector<64x1xf32>
    %75 = vector.broadcast %74 : vector<64x1xf32> to vector<64x256xf32>
    %76 = arith.addf %73, %75 : vector<64x256xf32>
    %77 = arith.negf %76 : vector<64x256xf32>
    %78 = math.exp %77 : vector<64x256xf32>
    %cst_43 = arith.constant 1.000000e+00 : f32
    %79 = vector.broadcast %cst_43 : f32 to vector<64x256xf32>
    %80 = arith.addf %79, %78 : vector<64x256xf32>
    %81 = arith.divf %79, %80 : vector<64x256xf32>
    %82 = arith.mulf %76, %81 : vector<64x256xf32>
    %c128_44 = arith.constant 128 : index
    %c0_45 = arith.constant 0 : index
    %83 = vector.load %arg5[%c128_44, %c0_45] : memref<256x64xf32, #tpu.memory_space<vmem>>, vector<64x64xf32>
    %cst_46 = arith.constant dense<0.000000e+00> : vector<64x256xf32>
    %84 = tpu.matmul %83, %82, %cst_46 {dimension_numbers = #tpu.dot_dimension_numbers<[1], [0], [0], [1], [0, 0, 1, 1], [], []>} : vector<64x64xf32>, vector<64x256xf32>, vector<64x256xf32> -> vector<64x256xf32>
    %c128_47 = arith.constant 128 : index
    %c0_48 = arith.constant 0 : index
    %85 = vector.load %arg6[%c128_47, %c0_48] : memref<256x8xf32, #tpu.memory_space<vmem>>, vector<64x8xf32>
    %cst_49 = arith.constant dense<0.000000e+00> : vector<64x256xf32>
    %86 = tpu.matmul %85, %12, %cst_49 {dimension_numbers = #tpu.dot_dimension_numbers<[1], [1], [0], [0], [0, 0, 1, 0], [], []>} : vector<64x8xf32>, vector<256x8xf32>, vector<64x256xf32> -> vector<64x256xf32>
    %87 = arith.addf %84, %86 : vector<64x256xf32>
    %c128_50 = arith.constant 128 : index
    %c2_51 = arith.constant 2 : index
    %88 = vector.load %arg8[%c128_50, %c2_51] : memref<256x3xf32, #tpu.memory_space<vmem>>, vector<64x1xf32>
    %89 = vector.broadcast %88 : vector<64x1xf32> to vector<64x256xf32>
    %90 = arith.addf %87, %89 : vector<64x256xf32>
    %c128_52 = arith.constant 128 : index
    %c0_53 = arith.constant 0 : index
    %91 = vector.load %arg7[%c128_52, %c0_53] : memref<256x64xf32, #tpu.memory_space<vmem>>, vector<64x64xf32>
    %92 = arith.negf %90 : vector<64x256xf32>
    %93 = math.exp %92 : vector<64x256xf32>
    %cst_54 = arith.constant 1.000000e+00 : f32
    %94 = vector.broadcast %cst_54 : f32 to vector<64x256xf32>
    %95 = arith.addf %94, %93 : vector<64x256xf32>
    %96 = arith.divf %94, %95 : vector<64x256xf32>
    %97 = arith.mulf %90, %96 : vector<64x256xf32>
    %cst_55 = arith.constant dense<0.000000e+00> : vector<64x256xf32>
    %98 = tpu.matmul %91, %97, %cst_55 {dimension_numbers = #tpu.dot_dimension_numbers<[1], [0], [0], [1], [0, 0, 1, 1], [], []>} : vector<64x64xf32>, vector<64x256xf32>, vector<64x256xf32> -> vector<64x256xf32>
    %99 = arith.addf %70, %98 : vector<64x256xf32>
    %c192 = arith.constant 192 : index
    %c0_56 = arith.constant 0 : index
    %100 = vector.load %arg8[%c192, %c0_56] : memref<256x3xf32, #tpu.memory_space<vmem>>, vector<64x1xf32>
    %101 = vector.broadcast %100 : vector<64x1xf32> to vector<64x256xf32>
    %102 = arith.mulf %99, %101 : vector<64x256xf32>
    %c192_57 = arith.constant 192 : index
    %c1_58 = arith.constant 1 : index
    %103 = vector.load %arg8[%c192_57, %c1_58] : memref<256x3xf32, #tpu.memory_space<vmem>>, vector<64x1xf32>
    %104 = vector.broadcast %103 : vector<64x1xf32> to vector<64x256xf32>
    %105 = arith.addf %102, %104 : vector<64x256xf32>
    %106 = arith.negf %105 : vector<64x256xf32>
    %107 = math.exp %106 : vector<64x256xf32>
    %cst_59 = arith.constant 1.000000e+00 : f32
    %108 = vector.broadcast %cst_59 : f32 to vector<64x256xf32>
    %109 = arith.addf %108, %107 : vector<64x256xf32>
    %110 = arith.divf %108, %109 : vector<64x256xf32>
    %111 = arith.mulf %105, %110 : vector<64x256xf32>
    %c192_60 = arith.constant 192 : index
    %c0_61 = arith.constant 0 : index
    %112 = vector.load %arg5[%c192_60, %c0_61] : memref<256x64xf32, #tpu.memory_space<vmem>>, vector<64x64xf32>
    %cst_62 = arith.constant dense<0.000000e+00> : vector<64x256xf32>
    %113 = tpu.matmul %112, %111, %cst_62 {dimension_numbers = #tpu.dot_dimension_numbers<[1], [0], [0], [1], [0, 0, 1, 1], [], []>} : vector<64x64xf32>, vector<64x256xf32>, vector<64x256xf32> -> vector<64x256xf32>
    %c192_63 = arith.constant 192 : index
    %c0_64 = arith.constant 0 : index
    %114 = vector.load %arg6[%c192_63, %c0_64] : memref<256x8xf32, #tpu.memory_space<vmem>>, vector<64x8xf32>
    %cst_65 = arith.constant dense<0.000000e+00> : vector<64x256xf32>
    %115 = tpu.matmul %114, %12, %cst_65 {dimension_numbers = #tpu.dot_dimension_numbers<[1], [1], [0], [0], [0, 0, 1, 0], [], []>} : vector<64x8xf32>, vector<256x8xf32>, vector<64x256xf32> -> vector<64x256xf32>
    %116 = arith.addf %113, %115 : vector<64x256xf32>
    %c192_66 = arith.constant 192 : index
    %c2_67 = arith.constant 2 : index
    %117 = vector.load %arg8[%c192_66, %c2_67] : memref<256x3xf32, #tpu.memory_space<vmem>>, vector<64x1xf32>
    %118 = vector.broadcast %117 : vector<64x1xf32> to vector<64x256xf32>
    %119 = arith.addf %116, %118 : vector<64x256xf32>
    %c192_68 = arith.constant 192 : index
    %c0_69 = arith.constant 0 : index
    %120 = vector.load %arg7[%c192_68, %c0_69] : memref<256x64xf32, #tpu.memory_space<vmem>>, vector<64x64xf32>
    %121 = arith.negf %119 : vector<64x256xf32>
    %122 = math.exp %121 : vector<64x256xf32>
    %cst_70 = arith.constant 1.000000e+00 : f32
    %123 = vector.broadcast %cst_70 : f32 to vector<64x256xf32>
    %124 = arith.addf %123, %122 : vector<64x256xf32>
    %125 = arith.divf %123, %124 : vector<64x256xf32>
    %126 = arith.mulf %119, %125 : vector<64x256xf32>
    %cst_71 = arith.constant dense<0.000000e+00> : vector<64x256xf32>
    %127 = tpu.matmul %120, %126, %cst_71 {dimension_numbers = #tpu.dot_dimension_numbers<[1], [0], [0], [1], [0, 0, 1, 1], [], []>} : vector<64x64xf32>, vector<64x256xf32>, vector<64x256xf32> -> vector<64x256xf32>
    %128 = arith.addf %99, %127 : vector<64x256xf32>
    %c0_72 = arith.constant 0 : index
    %c0_73 = arith.constant 0 : index
    %129 = vector.load %arg9[%c0_72, %c0_73] : memref<8x64xf32, #tpu.memory_space<vmem>>, vector<8x64xf32>
    %130 = arith.negf %128 : vector<64x256xf32>
    %131 = math.exp %130 : vector<64x256xf32>
    %cst_74 = arith.constant 1.000000e+00 : f32
    %132 = vector.broadcast %cst_74 : f32 to vector<64x256xf32>
    %133 = arith.addf %132, %131 : vector<64x256xf32>
    %134 = arith.divf %132, %133 : vector<64x256xf32>
    %135 = arith.mulf %128, %134 : vector<64x256xf32>
    %cst_75 = arith.constant dense<0.000000e+00> : vector<8x256xf32>
    %136 = tpu.matmul %129, %135, %cst_75 {dimension_numbers = #tpu.dot_dimension_numbers<[1], [0], [0], [1], [0, 0, 1, 1], [], []>} : vector<8x64xf32>, vector<64x256xf32>, vector<8x256xf32> -> vector<8x256xf32>
    %c0_76 = arith.constant 0 : index
    %c0_77 = arith.constant 0 : index
    %137 = vector.load %arg10[%c0_76, %c0_77] : memref<8x256xf32, #tpu.memory_space<vmem>>, vector<8x256xf32>
    tpu.vector_store %arg10[%c0_76, %c0_77], %136 {strides = array<i32>} : memref<8x256xf32, #tpu.memory_space<vmem>>, vector<8x256xf32>,
    return
  }
  func.func @transform_0(%arg0: i32) -> (i32, i32) {
    %c0_i32 = arith.constant 0 : i32
    %c0_i32_0 = arith.constant 0 : i32
    return %arg0, %c0_i32 : i32, i32
  }
  func.func @transform_1(%arg0: i32) -> (i32, i32) {
    %c0_i32 = arith.constant 0 : i32
    %c0_i32_0 = arith.constant 0 : i32
    return %arg0, %c0_i32 : i32, i32
  }
  func.func @transform_2(%arg0: i32) -> (i32, i32) {
    %c0_i32 = arith.constant 0 : i32
    %c0_i32_0 = arith.constant 0 : i32
    %c0_i32_1 = arith.constant 0 : i32
    return %c0_i32, %c0_i32_0 : i32, i32
  }
  func.func @transform_3(%arg0: i32) -> (i32, i32) {
    %c0_i32 = arith.constant 0 : i32
    %c0_i32_0 = arith.constant 0 : i32
    %c0_i32_1 = arith.constant 0 : i32
    return %c0_i32, %c0_i32_0 : i32, i32
  }
  func.func @transform_4(%arg0: i32) -> (i32, i32) {
    %c0_i32 = arith.constant 0 : i32
    %c0_i32_0 = arith.constant 0 : i32
    %c0_i32_1 = arith.constant 0 : i32
    return %c0_i32, %c0_i32_0 : i32, i32
  }
  func.func @transform_5(%arg0: i32) -> (i32, i32) {
    %c0_i32 = arith.constant 0 : i32
    %c0_i32_0 = arith.constant 0 : i32
    %c0_i32_1 = arith.constant 0 : i32
    return %c0_i32, %c0_i32_0 : i32, i32
  }
  func.func @transform_6(%arg0: i32) -> (i32, i32) {
    %c0_i32 = arith.constant 0 : i32
    %c0_i32_0 = arith.constant 0 : i32
    %c0_i32_1 = arith.constant 0 : i32
    return %c0_i32, %c0_i32_0 : i32, i32
  }
  func.func @transform_7(%arg0: i32) -> (i32, i32) {
    %c0_i32 = arith.constant 0 : i32
    %c0_i32_0 = arith.constant 0 : i32
    %c0_i32_1 = arith.constant 0 : i32
    return %c0_i32, %c0_i32_0 : i32, i32
  }
  func.func @transform_8(%arg0: i32) -> (i32, i32) {
    %c0_i32 = arith.constant 0 : i32
    %c0_i32_0 = arith.constant 0 : i32
    %c0_i32_1 = arith.constant 0 : i32
    return %c0_i32, %c0_i32_0 : i32, i32
  }
  func.func @transform_9(%arg0: i32) -> (i32, i32) {
    %c0_i32 = arith.constant 0 : i32
    %c0_i32_0 = arith.constant 0 : i32
    return %c0_i32, %arg0 : i32, i32
  }
}

</mosaic_0001>

<llo_original>
// kernel: model_forward.1
$region0: #{model_forward.1}
  #allocation0 [shape = 'u32[]', space=smem, size = 0x4, offset = 0x4, fixed_abs, tag = 'smem constant byte address 0x4 - core index']
  #allocation1 [shape = 'u32[144,128]{1,0:T(1,128)}', space=vmem, size = 0x12000, scoped, tag = 'internal scratch']
  %s0 = inlined_call_operand.vmem [shape: f32[1024,16], index: 0, kind: input, shape index: {}]
  %s1 = inlined_call_operand.vmem [shape: f32[1024,8], index: 1, kind: input, shape index: {}]
  %s2 = inlined_call_operand.vmem [shape: f32[64,16], index: 2, kind: input, shape index: {}]
  %s3 = inlined_call_operand.vmem [shape: f32[64,8], index: 3, kind: input, shape index: {}]
  %s4 = inlined_call_operand.vmem [shape: f32[256,64], index: 4, kind: input, shape index: {}]
  %s5 = inlined_call_operand.vmem [shape: f32[256,8], index: 5, kind: input, shape index: {}]
  %s6 = inlined_call_operand.vmem [shape: f32[256,64], index: 6, kind: input, shape index: {}]
  %s7 = inlined_call_operand.vmem [shape: f32[256,3], index: 7, kind: input, shape index: {}]
  %s8 = inlined_call_operand.vmem [shape: f32[8,64], index: 8, kind: input, shape index: {}]
  %s9 = inlined_call_operand.hbm [shape: f32[8,1024], index: 9, kind: output, shape index: {}]
  %s10 = sld [smem:[#allocation0]]
  $region69: #{model_forward.1} parent=0
    _
  %s12 = ssub.s32 1, %s10
  %s13 = scalar_select 0, %s12, %s10
  $region1: #{model_forward.1} parent=0
    #allocation2 [shape = 'u8[16384]{0}', space=vmem, size = 0x4000, scoped, tag = 'output window, operand 0']
    #allocation3 [shape = 's32[2]{0}', space=sflag, size = 0x8, scoped, tag = 'scoped memory for model_forward.1']
    %14 = vsyncpa [#allocation3], 0
    %s15 = scalar_lea.sflag [#allocation3], 1
    %16 = vsyncpa %s15, 0
    loop: start=0, step=1, limit=6
    $region2: #{model_forward.1} parent=1 // loop_pre_header
      _
    $region3: #{model_forward.1} parent=1 // loop_header
      %s18 = sphi 0, %s22
      %p19 = scmp.ge.s32.totalorder %s18, 6
      %s28 = sphi 0, %s30
      %s31 = sphi 0, %s28
      %s32 = sphi 0, %s31
      %s48 = sphi 0, %s32
      %s54 = sphi 0, %s56
      %s57 = sphi 0, %s54
      %s58 = sphi 0, %s57
      %s74 = sphi 0, %s58
      %s78 = sphi 0, %s78
      %s80 = sphi 0, %s78
      %s81 = sphi 0, %s80
      %s95 = sphi 0, %s81
      %s99 = sphi 0, %s99
      %s101 = sphi 0, %s99
      %s102 = sphi 0, %s101
      %s116 = sphi 0, %s102
      %s120 = sphi 0, %s120
      %s122 = sphi 0, %s120
      %s123 = sphi 0, %s122
      %s137 = sphi 0, %s123
      %s141 = sphi 0, %s141
      %s143 = sphi 0, %s141
      %s144 = sphi 0, %s143
      %s158 = sphi 0, %s144
      %s162 = sphi 0, %s162
      %s164 = sphi 0, %s162
      %s165 = sphi 0, %s164
      %s179 = sphi 0, %s165
      %s183 = sphi 0, %s183
      %s185 = sphi 0, %s183
      %s186 = sphi 0, %s185
      %s200 = sphi 0, %s186
      %s204 = sphi 0, %s204
      %s206 = sphi 0, %s204
      %s207 = sphi 0, %s206
      %s221 = sphi 0, %s207
      %s227 = sphi 0, %s229
      %s230 = sphi 0, %s227
      %s231 = sphi 0, %s230
      %s247 = sphi 0, %s231
    $region4: #{model_forward.1} parent=1 // loop_header_branch
      %21 = sbr.rel (%p19) target = $region8
    $region5: #{model_forward.1} parent=1 // loop_body
      %s23 = ssub.s32 %s18, 1
      %s24 = ssub.s32 %s18, 2
      %s25 = sadd.s32 %s18, 1
      %s26 = ssub.s32 %s18, %s25
      %p27 = scmp.eq.s32.totalorder %s26, 0
      %s29 = sadd.s32 %s28, 1
      %s30 = scalar_select %p27, %s28, %s29
      %p33 = pneg %p27
      %p34 = scmp.eq.s32.totalorder %s18, 3
      %p35 = por %p33, %p34
      %p36 = scmp.ne.s32.totalorder %s28, %s31
      %p37 = scmp.eq.s32.totalorder %s18, 0
      %p38 = por %p36, %p37
      %p39 = scmp.ne.s32.totalorder %s28, %s31
      %p40 = scmp.eq.s32.totalorder %s23, 3
      %p41 = por %p39, %p40
      %p42 = scmp.ne.s32.totalorder %s31, %s32
      %p43 = scmp.eq.s32.totalorder %s23, 0
      %p44 = por %p42, %p43
      %p45 = scmp.ne.s32.totalorder %s31, %s32
      %p46 = scmp.eq.s32.totalorder %s24, 3
      %p47 = por %p45, %p46
      %p49 = scmp.ne.s32.totalorder %s32, %s48
      %p50 = scmp.eq.s32.totalorder %s24, 0
      %p51 = por %p49, %p50
      %s52 = ssub.s32 %s18, %s25
      %p53 = scmp.eq.s32.totalorder %s52, 0
      %s55 = sadd.s32 %s54, 1
      %s56 = scalar_select %p53, %s54, %s55
      %p59 = pneg %p53
      %p60 = scmp.eq.s32.totalorder %s18, 3
      %p61 = por %p59, %p60
      %p62 = scmp.ne.s32.totalorder %s54, %s57
      %p63 = scmp.eq.s32.totalorder %s18, 0
      %p64 = por %p62, %p63
      %p65 = scmp.ne.s32.totalorder %s54, %s57
      %p66 = scmp.eq.s32.totalorder %s23, 3
      %p67 = por %p65, %p66
      %p68 = scmp.ne.s32.totalorder %s57, %s58
      %p69 = scmp.eq.s32.totalorder %s23, 0
      %p70 = por %p68, %p69
      %p71 = scmp.ne.s32.totalorder %s57, %s58
      %p72 = scmp.eq.s32.totalorder %s24, 3
      %p73 = por %p71, %p72
      %p75 = scmp.ne.s32.totalorder %s58, %s74
      %p76 = scmp.eq.s32.totalorder %s24, 0
      %p77 = por %p75, %p76
      %s79 = sadd.s32 %s78, 1
      %p82 = scmp.eq.s32.totalorder %s18, 3
      %p83 = scmp.ne.s32.totalorder %s78, %s80
      %p84 = scmp.eq.s32.totalorder %s18, 0
      %p85 = por %p83, %p84
      %p86 = scmp.ne.s32.totalorder %s78, %s80
      %p87 = scmp.eq.s32.totalorder %s23, 3
      %p88 = por %p86, %p87
      %p89 = scmp.ne.s32.totalorder %s80, %s81
      %p90 = scmp.eq.s32.totalorder %s23, 0
      %p91 = por %p89, %p90
      %p92 = scmp.ne.s32.totalorder %s80, %s81
      %p93 = scmp.eq.s32.totalorder %s24, 3
      %p94 = por %p92, %p93
      %p96 = scmp.ne.s32.totalorder %s81, %s95
      %p97 = scmp.eq.s32.totalorder %s24, 0
      %p98 = por %p96, %p97
      %s100 = sadd.s32 %s99, 1
      %p103 = scmp.eq.s32.totalorder %s18, 3
      %p104 = scmp.ne.s32.totalorder %s99, %s101
      %p105 = scmp.eq.s32.totalorder %s18, 0
      %p106 = por %p104, %p105
      %p107 = scmp.ne.s32.totalorder %s99, %s101
      %p108 = scmp.eq.s32.totalorder %s23, 3
      %p109 = por %p107, %p108
      %p110 = scmp.ne.s32.totalorder %s101, %s102
      %p111 = scmp.eq.s32.totalorder %s23, 0
      %p112 = por %p110, %p111
      %p113 = scmp.ne.s32.totalorder %s101, %s102
      %p114 = scmp.eq.s32.totalorder %s24, 3
      %p115 = por %p113, %p114
      %p117 = scmp.ne.s32.totalorder %s102, %s116
      %p118 = scmp.eq.s32.totalorder %s24, 0
      %p119 = por %p117, %p118
      %s121 = sadd.s32 %s120, 1
      %p124 = scmp.eq.s32.totalorder %s18, 3
      %p125 = scmp.ne.s32.totalorder %s120, %s122
      %p126 = scmp.eq.s32.totalorder %s18, 0
      %p127 = por %p125, %p126
      %p128 = scmp.ne.s32.totalorder %s120, %s122
      %p129 = scmp.eq.s32.totalorder %s23, 3
      %p130 = por %p128, %p129
      %p131 = scmp.ne.s32.totalorder %s122, %s123
      %p132 = scmp.eq.s32.totalorder %s23, 0
      %p133 = por %p131, %p132
      %p134 = scmp.ne.s32.totalorder %s122, %s123
      %p135 = scmp.eq.s32.totalorder %s24, 3
      %p136 = por %p134, %p135
      %p138 = scmp.ne.s32.totalorder %s123, %s137
      %p139 = scmp.eq.s32.totalorder %s24, 0
      %p140 = por %p138, %p139
      %s142 = sadd.s32 %s141, 1
      %p145 = scmp.eq.s32.totalorder %s18, 3
      %p146 = scmp.ne.s32.totalorder %s141, %s143
      %p147 = scmp.eq.s32.totalorder %s18, 0
      %p148 = por %p146, %p147
      %p149 = scmp.ne.s32.totalorder %s141, %s143
      %p150 = scmp.eq.s32.totalorder %s23, 3
      %p151 = por %p149, %p150
      %p152 = scmp.ne.s32.totalorder %s143, %s144
      %p153 = scmp.eq.s32.totalorder %s23, 0
      %p154 = por %p152, %p153
      %p155 = scmp.ne.s32.totalorder %s143, %s144
      %p156 = scmp.eq.s32.totalorder %s24, 3
      %p157 = por %p155, %p156
      %p159 = scmp.ne.s32.totalorder %s144, %s158
      %p160 = scmp.eq.s32.totalorder %s24, 0
      %p161 = por %p159, %p160
      %s163 = sadd.s32 %s162, 1
      %p166 = scmp.eq.s32.totalorder %s18, 3
      %p167 = scmp.ne.s32.totalorder %s162, %s164
      %p168 = scmp.eq.s32.totalorder %s18, 0
      %p169 = por %p167, %p168
      %p170 = scmp.ne.s32.totalorder %s162, %s164
      %p171 = scmp.eq.s32.totalorder %s23, 3
      %p172 = por %p170, %p171
      %p173 = scmp.ne.s32.totalorder %s164, %s165
      %p174 = scmp.eq.s32.totalorder %s23, 0
      %p175 = por %p173, %p174
      %p176 = scmp.ne.s32.totalorder %s164, %s165
      %p177 = scmp.eq.s32.totalorder %s24, 3
      %p178 = por %p176, %p177
      %p180 = scmp.ne.s32.totalorder %s165, %s179
      %p181 = scmp.eq.s32.totalorder %s24, 0
      %p182 = por %p180, %p181
      %s184 = sadd.s32 %s183, 1
      %p187 = scmp.eq.s32.totalorder %s18, 3
      %p188 = scmp.ne.s32.totalorder %s183, %s185
      %p189 = scmp.eq.s32.totalorder %s18, 0
      %p190 = por %p188, %p189
      %p191 = scmp.ne.s32.totalorder %s183, %s185
      %p192 = scmp.eq.s32.totalorder %s23, 3
      %p193 = por %p191, %p192
      %p194 = scmp.ne.s32.totalorder %s185, %s186
      %p195 = scmp.eq.s32.totalorder %s23, 0
      %p196 = por %p194, %p195
      %p197 = scmp.ne.s32.totalorder %s185, %s186
      %p198 = scmp.eq.s32.totalorder %s24, 3
      %p199 = por %p197, %p198
      %p201 = scmp.ne.s32.totalorder %s186, %s200
      %p202 = scmp.eq.s32.totalorder %s24, 0
      %p203 = por %p201, %p202
      %s205 = sadd.s32 %s204, 1
      %p208 = scmp.eq.s32.totalorder %s18, 3
      %p209 = scmp.ne.s32.totalorder %s204, %s206
      %p210 = scmp.eq.s32.totalorder %s18, 0
      %p211 = por %p209, %p210
      %p212 = scmp.ne.s32.totalorder %s204, %s206
      %p213 = scmp.eq.s32.totalorder %s23, 3
      %p214 = por %p212, %p213
      %p215 = scmp.ne.s32.totalorder %s206, %s207
      %p216 = scmp.eq.s32.totalorder %s23, 0
      %p217 = por %p215, %p216
      %p218 = scmp.ne.s32.totalorder %s206, %s207
      %p219 = scmp.eq.s32.totalorder %s24, 3
      %p220 = por %p218, %p219
      %p222 = scmp.ne.s32.totalorder %s207, %s221
      %p223 = scmp.eq.s32.totalorder %s24, 0
      %p224 = por %p222, %p223
      %s225 = ssub.s32 %s18, %s25
      %p226 = scmp.eq.s32.totalorder %s225, 0
      %s228 = sadd.s32 %s227, 1
      %s229 = scalar_select %p226, %s227, %s228
      %p232 = pneg %p226
      %p233 = scmp.eq.s32.totalorder %s18, 3
      %p234 = por %p232, %p233
      %p235 = scmp.ne.s32.totalorder %s227, %s230
      %p236 = scmp.eq.s32.totalorder %s18, 0
      %p237 = por %p235, %p236
      %p238 = scmp.ne.s32.totalorder %s227, %s230
      %p239 = scmp.eq.s32.totalorder %s23, 3
      %p240 = por %p238, %p239
      %p241 = scmp.ne.s32.totalorder %s230, %s231
      %p242 = scmp.eq.s32.totalorder %s23, 0
      %p243 = por %p241, %p242
      %p244 = scmp.ne.s32.totalorder %s230, %s231
      %p245 = scmp.eq.s32.totalorder %s24, 3
      %p246 = por %p244, %p245
      %p248 = scmp.ne.s32.totalorder %s231, %s247
      %p249 = scmp.eq.s32.totalorder %s24, 0
      %p250 = por %p248, %p249
      %p251 = scmp.le.s32.totalorder 1, %s18
      %p252 = scmp.lt.s32.totalorder %s18, 5
      %p253 = pnand %p251, %p252
      %p254 = pneg %p253
      // Predicated region
      $region9: #{model_forward.1} parent=5 // pred_check
        _
      $region10: #{model_forward.1} parent=5 // pred_check_branch
        %256 = sbr.rel (%p253) target = $region12
      $region11: #{model_forward.1} parent=5 // pred_region
        %s257 = ssub.s32 %s18, 1
        // Predicated region
        $region13: #{model_forward.1} parent=11 // pred_check
          %p258 = pneg %p91
        $region14: #{model_forward.1} parent=11 // pred_check_branch
          %260 = sbr.rel (%p258) target = $region16
        $region15: #{model_forward.1} parent=11 // pred_region
          _
        $region16: #{model_forward.1} parent=11 // pred_fallthru
          _
        // Predicated region
        $region17: #{model_forward.1} parent=11 // pred_check
          %p261 = pneg %p112
        $region18: #{model_forward.1} parent=11 // pred_check_branch
          %263 = sbr.rel (%p261) target = $region20
        $region19: #{model_forward.1} parent=11 // pred_region
          _
        $region20: #{model_forward.1} parent=11 // pred_fallthru
          _
        // Predicated region
        $region21: #{model_forward.1} parent=11 // pred_check
          %p264 = pneg %p133
        $region22: #{model_forward.1} parent=11 // pred_check_branch
          %266 = sbr.rel (%p264) target = $region24
        $region23: #{model_forward.1} parent=11 // pred_region
          _
        $region24: #{model_forward.1} parent=11 // pred_fallthru
          _
        // Predicated region
        $region25: #{model_forward.1} parent=11 // pred_check
          %p267 = pneg %p154
        $region26: #{model_forward.1} parent=11 // pred_check_branch
          %269 = sbr.rel (%p267) target = $region28
        $region27: #{model_forward.1} parent=11 // pred_region
          _
        $region28: #{model_forward.1} parent=11 // pred_fallthru
          _
        // Predicated region
        $region29: #{model_forward.1} parent=11 // pred_check
          %p270 = pneg %p175
        $region30: #{model_forward.1} parent=11 // pred_check_branch
          %272 = sbr.rel (%p270) target = $region32
        $region31: #{model_forward.1} parent=11 // pred_region
          _
        $region32: #{model_forward.1} parent=11 // pred_fallthru
          _
        // Predicated region
        $region33: #{model_forward.1} parent=11 // pred_check
          %p273 = pneg %p196
        $region34: #{model_forward.1} parent=11 // pred_check_branch
          %275 = sbr.rel (%p273) target = $region36
        $region35: #{model_forward.1} parent=11 // pred_region
          _
        $region36: #{model_forward.1} parent=11 // pred_fallthru
          _
        // Predicated region
        $region37: #{model_forward.1} parent=11 // pred_check
          %p276 = pneg %p217
        $region38: #{model_forward.1} parent=11 // pred_check_branch
          %278 = sbr.rel (%p276) target = $region40
        $region39: #{model_forward.1} parent=11 // pred_region
          _
        $region40: #{model_forward.1} parent=11 // pred_fallthru
          _
      $region12: #{model_forward.1} parent=5 // pred_fallthru
        _
      %p279 = scmp.lt.s32.totalorder %s18, 4
      // Predicated region
      $region41: #{model_forward.1} parent=5 // pred_check
        %p280 = pneg %p279
      $region42: #{model_forward.1} parent=5 // pred_check_branch
        %282 = sbr.rel (%p280) target = $region44
      $region43: #{model_forward.1} parent=5 // pred_region
        // Predicated region
        $region45: #{model_forward.1} parent=43 // pred_check
          %p283 = pneg %p38
        $region46: #{model_forward.1} parent=43 // pred_check_branch
          %285 = sbr.rel (%p283) target = $region48
        $region47: #{model_forward.1} parent=43 // pred_region
          %s286 = smul.u32 32, %s18
          %p287 = scmp.lt.s32.totalorder %s286, 127
          %s288 = scalar_select %p287, %s286, 127
          %s289 = smul.addr %s288, 8
          %s290 = scalar_lea.vmem %s0, %s289
          %s291 = smul.u32 32, %s18
        $region48: #{model_forward.1} parent=43 // pred_fallthru
          _
        // Predicated region
        $region49: #{model_forward.1} parent=43 // pred_check
          %p292 = pneg %p64
        $region50: #{model_forward.1} parent=43 // pred_check_branch
          %294 = sbr.rel (%p292) target = $region52
        $region51: #{model_forward.1} parent=43 // pred_region
          %s295 = smul.u32 32, %s18
          %p296 = scmp.lt.s32.totalorder %s295, 127
          %s297 = scalar_select %p296, %s295, 127
          %s298 = smul.addr %s297, 8
          %s299 = scalar_lea.vmem %s1, %s298
          %s300 = smul.u32 32, %s18
        $region52: #{model_forward.1} parent=43 // pred_fallthru
          _
      $region44: #{model_forward.1} parent=5 // pred_fallthru
        _
      %p301 = scmp.le.s32.totalorder 1, %s18
      %p302 = scmp.lt.s32.totalorder %s18, 5
      %p303 = pnand %p301, %p302
      %p304 = pneg %p303
      // Predicated region
      $region53: #{model_forward.1} parent=5 // pred_check
        _
      $region54: #{model_forward.1} parent=5 // pred_check_branch
        %306 = sbr.rel (%p303) target = $region56
      $region55: #{model_forward.1} parent=5 // pred_region
        %s307 = ssub.s32 %s18, 1
        %s308 = smul.u32 32, %s23
        %p309 = scmp.lt.s32.totalorder %s308, 127
        %s310 = scalar_select %p309, %s308, 127
        %s311 = smul.addr %s310, 8
        %s312 = scalar_lea.vmem %s0, %s311
        %p313 = pneg %p44
        %p314 = pneg %p41
        %s315 = smul.u32 32, %s23
        %p316 = scmp.lt.s32.totalorder %s315, 127
        %s317 = scalar_select %p316, %s315, 127
        %s318 = smul.addr %s317, 8
        %s319 = scalar_lea.vmem %s1, %s318
        %p320 = pneg %p70
        %p321 = pneg %p67
        %p322 = pneg %p91
        %p323 = pneg %p88
        %p324 = pneg %p112
        %p325 = pneg %p109
        %p326 = pneg %p133
        %p327 = pneg %p130
        %p328 = pneg %p154
        %p329 = pneg %p151
        %p330 = pneg %p175
        %p331 = pneg %p172
        %p332 = pneg %p196
        %p333 = pneg %p193
        %p334 = pneg %p217
        %p335 = pneg %p214
        %p336 = pneg %p243
        %p337 = pneg %p240
        %s338 = sand.u32 %s230, 1
        %s339 = scalar_lea.sflag [#allocation3], %s338
        %s340 = sand.u32 %s230, 1
        %s341 = smul.addr %s340, 16
        %s342 = scalar_lea.vmem [#allocation2], %s341
        %s343 = smul.u32 32, %s23
        %p344 = scmp.lt.s32.totalorder %s343, 127
        %s345 = scalar_select %p344, %s343, 127
        %s346 = smul.addr %s345, 8
        %s347 = scalar_lea.vmem %s0, %s346
        %s348 = smul.u32 32, %s23
        %s349 = smul.u32 32, %s23
        %p350 = scmp.lt.s32.totalorder %s349, 127
        %s351 = scalar_select %p350, %s349, 127
        %s352 = smul.addr %s351, 8
        %s353 = scalar_lea.vmem %s1, %s352
        %s354 = smul.u32 32, %s23
        %s355 = smul.u32 2, %s23
        %v356 = vld [vmem:[%s347] sm:$0xff]
        %v357 = vld [vmem:[%s347 + $0x8] sm:$0xff]
        %v358 = vld [vmem:[%s347 + $0x10] sm:$0xff]
        %v359 = vld [vmem:[%s347 + $0x18] sm:$0xff]
        %v360 = vld [vmem:[%s347 + $0x20] sm:$0xff]
        %v361 = vld [vmem:[%s347 + $0x28] sm:$0xff]
        %v362 = vld [vmem:[%s347 + $0x30] sm:$0xff]
        %v363 = vld [vmem:[%s347 + $0x38] sm:$0xff]
        %v364 = vld [vmem:[%s347 + $0x40] sm:$0xff]
        %v365 = vld [vmem:[%s347 + $0x48] sm:$0xff]
        %v366 = vld [vmem:[%s347 + $0x50] sm:$0xff]
        %v367 = vld [vmem:[%s347 + $0x58] sm:$0xff]
        %v368 = vld [vmem:[%s347 + $0x60] sm:$0xff]
        %v369 = vld [vmem:[%s347 + $0x68] sm:$0xff]
        %v370 = vld [vmem:[%s347 + $0x70] sm:$0xff]
        %v371 = vld [vmem:[%s347 + $0x78] sm:$0xff]
        %v372 = vld [vmem:[%s347 + $0x80] sm:$0xff]
        %v373 = vld [vmem:[%s347 + $0x88] sm:$0xff]
        %v374 = vld [vmem:[%s347 + $0x90] sm:$0xff]
        %v375 = vld [vmem:[%s347 + $0x98] sm:$0xff]
        %v376 = vld [vmem:[%s347 + $0xa0] sm:$0xff]
        %v377 = vld [vmem:[%s347 + $0xa8] sm:$0xff]
        %v378 = vld [vmem:[%s347 + $0xb0] sm:$0xff]
        %v379 = vld [vmem:[%s347 + $0xb8] sm:$0xff]
        %v380 = vld [vmem:[%s347 + $0xc0] sm:$0xff]
        %v381 = vld [vmem:[%s347 + $0xc8] sm:$0xff]
        %v382 = vld [vmem:[%s347 + $0xd0] sm:$0xff]
        %v383 = vld [vmem:[%s347 + $0xd8] sm:$0xff]
        %v384 = vld [vmem:[%s347 + $0xe0] sm:$0xff]
        %v385 = vld [vmem:[%s347 + $0xe8] sm:$0xff]
        %v386 = vld [vmem:[%s347 + $0xf0] sm:$0xff]
        %v387 = vld [vmem:[%s347 + $0xf8] sm:$0xff]
        %v388 = vld [vmem:[%s353] sm:$0xff]
        %v389 = vld [vmem:[%s353 + $0x8] sm:$0xff]
        %v390 = vld [vmem:[%s353 + $0x10] sm:$0xff]
        %v391 = vld [vmem:[%s353 + $0x18] sm:$0xff]
        %v392 = vld [vmem:[%s353 + $0x20] sm:$0xff]
        %v393 = vld [vmem:[%s353 + $0x28] sm:$0xff]
        %v394 = vld [vmem:[%s353 + $0x30] sm:$0xff]
        %v395 = vld [vmem:[%s353 + $0x38] sm:$0xff]
        %v396 = vld [vmem:[%s353 + $0x40] sm:$0xff]
        %v397 = vld [vmem:[%s353 + $0x48] sm:$0xff]
        %v398 = vld [vmem:[%s353 + $0x50] sm:$0xff]
        %v399 = vld [vmem:[%s353 + $0x58] sm:$0xff]
        %v400 = vld [vmem:[%s353 + $0x60] sm:$0xff]
        %v401 = vld [vmem:[%s353 + $0x68] sm:$0xff]
        %v402 = vld [vmem:[%s353 + $0x70] sm:$0xff]
        %v403 = vld [vmem:[%s353 + $0x78] sm:$0xff]
        %v404 = vld [vmem:[%s353 + $0x80] sm:$0xff]
        %v405 = vld [vmem:[%s353 + $0x88] sm:$0xff]
        %v406 = vld [vmem:[%s353 + $0x90] sm:$0xff]
        %v407 = vld [vmem:[%s353 + $0x98] sm:$0xff]
        %v408 = vld [vmem:[%s353 + $0xa0] sm:$0xff]
        %v409 = vld [vmem:[%s353 + $0xa8] sm:$0xff]
        %v410 = vld [vmem:[%s353 + $0xb0] sm:$0xff]
        %v411 = vld [vmem:[%s353 + $0xb8] sm:$0xff]
        %v412 = vld [vmem:[%s353 + $0xc0] sm:$0xff]
        %v413 = vld [vmem:[%s353 + $0xc8] sm:$0xff]
        %v414 = vld [vmem:[%s353 + $0xd0] sm:$0xff]
        %v415 = vld [vmem:[%s353 + $0xd8] sm:$0xff]
        %v416 = vld [vmem:[%s353 + $0xe0] sm:$0xff]
        %v417 = vld [vmem:[%s353 + $0xe8] sm:$0xff]
        %v418 = vld [vmem:[%s353 + $0xf0] sm:$0xff]
        %v419 = vld [vmem:[%s353 + $0xf8] sm:$0xff]
        %v420 = vld [vmem:[%s2] sm:$0xff]
        %v421 = vld [vmem:[%s2 + $0x8] sm:$0xff]
        %v422 = vld [vmem:[%s2 + $0x10] sm:$0xff]
        %v423 = vld [vmem:[%s2 + $0x18] sm:$0xff]
        %v424 = vld [vmem:[%s2 + $0x20] sm:$0xff]
        %v425 = vld [vmem:[%s2 + $0x28] sm:$0xff]
        %v426 = vld [vmem:[%s2 + $0x30] sm:$0xff]
        %v427 = vld [vmem:[%s2 + $0x38] sm:$0xff]
        %v428 = vld [vmem:[%s3] sm:$0xff]
        %v429 = vld [vmem:[%s3 + $0x8] sm:$0xff]
        %v430 = vld [vmem:[%s3 + $0x10] sm:$0xff]
        %v431 = vld [vmem:[%s3 + $0x18] sm:$0xff]
        %v432 = vld [vmem:[%s3 + $0x20] sm:$0xff]
        %v433 = vld [vmem:[%s3 + $0x28] sm:$0xff]
        %v434 = vld [vmem:[%s3 + $0x30] sm:$0xff]
        %v435 = vld [vmem:[%s3 + $0x38] sm:$0xff]
        %vm436 = vcmask 64512
        %v438 = vsel %vm436, %v428, 0
        %v441 = vsel %vm436, %v429, 0
        %v444 = vsel %vm436, %v430, 0
        %v447 = vsel %vm436, %v431, 0
        %v450 = vsel %vm436, %v432, 0
        %v453 = vsel %vm436, %v433, 0
        %v456 = vsel %vm436, %v434, 0
        %v459 = vsel %vm436, %v435, 0
        %v462 = vsel %vm436, %v388, 0
        %v465 = vsel %vm436, %v389, 0
        %v468 = vsel %vm436, %v390, 0
        %v471 = vsel %vm436, %v391, 0
        %v474 = vsel %vm436, %v392, 0
        %v477 = vsel %vm436, %v393, 0
        %v480 = vsel %vm436, %v394, 0
        %v483 = vsel %vm436, %v395, 0
        %v486 = vsel %vm436, %v396, 0
        %v489 = vsel %vm436, %v397, 0
        %v492 = vsel %vm436, %v398, 0
        %v495 = vsel %vm436, %v399, 0
        %v498 = vsel %vm436, %v400, 0
        %v501 = vsel %vm436, %v401, 0
        %v504 = vsel %vm436, %v402, 0
        %v507 = vsel %vm436, %v403, 0
        %v510 = vsel %vm436, %v404, 0
        %v513 = vsel %vm436, %v405, 0
        %v516 = vsel %vm436, %v406, 0
        %v519 = vsel %vm436, %v407, 0
        %v522 = vsel %vm436, %v408, 0
        %v525 = vsel %vm436, %v409, 0
        %v528 = vsel %vm436, %v410, 0
        %v531 = vsel %vm436, %v411, 0
        %v534 = vsel %vm436, %v412, 0
        %v537 = vsel %vm436, %v413, 0
        %v540 = vsel %vm436, %v414, 0
        %v543 = vsel %vm436, %v415, 0
        %v546 = vsel %vm436, %v416, 0
        %v549 = vsel %vm436, %v417, 0
        %v552 = vsel %vm436, %v418, 0
        %v555 = vsel %vm436, %v419, 0
        %557 = vmatprep.subr.mxu0 0.0
        %558 = vmatpush1.xpose.msra.mxu0 %v462
        %559 = vmatprep.subr.mxu0 0.0
        %560 = vmatpush1.xpose.msra.mxu0 %v465
        %561 = vmatprep.subr.mxu0 0.0
        %562 = vmatpush1.xpose.msra.mxu0 %v468
        %563 = vmatprep.subr.mxu0 0.0
        %564 = vmatpush1.xpose.msra.mxu0 %v471
        %565 = vmatprep.subr.mxu0 0.0
        %566 = vmatpush1.xpose.msra.mxu0 %v474
        %567 = vmatprep.subr.mxu0 0.0
        %568 = vmatpush1.xpose.msra.mxu0 %v477
        %569 = vmatprep.subr.mxu0 0.0
        %570 = vmatpush1.xpose.msra.mxu0 %v480
        %571 = vmatprep.subr.mxu0 0.0
        %572 = vmatpush1.xpose.msra.mxu0 %v483
        %573 = vmatprep.subr.mxu0 0.0
        %574 = vmatpush1.xpose.msra.mxu0 %v486
        %575 = vmatprep.subr.mxu0 0.0
        %576 = vmatpush1.xpose.msra.mxu0 %v489
        %577 = vmatprep.subr.mxu0 0.0
        %578 = vmatpush1.xpose.msra.mxu0 %v492
        %579 = vmatprep.subr.mxu0 0.0
        %580 = vmatpush1.xpose.msra.mxu0 %v495
        %581 = vmatprep.subr.mxu0 0.0
        %582 = vmatpush1.xpose.msra.mxu0 %v498
        %583 = vmatprep.subr.mxu0 0.0
        %584 = vmatpush1.xpose.msra.mxu0 %v501
        %585 = vmatprep.subr.mxu0 0.0
        %586 = vmatpush1.xpose.msra.mxu0 %v504
        %587 = vmatprep.subr.mxu0 0.0
        %588 = vmatpush1.xpose.msra.mxu0 %v507
        %589 = vmatprep.subr.mxu0 0.0
        %590 = vmatpush1.xpose.msra.mxu0 %v510
        %591 = vmatprep.subr.mxu0 0.0
        %592 = vmatpush1.xpose.msra.mxu0 %v513
        %593 = vmatprep.subr.mxu0 0.0
        %594 = vmatpush1.xpose.msra.mxu0 %v516
        %595 = vmatprep.subr.mxu0 0.0
        %596 = vmatpush1.xpose.msra.mxu0 %v519
        %597 = vmatprep.subr.mxu0 0.0
        %598 = vmatpush1.xpose.msra.mxu0 %v522
        %599 = vmatprep.subr.mxu0 0.0
        %600 = vmatpush1.xpose.msra.mxu0 %v525
        %601 = vmatprep.subr.mxu0 0.0
        %602 = vmatpush1.xpose.msra.mxu0 %v528
        %603 = vmatprep.subr.mxu0 0.0
        %604 = vmatpush1.xpose.msra.mxu0 %v531
        %605 = vmatprep.subr.mxu0 0.0
        %606 = vmatpush1.xpose.msra.mxu0 %v534
        %607 = vmatprep.subr.mxu0 0.0
        %608 = vmatpush1.xpose.msra.mxu0 %v537
        %609 = vmatprep.subr.mxu0 0.0
        %610 = vmatpush1.xpose.msra.mxu0 %v540
        %611 = vmatprep.subr.mxu0 0.0
        %612 = vmatpush1.xpose.msra.mxu0 %v543
        %613 = vmatprep.subr.mxu0 0.0
        %614 = vmatpush1.xpose.msra.mxu0 %v546
        %615 = vmatprep.subr.mxu0 0.0
        %616 = vmatpush1.xpose.msra.mxu0 %v549
        %617 = vmatprep.subr.mxu0 0.0
        %618 = vmatpush1.xpose.msra.mxu0 %v552
        %619 = vmatprep.subr.mxu0 0.0
        %620 = vmatpush1.xpose.msra.mxu0 %v555
        %621 = vmatprep.mubr.f32.mxu0 0.0
        %622 = vmatmul.mubr.f32.gmra.mrb[0].mxu0 %v438
        %v623 = vpop.f32.mrb[0].mxu0
        %v624 = vadd.f32 0.0, %v623
        %v625 = vpop.f32.mrb[0].mxu0
        %v626 = vadd.f32 0.0, %v625
        %627 = vmatprep.mubr.f32.mxu0 0.0
        %628 = vmatmul.mubr.f32.gmra.mrb[0].mxu0 %v441
        %v629 = vpop.f32.mrb[0].mxu0
        %v630 = vadd.f32 0.0, %v629
        %v631 = vpop.f32.mrb[0].mxu0
        %v632 = vadd.f32 0.0, %v631
        %633 = vmatprep.mubr.f32.mxu0 0.0
        %634 = vmatmul.mubr.f32.gmra.mrb[0].mxu0 %v444
        %v635 = vpop.f32.mrb[0].mxu0
        %v636 = vadd.f32 0.0, %v635
        %v637 = vpop.f32.mrb[0].mxu0
        %v638 = vadd.f32 0.0, %v637
        %639 = vmatprep.mubr.f32.mxu0 0.0
        %640 = vmatmul.mubr.f32.gmra.mrb[0].mxu0 %v447
        %v641 = vpop.f32.mrb[0].mxu0
        %v642 = vadd.f32 0.0, %v641
        %v643 = vpop.f32.mrb[0].mxu0
        %v644 = vadd.f32 0.0, %v643
        %645 = vmatprep.mubr.f32.mxu0 0.0
        %646 = vmatmul.mubr.f32.gmra.mrb[0].mxu0 %v450
        %v647 = vpop.f32.mrb[0].mxu0
        %v648 = vadd.f32 0.0, %v647
        %v649 = vpop.f32.mrb[0].mxu0
        %v650 = vadd.f32 0.0, %v649
        %651 = vmatprep.mubr.f32.mxu0 0.0
        %652 = vmatmul.mubr.f32.gmra.mrb[0].mxu0 %v453
        %v653 = vpop.f32.mrb[0].mxu0
        %v654 = vadd.f32 0.0, %v653
        %v655 = vpop.f32.mrb[0].mxu0
        %v656 = vadd.f32 0.0, %v655
        %657 = vmatprep.mubr.f32.mxu0 0.0
        %658 = vmatmul.mubr.f32.gmra.mrb[0].mxu0 %v456
        %v659 = vpop.f32.mrb[0].mxu0
        %v660 = vadd.f32 0.0, %v659
        %v661 = vpop.f32.mrb[0].mxu0
        %v662 = vadd.f32 0.0, %v661
        %663 = vmatprep.mubr.f32.mxu0 0.0
        %664 = vmatmul.mubr.f32.gmra.mrb[0].mxu0 %v459
        %v665 = vpop.f32.mrb[0].mxu0
        %v666 = vadd.f32 0.0, %v665
        %v667 = vpop.f32.mrb[0].mxu0
        %v668 = vadd.f32 0.0, %v667
        %669 = vdwg.mxu0
        %vm670 = vcmask 130048
        %v672 = vsel %vm670, %v420, 0
        %v675 = vsel %vm670, %v421, 0
        %v678 = vsel %vm670, %v422, 0
        %v681 = vsel %vm670, %v423, 0
        %v684 = vsel %vm670, %v424, 0
        %v687 = vsel %vm670, %v425, 0
        %v690 = vsel %vm670, %v426, 0
        %v693 = vsel %vm670, %v427, 0
        %v696 = vsel %vm670, %v356, 0
        %v699 = vsel %vm670, %v357, 0
        %v702 = vsel %vm670, %v358, 0
        %v705 = vsel %vm670, %v359, 0
        %v708 = vsel %vm670, %v360, 0
        %v711 = vsel %vm670, %v361, 0
        %v714 = vsel %vm670, %v362, 0
        %v717 = vsel %vm670, %v363, 0
        %v720 = vsel %vm670, %v364, 0
        %v723 = vsel %vm670, %v365, 0
        %v726 = vsel %vm670, %v366, 0
        %v729 = vsel %vm670, %v367, 0
        %v732 = vsel %vm670, %v368, 0
        %v735 = vsel %vm670, %v369, 0
        %v738 = vsel %vm670, %v370, 0
        %v741 = vsel %vm670, %v371, 0
        %v744 = vsel %vm670, %v372, 0
        %v747 = vsel %vm670, %v373, 0
        %v750 = vsel %vm670, %v374, 0
        %v753 = vsel %vm670, %v375, 0
        %v756 = vsel %vm670, %v376, 0
        %v759 = vsel %vm670, %v377, 0
        %v762 = vsel %vm670, %v378, 0
        %v765 = vsel %vm670, %v379, 0
        %v768 = vsel %vm670, %v380, 0
        %v771 = vsel %vm670, %v381, 0
        %v774 = vsel %vm670, %v382, 0
        %v777 = vsel %vm670, %v383, 0
        %v780 = vsel %vm670, %v384, 0
        %v783 = vsel %vm670, %v385, 0
        %v786 = vsel %vm670, %v386, 0
        %v789 = vsel %vm670, %v387, 0
        %791 = vmatprep.subr.mxu0 0.0
        %792 = vmatpush1.xpose.msra.mxu0 %v696
        %793 = vmatprep.subr.mxu0 0.0
        %794 = vmatpush1.xpose.msra.mxu0 %v699
        %795 = vmatprep.subr.mxu0 0.0
        %796 = vmatpush1.xpose.msra.mxu0 %v702
        %797 = vmatprep.subr.mxu0 0.0
        %798 = vmatpush1.xpose.msra.mxu0 %v705
        %799 = vmatprep.subr.mxu0 0.0
        %800 = vmatpush1.xpose.msra.mxu0 %v708
        %801 = vmatprep.subr.mxu0 0.0
        %802 = vmatpush1.xpose.msra.mxu0 %v711
        %803 = vmatprep.subr.mxu0 0.0
        %804 = vmatpush1.xpose.msra.mxu0 %v714
        %805 = vmatprep.subr.mxu0 0.0
        %806 = vmatpush1.xpose.msra.mxu0 %v717
        %807 = vmatprep.subr.mxu0 0.0
        %808 = vmatpush1.xpose.msra.mxu0 %v720
        %809 = vmatprep.subr.mxu0 0.0
        %810 = vmatpush1.xpose.msra.mxu0 %v723
        %811 = vmatprep.subr.mxu0 0.0
        %812 = vmatpush1.xpose.msra.mxu0 %v726
        %813 = vmatprep.subr.mxu0 0.0
        %814 = vmatpush1.xpose.msra.mxu0 %v729
        %815 = vmatprep.subr.mxu0 0.0
        %816 = vmatpush1.xpose.msra.mxu0 %v732
        %817 = vmatprep.subr.mxu0 0.0
        %818 = vmatpush1.xpose.msra.mxu0 %v735
        %819 = vmatprep.subr.mxu0 0.0
        %820 = vmatpush1.xpose.msra.mxu0 %v738
        %821 = vmatprep.subr.mxu0 0.0
        %822 = vmatpush1.xpose.msra.mxu0 %v741
        %823 = vmatprep.subr.mxu0 0.0
        %824 = vmatpush1.xpose.msra.mxu0 %v744
        %825 = vmatprep.subr.mxu0 0.0
        %826 = vmatpush1.xpose.msra.mxu0 %v747
        %827 = vmatprep.subr.mxu0 0.0
        %828 = vmatpush1.xpose.msra.mxu0 %v750
        %829 = vmatprep.subr.mxu0 0.0
        %830 = vmatpush1.xpose.msra.mxu0 %v753
        %831 = vmatprep.subr.mxu0 0.0
        %832 = vmatpush1.xpose.msra.mxu0 %v756
        %833 = vmatprep.subr.mxu0 0.0
        %834 = vmatpush1.xpose.msra.mxu0 %v759
        %835 = vmatprep.subr.mxu0 0.0
        %836 = vmatpush1.xpose.msra.mxu0 %v762
        %837 = vmatprep.subr.mxu0 0.0
        %838 = vmatpush1.xpose.msra.mxu0 %v765
        %839 = vmatprep.subr.mxu0 0.0
        %840 = vmatpush1.xpose.msra.mxu0 %v768
        %841 = vmatprep.subr.mxu0 0.0
        %842 = vmatpush1.xpose.msra.mxu0 %v771
        %843 = vmatprep.subr.mxu0 0.0
        %844 = vmatpush1.xpose.msra.mxu0 %v774
        %845 = vmatprep.subr.mxu0 0.0
        %846 = vmatpush1.xpose.msra.mxu0 %v777
        %847 = vmatprep.subr.mxu0 0.0
        %848 = vmatpush1.xpose.msra.mxu0 %v780
        %849 = vmatprep.subr.mxu0 0.0
        %850 = vmatpush1.xpose.msra.mxu0 %v783
        %851 = vmatprep.subr.mxu0 0.0
        %852 = vmatpush1.xpose.msra.mxu0 %v786
        %853 = vmatprep.subr.mxu0 0.0
        %854 = vmatpush1.xpose.msra.mxu0 %v789
        %855 = vmatprep.mubr.f32.mxu0 0.0
        %856 = vmatmul.mubr.f32.gmra.mrb[0].mxu0 %v672
        %v857 = vpop.f32.mrb[0].mxu0
        %v858 = vadd.f32 %v624, %v857
        %v859 = vpop.f32.mrb[0].mxu0
        %v860 = vadd.f32 %v626, %v859
        %861 = vmatprep.mubr.f32.mxu0 0.0
        %862 = vmatmul.mubr.f32.gmra.mrb[0].mxu0 %v675
        %v863 = vpop.f32.mrb[0].mxu0
        %v864 = vadd.f32 %v630, %v863
        %v865 = vpop.f32.mrb[0].mxu0
        %v866 = vadd.f32 %v632, %v865
        %867 = vmatprep.mubr.f32.mxu0 0.0
        %868 = vmatmul.mubr.f32.gmra.mrb[0].mxu0 %v678
        %v869 = vpop.f32.mrb[0].mxu0
        %v870 = vadd.f32 %v636, %v869
        %v871 = vpop.f32.mrb[0].mxu0
        %v872 = vadd.f32 %v638, %v871
        %873 = vmatprep.mubr.f32.mxu0 0.0
        %874 = vmatmul.mubr.f32.gmra.mrb[0].mxu0 %v681
        %v875 = vpop.f32.mrb[0].mxu0
        %v876 = vadd.f32 %v642, %v875
        %v877 = vpop.f32.mrb[0].mxu0
        %v878 = vadd.f32 %v644, %v877
        %879 = vmatprep.mubr.f32.mxu0 0.0
        %880 = vmatmul.mubr.f32.gmra.mrb[0].mxu0 %v684
        %v881 = vpop.f32.mrb[0].mxu0
        %v882 = vadd.f32 %v648, %v881
        %v883 = vpop.f32.mrb[0].mxu0
        %v884 = vadd.f32 %v650, %v883
        %885 = vmatprep.mubr.f32.mxu0 0.0
        %886 = vmatmul.mubr.f32.gmra.mrb[0].mxu0 %v687
        %v887 = vpop.f32.mrb[0].mxu0
        %v888 = vadd.f32 %v654, %v887
        %v889 = vpop.f32.mrb[0].mxu0
        %v890 = vadd.f32 %v656, %v889
        %891 = vmatprep.mubr.f32.mxu0 0.0
        %892 = vmatmul.mubr.f32.gmra.mrb[0].mxu0 %v690
        %v893 = vpop.f32.mrb[0].mxu0
        %v894 = vadd.f32 %v660, %v893
        %v895 = vpop.f32.mrb[0].mxu0
        %v896 = vadd.f32 %v662, %v895
        %897 = vmatprep.mubr.f32.mxu0 0.0
        %898 = vmatmul.mubr.f32.gmra.mrb[0].mxu0 %v693
        %v899 = vpop.f32.mrb[0].mxu0
        %v900 = vadd.f32 %v666, %v899
        %v901 = vpop.f32.mrb[0].mxu0
        %v902 = vadd.f32 %v668, %v901
        %903 = vdwg.mxu0
        %v904 = vxor.u32 %v388, 2147483648
        %v905 = vxor.u32 %v389, 2147483648
        %v906 = vxor.u32 %v390, 2147483648
        %v907 = vxor.u32 %v391, 2147483648
        %v908 = vxor.u32 %v392, 2147483648
        %v909 = vxor.u32 %v393, 2147483648
        %v910 = vxor.u32 %v394, 2147483648
        %v911 = vxor.u32 %v395, 2147483648
        %v912 = vxor.u32 %v396, 2147483648
        %v913 = vxor.u32 %v397, 2147483648
        %v914 = vxor.u32 %v398, 2147483648
        %v915 = vxor.u32 %v399, 2147483648
        %v916 = vxor.u32 %v400, 2147483648
        %v917 = vxor.u32 %v401, 2147483648
        %v918 = vxor.u32 %v402, 2147483648
        %v919 = vxor.u32 %v403, 2147483648
        %v920 = vxor.u32 %v404, 2147483648
        %v921 = vxor.u32 %v405, 2147483648
        %v922 = vxor.u32 %v406, 2147483648
        %v923 = vxor.u32 %v407, 2147483648
        %v924 = vxor.u32 %v408, 2147483648
        %v925 = vxor.u32 %v409, 2147483648
        %v926 = vxor.u32 %v410, 2147483648
        %v927 = vxor.u32 %v411, 2147483648
        %v928 = vxor.u32 %v412, 2147483648
        %v929 = vxor.u32 %v413, 2147483648
        %v930 = vxor.u32 %v414, 2147483648
        %v931 = vxor.u32 %v415, 2147483648
        %v932 = vxor.u32 %v416, 2147483648
        %v933 = vxor.u32 %v417, 2147483648
        %v934 = vxor.u32 %v418, 2147483648
        %v935 = vxor.u32 %v419, 2147483648
        %v936 = vmul.f32 %v904, 1.442695
        %v937 = vpow.pop %v936
        %v938 = vmul.f32 %v905, 1.442695
        %v939 = vpow.pop %v938
        %v940 = vmul.f32 %v906, 1.442695
        %v941 = vpow.pop %v940
        %v942 = vmul.f32 %v907, 1.442695
        %v943 = vpow.pop %v942
        %v944 = vmul.f32 %v908, 1.442695
        %v945 = vpow.pop %v944
        %v946 = vmul.f32 %v909, 1.442695
        %v947 = vpow.pop %v946
        %v948 = vmul.f32 %v910, 1.442695
        %v949 = vpow.pop %v948
        %v950 = vmul.f32 %v911, 1.442695
        %v951 = vpow.pop %v950
        %v952 = vmul.f32 %v912, 1.442695
        %v953 = vpow.pop %v952
        %v954 = vmul.f32 %v913, 1.442695
        %v955 = vpow.pop %v954
        %v956 = vmul.f32 %v914, 1.442695
        %v957 = vpow.pop %v956
        %v958 = vmul.f32 %v915, 1.442695
        %v959 = vpow.pop %v958
        %v960 = vmul.f32 %v916, 1.442695
        %v961 = vpow.pop %v960
        %v962 = vmul.f32 %v917, 1.442695
        %v963 = vpow.pop %v962
        %v964 = vmul.f32 %v918, 1.442695
        %v965 = vpow.pop %v964
        %v966 = vmul.f32 %v919, 1.442695
        %v967 = vpow.pop %v966
        %v968 = vmul.f32 %v920, 1.442695
        %v969 = vpow.pop %v968
        %v970 = vmul.f32 %v921, 1.442695
        %v971 = vpow.pop %v970
        %v972 = vmul.f32 %v922, 1.442695
        %v973 = vpow.pop %v972
        %v974 = vmul.f32 %v923, 1.442695
        %v975 = vpow.pop %v974
        %v976 = vmul.f32 %v924, 1.442695
        %v977 = vpow.pop %v976
        %v978 = vmul.f32 %v925, 1.442695
        %v979 = vpow.pop %v978
        %v980 = vmul.f32 %v926, 1.442695
        %v981 = vpow.pop %v980
        %v982 = vmul.f32 %v927, 1.442695
        %v983 = vpow.pop %v982
        %v984 = vmul.f32 %v928, 1.442695
        %v985 = vpow.pop %v984
        %v986 = vmul.f32 %v929, 1.442695
        %v987 = vpow.pop %v986
        %v988 = vmul.f32 %v930, 1.442695
        %v989 = vpow.pop %v988
        %v990 = vmul.f32 %v931, 1.442695
        %v991 = vpow.pop %v990
        %v992 = vmul.f32 %v932, 1.442695
        %v993 = vpow.pop %v992
        %v994 = vmul.f32 %v933, 1.442695
        %v995 = vpow.pop %v994
        %v996 = vmul.f32 %v934, 1.442695
        %v997 = vpow.pop %v996
        %v998 = vmul.f32 %v935, 1.442695
        %v999 = vpow.pop %v998
        %v1000 = vadd.f32 %v937, 1.0
        %v1001 = vadd.f32 %v939, 1.0
        %v1002 = vadd.f32 %v941, 1.0
        %v1003 = vadd.f32 %v943, 1.0
        %v1004 = vadd.f32 %v945, 1.0
        %v1005 = vadd.f32 %v947, 1.0
        %v1006 = vadd.f32 %v949, 1.0
        %v1007 = vadd.f32 %v951, 1.0
        %v1008 = vadd.f32 %v953, 1.0
        %v1009 = vadd.f32 %v955, 1.0
        %v1010 = vadd.f32 %v957, 1.0
        %v1011 = vadd.f32 %v959, 1.0
        %v1012 = vadd.f32 %v961, 1.0
        %v1013 = vadd.f32 %v963, 1.0
        %v1014 = vadd.f32 %v965, 1.0
        %v1015 = vadd.f32 %v967, 1.0
        %v1016 = vadd.f32 %v969, 1.0
        %v1017 = vadd.f32 %v971, 1.0
        %v1018 = vadd.f32 %v973, 1.0
        %v1019 = vadd.f32 %v975, 1.0
        %v1020 = vadd.f32 %v977, 1.0
        %v1021 = vadd.f32 %v979, 1.0
        %v1022 = vadd.f32 %v981, 1.0
        %v1023 = vadd.f32 %v983, 1.0
        %v1024 = vadd.f32 %v985, 1.0
        %v1025 = vadd.f32 %v987, 1.0
        %v1026 = vadd.f32 %v989, 1.0
        %v1027 = vadd.f32 %v991, 1.0
        %v1028 = vadd.f32 %v993, 1.0
        %v1029 = vadd.f32 %v995, 1.0
        %v1030 = vadd.f32 %v997, 1.0
        %v1031 = vadd.f32 %v999, 1.0
        %v1032 = vrcp.pop %v1000
        %v1033 = vmul.f32 1.0, %v1032
        %v1034 = vrcp.pop %v1001
        %v1035 = vmul.f32 1.0, %v1034
        %v1036 = vrcp.pop %v1002
        %v1037 = vmul.f32 1.0, %v1036
        %v1038 = vrcp.pop %v1003
        %v1039 = vmul.f32 1.0, %v1038
        %v1040 = vrcp.pop %v1004
        %v1041 = vmul.f32 1.0, %v1040
        %v1042 = vrcp.pop %v1005
        %v1043 = vmul.f32 1.0, %v1042
        %v1044 = vrcp.pop %v1006
        %v1045 = vmul.f32 1.0, %v1044
        %v1046 = vrcp.pop %v1007
        %v1047 = vmul.f32 1.0, %v1046
        %v1048 = vrcp.pop %v1008
        %v1049 = vmul.f32 1.0, %v1048
        %v1050 = vrcp.pop %v1009
        %v1051 = vmul.f32 1.0, %v1050
        %v1052 = vrcp.pop %v1010
        %v1053 = vmul.f32 1.0, %v1052
        %v1054 = vrcp.pop %v1011
        %v1055 = vmul.f32 1.0, %v1054
        %v1056 = vrcp.pop %v1012
        %v1057 = vmul.f32 1.0, %v1056
        %v1058 = vrcp.pop %v1013
        %v1059 = vmul.f32 1.0, %v1058
        %v1060 = vrcp.pop %v1014
        %v1061 = vmul.f32 1.0, %v1060
        %v1062 = vrcp.pop %v1015
        %v1063 = vmul.f32 1.0, %v1062
        %v1064 = vrcp.pop %v1016
        %v1065 = vmul.f32 1.0, %v1064
        %v1066 = vrcp.pop %v1017
        %v1067 = vmul.f32 1.0, %v1066
        %v1068 = vrcp.pop %v1018
        %v1069 = vmul.f32 1.0, %v1068
        %v1070 = vrcp.pop %v1019
        %v1071 = vmul.f32 1.0, %v1070
        %v1072 = vrcp.pop %v1020
        %v1073 = vmul.f32 1.0, %v1072
        %v1074 = vrcp.pop %v1021
        %v1075 = vmul.f32 1.0, %v1074
        %v1076 = vrcp.pop %v1022
        %v1077 = vmul.f32 1.0, %v1076
        %v1078 = vrcp.pop %v1023
        %v1079 = vmul.f32 1.0, %v1078
        %v1080 = vrcp.pop %v1024
        %v1081 = vmul.f32 1.0, %v1080
        %v1082 = vrcp.pop %v1025
        %v1083 = vmul.f32 1.0, %v1082
        %v1084 = vrcp.pop %v1026
        %v1085 = vmul.f32 1.0, %v1084
        %v1086 = vrcp.pop %v1027
        %v1087 = vmul.f32 1.0, %v1086
        %v1088 = vrcp.pop %v1028
        %v1089 = vmul.f32 1.0, %v1088
        %v1090 = vrcp.pop %v1029
        %v1091 = vmul.f32 1.0, %v1090
        %v1092 = vrcp.pop %v1030
        %v1093 = vmul.f32 1.0, %v1092
        %v1094 = vrcp.pop %v1031
        %v1095 = vmul.f32 1.0, %v1094
        %v1096 = vmul.f32 %v388, %v1033
        %v1097 = vmul.f32 %v389, %v1035
        %v1098 = vmul.f32 %v390, %v1037
        %v1099 = vmul.f32 %v391, %v1039
        %v1100 = vmul.f32 %v392, %v1041
        %v1101 = vmul.f32 %v393, %v1043
        %v1102 = vmul.f32 %v394, %v1045
        %v1103 = vmul.f32 %v395, %v1047
        %v1104 = vmul.f32 %v396, %v1049
        %v1105 = vmul.f32 %v397, %v1051
        %v1106 = vmul.f32 %v398, %v1053
        %v1107 = vmul.f32 %v399, %v1055
        %v1108 = vmul.f32 %v400, %v1057
        %v1109 = vmul.f32 %v401, %v1059
        %v1110 = vmul.f32 %v402, %v1061
        %v1111 = vmul.f32 %v403, %v1063
        %v1112 = vmul.f32 %v404, %v1065
        %v1113 = vmul.f32 %v405, %v1067
        %v1114 = vmul.f32 %v406, %v1069
        %v1115 = vmul.f32 %v407, %v1071
        %v1116 = vmul.f32 %v408, %v1073
        %v1117 = vmul.f32 %v409, %v1075
        %v1118 = vmul.f32 %v410, %v1077
        %v1119 = vmul.f32 %v411, %v1079
        %v1120 = vmul.f32 %v412, %v1081
        %v1121 = vmul.f32 %v413, %v1083
        %v1122 = vmul.f32 %v414, %v1085
        %v1123 = vmul.f32 %v415, %v1087
        %v1124 = vmul.f32 %v416, %v1089
        %v1125 = vmul.f32 %v417, %v1091
        %v1126 = vmul.f32 %v418, %v1093
        %v1127 = vmul.f32 %v419, %v1095
        %v1128 = vld [vmem:[%s7] sm:$0xff]
        %v1129 = vld [vmem:[%s7 + $0x8] sm:$0xff]
        %v1130 = vld [vmem:[%s7 + $0x10] sm:$0xff]
        %v1131 = vld [vmem:[%s7 + $0x18] sm:$0xff]
        %v1132 = vld [vmem:[%s7 + $0x20] sm:$0xff]
        %v1133 = vld [vmem:[%s7 + $0x28] sm:$0xff]
        %v1134 = vld [vmem:[%s7 + $0x30] sm:$0xff]
        %v1135 = vld [vmem:[%s7 + $0x38] sm:$0xff]
        %1137 = vset.pattern.permute.xlu0 0
        %1138 = vperm.xlu0 %1137, %v1128
        %v1139 = vpop.permute.xlu0 %1138
        %1142 = vset.pattern.permute.xlu0 0
        %1143 = vperm.xlu0 %1142, %v1129
        %v1144 = vpop.permute.xlu0 %1143
        %1147 = vset.pattern.permute.xlu0 0
        %1148 = vperm.xlu0 %1147, %v1130
        %v1149 = vpop.permute.xlu0 %1148
        %1152 = vset.pattern.permute.xlu0 0
        %1153 = vperm.xlu0 %1152, %v1131
        %v1154 = vpop.permute.xlu0 %1153
        %1157 = vset.pattern.permute.xlu0 0
        %1158 = vperm.xlu0 %1157, %v1132
        %v1159 = vpop.permute.xlu0 %1158
        %1162 = vset.pattern.permute.xlu0 0
        %1163 = vperm.xlu0 %1162, %v1133
        %v1164 = vpop.permute.xlu0 %1163
        %1167 = vset.pattern.permute.xlu0 0
        %1168 = vperm.xlu0 %1167, %v1134
        %v1169 = vpop.permute.xlu0 %1168
        %1172 = vset.pattern.permute.xlu0 0
        %1173 = vperm.xlu0 %1172, %v1135
        %v1174 = vpop.permute.xlu0 %1173
        %v1176 = vmul.f32 %v858, %v1139
        %v1177 = vmul.f32 %v860, %v1139
        %v1178 = vmul.f32 %v864, %v1144
        %v1179 = vmul.f32 %v866, %v1144
        %v1180 = vmul.f32 %v870, %v1149
        %v1181 = vmul.f32 %v872, %v1149
        %v1182 = vmul.f32 %v876, %v1154
        %v1183 = vmul.f32 %v878, %v1154
        %v1184 = vmul.f32 %v882, %v1159
        %v1185 = vmul.f32 %v884, %v1159
        %v1186 = vmul.f32 %v888, %v1164
        %v1187 = vmul.f32 %v890, %v1164
        %v1188 = vmul.f32 %v894, %v1169
        %v1189 = vmul.f32 %v896, %v1169
        %v1190 = vmul.f32 %v900, %v1174
        %v1191 = vmul.f32 %v902, %v1174
        %1192 = vset.pattern.permute.xlu0 1
        %1193 = vperm.xlu0 %1192, %v1128
        %v1194 = vpop.permute.xlu0 %1193
        %1196 = vset.pattern.permute.xlu0 1
        %1197 = vperm.xlu0 %1196, %v1129
        %v1198 = vpop.permute.xlu0 %1197
        %1200 = vset.pattern.permute.xlu0 1
        %1201 = vperm.xlu0 %1200, %v1130
        %v1202 = vpop.permute.xlu0 %1201
        %1204 = vset.pattern.permute.xlu0 1
        %1205 = vperm.xlu0 %1204, %v1131
        %v1206 = vpop.permute.xlu0 %1205
        %1208 = vset.pattern.permute.xlu0 1
        %1209 = vperm.xlu0 %1208, %v1132
        %v1210 = vpop.permute.xlu0 %1209
        %1212 = vset.pattern.permute.xlu0 1
        %1213 = vperm.xlu0 %1212, %v1133
        %v1214 = vpop.permute.xlu0 %1213
        %1216 = vset.pattern.permute.xlu0 1
        %1217 = vperm.xlu0 %1216, %v1134
        %v1218 = vpop.permute.xlu0 %1217
        %1220 = vset.pattern.permute.xlu0 1
        %1221 = vperm.xlu0 %1220, %v1135
        %v1222 = vpop.permute.xlu0 %1221
        %v1224 = vadd.f32 %v1176, %v1194
        %v1225 = vadd.f32 %v1177, %v1194
        %v1226 = vadd.f32 %v1178, %v1198
        %v1227 = vadd.f32 %v1179, %v1198
        %v1228 = vadd.f32 %v1180, %v1202
        %v1229 = vadd.f32 %v1181, %v1202
        %v1230 = vadd.f32 %v1182, %v1206
        %v1231 = vadd.f32 %v1183, %v1206
        %v1232 = vadd.f32 %v1184, %v1210
        %v1233 = vadd.f32 %v1185, %v1210
        %v1234 = vadd.f32 %v1186, %v1214
        %v1235 = vadd.f32 %v1187, %v1214
        %v1236 = vadd.f32 %v1188, %v1218
        %v1237 = vadd.f32 %v1189, %v1218
        %v1238 = vadd.f32 %v1190, %v1222
        %v1239 = vadd.f32 %v1191, %v1222
        %v1240 = vxor.u32 %v1224, 2147483648
        %v1241 = vxor.u32 %v1225, 2147483648
        %v1242 = vxor.u32 %v1226, 2147483648
        %v1243 = vxor.u32 %v1227, 2147483648
        %v1244 = vxor.u32 %v1228, 2147483648
        %v1245 = vxor.u32 %v1229, 2147483648
        %v1246 = vxor.u32 %v1230, 2147483648
        %v1247 = vxor.u32 %v1231, 2147483648
        %v1248 = vxor.u32 %v1232, 2147483648
        %v1249 = vxor.u32 %v1233, 2147483648
        %v1250 = vxor.u32 %v1234, 2147483648
        %v1251 = vxor.u32 %v1235, 2147483648
        %v1252 = vxor.u32 %v1236, 2147483648
        %v1253 = vxor.u32 %v1237, 2147483648
        %v1254 = vxor.u32 %v1238, 2147483648
        %v1255 = vxor.u32 %v1239, 2147483648
        %v1256 = vmul.f32 %v1240, 1.442695
        %v1257 = vpow.pop %v1256
        %v1258 = vmul.f32 %v1241, 1.442695
        %v1259 = vpow.pop %v1258
        %v1260 = vmul.f32 %v1242, 1.442695
        %v1261 = vpow.pop %v1260
        %v1262 = vmul.f32 %v1243, 1.442695
        %v1263 = vpow.pop %v1262
        %v1264 = vmul.f32 %v1244, 1.442695
        %v1265 = vpow.pop %v1264
        %v1266 = vmul.f32 %v1245, 1.442695
        %v1267 = vpow.pop %v1266
        %v1268 = vmul.f32 %v1246, 1.442695
        %v1269 = vpow.pop %v1268
        %v1270 = vmul.f32 %v1247, 1.442695
        %v1271 = vpow.pop %v1270
        %v1272 = vmul.f32 %v1248, 1.442695
        %v1273 = vpow.pop %v1272
        %v1274 = vmul.f32 %v1249, 1.442695
        %v1275 = vpow.pop %v1274
        %v1276 = vmul.f32 %v1250, 1.442695
        %v1277 = vpow.pop %v1276
        %v1278 = vmul.f32 %v1251, 1.442695
        %v1279 = vpow.pop %v1278
        %v1280 = vmul.f32 %v1252, 1.442695
        %v1281 = vpow.pop %v1280
        %v1282 = vmul.f32 %v1253, 1.442695
        %v1283 = vpow.pop %v1282
        %v1284 = vmul.f32 %v1254, 1.442695
        %v1285 = vpow.pop %v1284
        %v1286 = vmul.f32 %v1255, 1.442695
        %v1287 = vpow.pop %v1286
        %v1288 = vadd.f32 %v1257, 1.0
        %v1289 = vadd.f32 %v1259, 1.0
        %v1290 = vadd.f32 %v1261, 1.0
        %v1291 = vadd.f32 %v1263, 1.0
        %v1292 = vadd.f32 %v1265, 1.0
        %v1293 = vadd.f32 %v1267, 1.0
        %v1294 = vadd.f32 %v1269, 1.0
        %v1295 = vadd.f32 %v1271, 1.0
        %v1296 = vadd.f32 %v1273, 1.0
        %v1297 = vadd.f32 %v1275, 1.0
        %v1298 = vadd.f32 %v1277, 1.0
        %v1299 = vadd.f32 %v1279, 1.0
        %v1300 = vadd.f32 %v1281, 1.0
        %v1301 = vadd.f32 %v1283, 1.0
        %v1302 = vadd.f32 %v1285, 1.0
        %v1303 = vadd.f32 %v1287, 1.0
        %v1304 = vrcp.pop %v1288
        %v1305 = vmul.f32 1.0, %v1304
        %v1306 = vrcp.pop %v1289
        %v1307 = vmul.f32 1.0, %v1306
        %v1308 = vrcp.pop %v1290
        %v1309 = vmul.f32 1.0, %v1308
        %v1310 = vrcp.pop %v1291
        %v1311 = vmul.f32 1.0, %v1310
        %v1312 = vrcp.pop %v1292
        %v1313 = vmul.f32 1.0, %v1312
        %v1314 = vrcp.pop %v1293
        %v1315 = vmul.f32 1.0, %v1314
        %v1316 = vrcp.pop %v1294
        %v1317 = vmul.f32 1.0, %v1316
        %v1318 = vrcp.pop %v1295
        %v1319 = vmul.f32 1.0, %v1318
        %v1320 = vrcp.pop %v1296
        %v1321 = vmul.f32 1.0, %v1320
        %v1322 = vrcp.pop %v1297
        %v1323 = vmul.f32 1.0, %v1322
        %v1324 = vrcp.pop %v1298
        %v1325 = vmul.f32 1.0, %v1324
        %v1326 = vrcp.pop %v1299
        %v1327 = vmul.f32 1.0, %v1326
        %v1328 = vrcp.pop %v1300
        %v1329 = vmul.f32 1.0, %v1328
        %v1330 = vrcp.pop %v1301
        %v1331 = vmul.f32 1.0, %v1330
        %v1332 = vrcp.pop %v1302
        %v1333 = vmul.f32 1.0, %v1332
        %v1334 = vrcp.pop %v1303
        %v1335 = vmul.f32 1.0, %v1334
        %v1336 = vmul.f32 %v1224, %v1305
        %v1337 = vmul.f32 %v1225, %v1307
        %v1338 = vmul.f32 %v1226, %v1309
        %v1339 = vmul.f32 %v1227, %v1311
        %v1340 = vmul.f32 %v1228, %v1313
        %v1341 = vmul.f32 %v1229, %v1315
        %v1342 = vmul.f32 %v1230, %v1317
        %v1343 = vmul.f32 %v1231, %v1319
        %v1344 = vmul.f32 %v1232, %v1321
        %v1345 = vmul.f32 %v1233, %v1323
        %v1346 = vmul.f32 %v1234, %v1325
        %v1347 = vmul.f32 %v1235, %v1327
        %v1348 = vmul.f32 %v1236, %v1329
        %v1349 = vmul.f32 %v1237, %v1331
        %v1350 = vmul.f32 %v1238, %v1333
        %v1351 = vmul.f32 %v1239, %v1335
        %v1352 = vld [vmem:[%s4] sm:$0xff]
        %v1353 = vld [vmem:[%s4 + $0x8] sm:$0xff]
        %v1354 = vld [vmem:[%s4 + $0x10] sm:$0xff]
        %v1355 = vld [vmem:[%s4 + $0x18] sm:$0xff]
        %v1356 = vld [vmem:[%s4 + $0x20] sm:$0xff]
        %v1357 = vld [vmem:[%s4 + $0x28] sm:$0xff]
        %v1358 = vld [vmem:[%s4 + $0x30] sm:$0xff]
        %v1359 = vld [vmem:[%s4 + $0x38] sm:$0xff]
        %v1360 = vld [vmem:[%s5] sm:$0xff]
        %v1361 = vld [vmem:[%s5 + $0x8] sm:$0xff]
        %v1362 = vld [vmem:[%s5 + $0x10] sm:$0xff]
        %v1363 = vld [vmem:[%s5 + $0x18] sm:$0xff]
        %v1364 = vld [vmem:[%s5 + $0x20] sm:$0xff]
        %v1365 = vld [vmem:[%s5 + $0x28] sm:$0xff]
        %v1366 = vld [vmem:[%s5 + $0x30] sm:$0xff]
        %v1367 = vld [vmem:[%s5 + $0x38] sm:$0xff]
        %v1369 = vsel %vm436, %v1360, 0
        %v1372 = vsel %vm436, %v1361, 0
        %v1375 = vsel %vm436, %v1362, 0
        %v1378 = vsel %vm436, %v1363, 0
        %v1381 = vsel %vm436, %v1364, 0
        %v1384 = vsel %vm436, %v1365, 0
        %v1387 = vsel %vm436, %v1366, 0
        %v1390 = vsel %vm436, %v1367, 0
        %v1393 = vsel %vm436, %v1096, 0
        %v1396 = vsel %vm436, %v1097, 0
        %v1399 = vsel %vm436, %v1098, 0
        %v1402 = vsel %vm436, %v1099, 0
        %v1405 = vsel %vm436, %v1100, 0
        %v1408 = vsel %vm436, %v1101, 0
        %v1411 = vsel %vm436, %v1102, 0
        %v1414 = vsel %vm436, %v1103, 0
        %v1417 = vsel %vm436, %v1104, 0
        %v1420 = vsel %vm436, %v1105, 0
        %v1423 = vsel %vm436, %v1106, 0
        %v1426 = vsel %vm436, %v1107, 0
        %v1429 = vsel %vm436, %v1108, 0
        %v1432 = vsel %vm436, %v1109, 0
        %v1435 = vsel %vm436, %v1110, 0
        %v1438 = vsel %vm436, %v1111, 0
        %v1441 = vsel %vm436, %v1112, 0
        %v1444 = vsel %vm436, %v1113, 0
        %v1447 = vsel %vm436, %v1114, 0
        %v1450 = vsel %vm436, %v1115, 0
        %v1453 = vsel %vm436, %v1116, 0
        %v1456 = vsel %vm436, %v1117, 0
        %v1459 = vsel %vm436, %v1118, 0
        %v1462 = vsel %vm436, %v1119, 0
        %v1465 = vsel %vm436, %v1120, 0
        %v1468 = vsel %vm436, %v1121, 0
        %v1471 = vsel %vm436, %v1122, 0
        %v1474 = vsel %vm436, %v1123, 0
        %v1477 = vsel %vm436, %v1124, 0
        %v1480 = vsel %vm436, %v1125, 0
        %v1483 = vsel %vm436, %v1126, 0
        %v1486 = vsel %vm436, %v1127, 0
        %1488 = vmatprep.subr.mxu0 0.0
        %1489 = vmatpush1.xpose.msra.mxu0 %v1393
        %1490 = vmatprep.subr.mxu0 0.0
        %1491 = vmatpush1.xpose.msra.mxu0 %v1396
        %1492 = vmatprep.subr.mxu0 0.0
        %1493 = vmatpush1.xpose.msra.mxu0 %v1399
        %1494 = vmatprep.subr.mxu0 0.0
        %1495 = vmatpush1.xpose.msra.mxu0 %v1402
        %1496 = vmatprep.subr.mxu0 0.0
        %1497 = vmatpush1.xpose.msra.mxu0 %v1405
        %1498 = vmatprep.subr.mxu0 0.0
        %1499 = vmatpush1.xpose.msra.mxu0 %v1408
        %1500 = vmatprep.subr.mxu0 0.0
        %1501 = vmatpush1.xpose.msra.mxu0 %v1411
        %1502 = vmatprep.subr.mxu0 0.0
        %1503 = vmatpush1.xpose.msra.mxu0 %v1414
        %1504 = vmatprep.subr.mxu0 0.0
        %1505 = vmatpush1.xpose.msra.mxu0 %v1417
        %1506 = vmatprep.subr.mxu0 0.0
        %1507 = vmatpush1.xpose.msra.mxu0 %v1420
        %1508 = vmatprep.subr.mxu0 0.0
        %1509 = vmatpush1.xpose.msra.mxu0 %v1423
        %1510 = vmatprep.subr.mxu0 0.0
        %1511 = vmatpush1.xpose.msra.mxu0 %v1426
        %1512 = vmatprep.subr.mxu0 0.0
        %1513 = vmatpush1.xpose.msra.mxu0 %v1429
        %1514 = vmatprep.subr.mxu0 0.0
        %1515 = vmatpush1.xpose.msra.mxu0 %v1432
        %1516 = vmatprep.subr.mxu0 0.0
        %1517 = vmatpush1.xpose.msra.mxu0 %v1435
        %1518 = vmatprep.subr.mxu0 0.0
        %1519 = vmatpush1.xpose.msra.mxu0 %v1438
        %1520 = vmatprep.subr.mxu0 0.0
        %1521 = vmatpush1.xpose.msra.mxu0 %v1441
        %1522 = vmatprep.subr.mxu0 0.0
        %1523 = vmatpush1.xpose.msra.mxu0 %v1444
        %1524 = vmatprep.subr.mxu0 0.0
        %1525 = vmatpush1.xpose.msra.mxu0 %v1447
        %1526 = vmatprep.subr.mxu0 0.0
        %1527 = vmatpush1.xpose.msra.mxu0 %v1450
        %1528 = vmatprep.subr.mxu0 0.0
        %1529 = vmatpush1.xpose.msra.mxu0 %v1453
        %1530 = vmatprep.subr.mxu0 0.0
        %1531 = vmatpush1.xpose.msra.mxu0 %v1456
        %1532 = vmatprep.subr.mxu0 0.0
        %1533 = vmatpush1.xpose.msra.mxu0 %v1459
        %1534 = vmatprep.subr.mxu0 0.0
        %1535 = vmatpush1.xpose.msra.mxu0 %v1462
        %1536 = vmatprep.subr.mxu0 0.0
        %1537 = vmatpush1.xpose.msra.mxu0 %v1465
        %1538 = vmatprep.subr.mxu0 0.0
        %1539 = vmatpush1.xpose.msra.mxu0 %v1468
        %1540 = vmatprep.subr.mxu0 0.0
        %1541 = vmatpush1.xpose.msra.mxu0 %v1471
        %1542 = vmatprep.subr.mxu0 0.0
        %1543 = vmatpush1.xpose.msra.mxu0 %v1474
        %1544 = vmatprep.subr.mxu0 0.0
        %1545 = vmatpush1.xpose.msra.mxu0 %v1477
        %1546 = vmatprep.subr.mxu0 0.0
        %1547 = vmatpush1.xpose.msra.mxu0 %v1480
        %1548 = vmatprep.subr.mxu0 0.0
        %1549 = vmatpush1.xpose.msra.mxu0 %v1483
        %1550 = vmatprep.subr.mxu0 0.0
        %1551 = vmatpush1.xpose.msra.mxu0 %v1486
        %1552 = vmatprep.mubr.f32.mxu0 0.0
        %1553 = vmatmul.mubr.f32.gmra.mrb[0].mxu0 %v1369
        %v1554 = vpop.f32.mrb[0].mxu0
        %v1555 = vadd.f32 0.0, %v1554
        %v1556 = vpop.f32.mrb[0].mxu0
        %v1557 = vadd.f32 0.0, %v1556
        %1558 = vmatprep.mubr.f32.mxu0 0.0
        %1559 = vmatmul.mubr.f32.gmra.mrb[0].mxu0 %v1372
        %v1560 = vpop.f32.mrb[0].mxu0
        %v1561 = vadd.f32 0.0, %v1560
        %v1562 = vpop.f32.mrb[0].mxu0
        %v1563 = vadd.f32 0.0, %v1562
        %1564 = vmatprep.mubr.f32.mxu0 0.0
        %1565 = vmatmul.mubr.f32.gmra.mrb[0].mxu0 %v1375
        %v1566 = vpop.f32.mrb[0].mxu0
        %v1567 = vadd.f32 0.0, %v1566
        %v1568 = vpop.f32.mrb[0].mxu0
        %v1569 = vadd.f32 0.0, %v1568
        %1570 = vmatprep.mubr.f32.mxu0 0.0
        %1571 = vmatmul.mubr.f32.gmra.mrb[0].mxu0 %v1378
        %v1572 = vpop.f32.mrb[0].mxu0
        %v1573 = vadd.f32 0.0, %v1572
        %v1574 = vpop.f32.mrb[0].mxu0
        %v1575 = vadd.f32 0.0, %v1574
        %1576 = vmatprep.mubr.f32.mxu0 0.0
        %1577 = vmatmul.mubr.f32.gmra.mrb[0].mxu0 %v1381
        %v1578 = vpop.f32.mrb[0].mxu0
        %v1579 = vadd.f32 0.0, %v1578
        %v1580 = vpop.f32.mrb[0].mxu0
        %v1581 = vadd.f32 0.0, %v1580
        %1582 = vmatprep.mubr.f32.mxu0 0.0
        %1583 = vmatmul.mubr.f32.gmra.mrb[0].mxu0 %v1384
        %v1584 = vpop.f32.mrb[0].mxu0
        %v1585 = vadd.f32 0.0, %v1584
        %v1586 = vpop.f32.mrb[0].mxu0
        %v1587 = vadd.f32 0.0, %v1586
        %1588 = vmatprep.mubr.f32.mxu0 0.0
        %1589 = vmatmul.mubr.f32.gmra.mrb[0].mxu0 %v1387
        %v1590 = vpop.f32.mrb[0].mxu0
        %v1591 = vadd.f32 0.0, %v1590
        %v1592 = vpop.f32.mrb[0].mxu0
        %v1593 = vadd.f32 0.0, %v1592
        %1594 = vmatprep.mubr.f32.mxu0 0.0
        %1595 = vmatmul.mubr.f32.gmra.mrb[0].mxu0 %v1390
        %v1596 = vpop.f32.mrb[0].mxu0
        %v1597 = vadd.f32 0.0, %v1596
        %v1598 = vpop.f32.mrb[0].mxu0
        %v1599 = vadd.f32 0.0, %v1598
        %1600 = vdwg.mxu0
        %vm1601 = vcmask 523264
        %v1603 = vsel %vm1601, %v1352, 0
        %v1606 = vsel %vm1601, %v1353, 0
        %v1609 = vsel %vm1601, %v1354, 0
        %v1612 = vsel %vm1601, %v1355, 0
        %v1615 = vsel %vm1601, %v1356, 0
        %v1618 = vsel %vm1601, %v1357, 0
        %v1621 = vsel %vm1601, %v1358, 0
        %v1624 = vsel %vm1601, %v1359, 0
        %1626 = vmatprep.subr.mxu0 %v1337
        %1627 = vmatpush1.msra.mxu0 %v1336
        %1628 = vmatprep.subr.mxu0 %v1339
        %1629 = vmatpush1.msra.mxu0 %v1338
        %1630 = vmatprep.subr.mxu0 %v1341
        %1631 = vmatpush1.msra.mxu0 %v1340
        %1632 = vmatprep.subr.mxu0 %v1343
        %1633 = vmatpush1.msra.mxu0 %v1342
        %1634 = vmatprep.subr.mxu0 %v1345
        %1635 = vmatpush1.msra.mxu0 %v1344
        %1636 = vmatprep.subr.mxu0 %v1347
        %1637 = vmatpush1.msra.mxu0 %v1346
        %1638 = vmatprep.subr.mxu0 %v1349
        %1639 = vmatpush1.msra.mxu0 %v1348
        %1640 = vmatprep.subr.mxu0 %v1351
        %1641 = vmatpush1.msra.mxu0 %v1350
        %1642 = vmatprep.subr.mxu0 0.0
        %1643 = vmatpush1.msra.mxu0 0.0
        %1644 = vmatprep.subr.mxu0 0.0
        %1645 = vmatpush1.msra.mxu0 0.0
        %1646 = vmatprep.subr.mxu0 0.0
        %1647 = vmatpush1.msra.mxu0 0.0
        %1648 = vmatprep.subr.mxu0 0.0
        %1649 = vmatpush1.msra.mxu0 0.0
        %1650 = vmatprep.subr.mxu0 0.0
        %1651 = vmatpush1.msra.mxu0 0.0
        %1652 = vmatprep.subr.mxu0 0.0
        %1653 = vmatpush1.msra.mxu0 0.0
        %1654 = vmatprep.subr.mxu0 0.0
        %1655 = vmatpush1.msra.mxu0 0.0
        %1656 = vmatprep.subr.mxu0 0.0
        %1657 = vmatpush1.msra.mxu0 0.0
        %1658 = vmatprep.subr.mxu0 0.0
        %1659 = vmatpush1.msra.mxu0 0.0
        %1660 = vmatprep.subr.mxu0 0.0
        %1661 = vmatpush1.msra.mxu0 0.0
        %1662 = vmatprep.subr.mxu0 0.0
        %1663 = vmatpush1.msra.mxu0 0.0
        %1664 = vmatprep.subr.mxu0 0.0
        %1665 = vmatpush1.msra.mxu0 0.0
        %1666 = vmatprep.subr.mxu0 0.0
        %1667 = vmatpush1.msra.mxu0 0.0
        %1668 = vmatprep.subr.mxu0 0.0
        %1669 = vmatpush1.msra.mxu0 0.0
        %1670 = vmatprep.subr.mxu0 0.0
        %1671 = vmatpush1.msra.mxu0 0.0
        %1672 = vmatprep.subr.mxu0 0.0
        %1673 = vmatpush1.msra.mxu0 0.0
        %1674 = vmatprep.subr.mxu0 0.0
        %1675 = vmatpush1.msra.mxu0 0.0
        %1676 = vmatprep.subr.mxu0 0.0
        %1677 = vmatpush1.msra.mxu0 0.0
        %1678 = vmatprep.subr.mxu0 0.0
        %1679 = vmatpush1.msra.mxu0 0.0
        %1680 = vmatprep.subr.mxu0 0.0
        %1681 = vmatpush1.msra.mxu0 0.0
        %1682 = vmatprep.subr.mxu0 0.0
        %1683 = vmatpush1.msra.mxu0 0.0
        %1684 = vmatprep.subr.mxu0 0.0
        %1685 = vmatpush1.msra.mxu0 0.0
        %1686 = vmatprep.subr.mxu0 0.0
        %1687 = vmatpush1.msra.mxu0 0.0
        %1688 = vmatprep.subr.mxu0 0.0
        %1689 = vmatpush1.msra.mxu0 0.0
        %1690 = vmatprep.mubr.f32.mxu0 0.0
        %1691 = vmatmul.mubr.f32.gmra.mrb[0].mxu0 %v1603
        %v1692 = vpop.f32.mrb[0].mxu0
        %v1693 = vadd.f32 %v1555, %v1692
        %v1694 = vpop.f32.mrb[0].mxu0
        %v1695 = vadd.f32 %v1557, %v1694
        %1696 = vmatprep.mubr.f32.mxu0 0.0
        %1697 = vmatmul.mubr.f32.gmra.mrb[0].mxu0 %v1606
        %v1698 = vpop.f32.mrb[0].mxu0
        %v1699 = vadd.f32 %v1561, %v1698
        %v1700 = vpop.f32.mrb[0].mxu0
        %v1701 = vadd.f32 %v1563, %v1700
        %1702 = vmatprep.mubr.f32.mxu0 0.0
        %1703 = vmatmul.mubr.f32.gmra.mrb[0].mxu0 %v1609
        %v1704 = vpop.f32.mrb[0].mxu0
        %v1705 = vadd.f32 %v1567, %v1704
        %v1706 = vpop.f32.mrb[0].mxu0
        %v1707 = vadd.f32 %v1569, %v1706
        %1708 = vmatprep.mubr.f32.mxu0 0.0
        %1709 = vmatmul.mubr.f32.gmra.mrb[0].mxu0 %v1612
        %v1710 = vpop.f32.mrb[0].mxu0
        %v1711 = vadd.f32 %v1573, %v1710
        %v1712 = vpop.f32.mrb[0].mxu0
        %v1713 = vadd.f32 %v1575, %v1712
        %1714 = vmatprep.mubr.f32.mxu0 0.0
        %1715 = vmatmul.mubr.f32.gmra.mrb[0].mxu0 %v1615
        %v1716 = vpop.f32.mrb[0].mxu0
        %v1717 = vadd.f32 %v1579, %v1716
        %v1718 = vpop.f32.mrb[0].mxu0
        %v1719 = vadd.f32 %v1581, %v1718
        %1720 = vmatprep.mubr.f32.mxu0 0.0
        %1721 = vmatmul.mubr.f32.gmra.mrb[0].mxu0 %v1618
        %v1722 = vpop.f32.mrb[0].mxu0
        %v1723 = vadd.f32 %v1585, %v1722
        %v1724 = vpop.f32.mrb[0].mxu0
        %v1725 = vadd.f32 %v1587, %v1724
        %1726 = vmatprep.mubr.f32.mxu0 0.0
        %1727 = vmatmul.mubr.f32.gmra.mrb[0].mxu0 %v1621
        %v1728 = vpop.f32.mrb[0].mxu0
        %v1729 = vadd.f32 %v1591, %v1728
        %v1730 = vpop.f32.mrb[0].mxu0
        %v1731 = vadd.f32 %v1593, %v1730
        %1732 = vmatprep.mubr.f32.mxu0 0.0
        %1733 = vmatmul.mubr.f32.gmra.mrb[0].mxu0 %v1624
        %v1734 = vpop.f32.mrb[0].mxu0
        %v1735 = vadd.f32 %v1597, %v1734
        %v1736 = vpop.f32.mrb[0].mxu0
        %v1737 = vadd.f32 %v1599, %v1736
        %1738 = vdwg.mxu0
        %1739 = vset.pattern.permute.xlu0 2
        %1740 = vperm.xlu0 %1739, %v1128
        %v1741 = vpop.permute.xlu0 %1740
        %1743 = vset.pattern.permute.xlu0 2
        %1744 = vperm.xlu0 %1743, %v1129
        %v1745 = vpop.permute.xlu0 %1744
        %1747 = vset.pattern.permute.xlu0 2
        %1748 = vperm.xlu0 %1747, %v1130
        %v1749 = vpop.permute.xlu0 %1748
        %1751 = vset.pattern.permute.xlu0 2
        %1752 = vperm.xlu0 %1751, %v1131
        %v1753 = vpop.permute.xlu0 %1752
        %1755 = vset.pattern.permute.xlu0 2
        %1756 = vperm.xlu0 %1755, %v1132
        %v1757 = vpop.permute.xlu0 %1756
        %1759 = vset.pattern.permute.xlu0 2
        %1760 = vperm.xlu0 %1759, %v1133
        %v1761 = vpop.permute.xlu0 %1760
        %1763 = vset.pattern.permute.xlu0 2
        %1764 = vperm.xlu0 %1763, %v1134
        %v1765 = vpop.permute.xlu0 %1764
        %1767 = vset.pattern.permute.xlu0 2
        %1768 = vperm.xlu0 %1767, %v1135
        %v1769 = vpop.permute.xlu0 %1768
        %v1771 = vadd.f32 %v1693, %v1741
        %v1772 = vadd.f32 %v1695, %v1741
        %v1773 = vadd.f32 %v1699, %v1745
        %v1774 = vadd.f32 %v1701, %v1745
        %v1775 = vadd.f32 %v1705, %v1749
        %v1776 = vadd.f32 %v1707, %v1749
        %v1777 = vadd.f32 %v1711, %v1753
        %v1778 = vadd.f32 %v1713, %v1753
        %v1779 = vadd.f32 %v1717, %v1757
        %v1780 = vadd.f32 %v1719, %v1757
        %v1781 = vadd.f32 %v1723, %v1761
        %v1782 = vadd.f32 %v1725, %v1761
        %v1783 = vadd.f32 %v1729, %v1765
        %v1784 = vadd.f32 %v1731, %v1765
        %v1785 = vadd.f32 %v1735, %v1769
        %v1786 = vadd.f32 %v1737, %v1769
        %v1787 = vld [vmem:[%s6] sm:$0xff]
        %v1788 = vld [vmem:[%s6 + $0x8] sm:$0xff]
        %v1789 = vld [vmem:[%s6 + $0x10] sm:$0xff]
        %v1790 = vld [vmem:[%s6 + $0x18] sm:$0xff]
        %v1791 = vld [vmem:[%s6 + $0x20] sm:$0xff]
        %v1792 = vld [vmem:[%s6 + $0x28] sm:$0xff]
        %v1793 = vld [vmem:[%s6 + $0x30] sm:$0xff]
        %v1794 = vld [vmem:[%s6 + $0x38] sm:$0xff]
        %v1795 = vxor.u32 %v1771, 2147483648
        %v1796 = vxor.u32 %v1772, 2147483648
        %v1797 = vxor.u32 %v1773, 2147483648
        %v1798 = vxor.u32 %v1774, 2147483648
        %v1799 = vxor.u32 %v1775, 2147483648
        %v1800 = vxor.u32 %v1776, 2147483648
        %v1801 = vxor.u32 %v1777, 2147483648
        %v1802 = vxor.u32 %v1778, 2147483648
        %v1803 = vxor.u32 %v1779, 2147483648
        %v1804 = vxor.u32 %v1780, 2147483648
        %v1805 = vxor.u32 %v1781, 2147483648
        %v1806 = vxor.u32 %v1782, 2147483648
        %v1807 = vxor.u32 %v1783, 2147483648
        %v1808 = vxor.u32 %v1784, 2147483648
        %v1809 = vxor.u32 %v1785, 2147483648
        %v1810 = vxor.u32 %v1786, 2147483648
        %v1811 = vmul.f32 %v1795, 1.442695
        %v1812 = vpow.pop %v1811
        %v1813 = vmul.f32 %v1796, 1.442695
        %v1814 = vpow.pop %v1813
        %v1815 = vmul.f32 %v1797, 1.442695
        %v1816 = vpow.pop %v1815
        %v1817 = vmul.f32 %v1798, 1.442695
        %v1818 = vpow.pop %v1817
        %v1819 = vmul.f32 %v1799, 1.442695
        %v1820 = vpow.pop %v1819
        %v1821 = vmul.f32 %v1800, 1.442695
        %v1822 = vpow.pop %v1821
        %v1823 = vmul.f32 %v1801, 1.442695
        %v1824 = vpow.pop %v1823
        %v1825 = vmul.f32 %v1802, 1.442695
        %v1826 = vpow.pop %v1825
        %v1827 = vmul.f32 %v1803, 1.442695
        %v1828 = vpow.pop %v1827
        %v1829 = vmul.f32 %v1804, 1.442695
        %v1830 = vpow.pop %v1829
        %v1831 = vmul.f32 %v1805, 1.442695
        %v1832 = vpow.pop %v1831
        %v1833 = vmul.f32 %v1806, 1.442695
        %v1834 = vpow.pop %v1833
        %v1835 = vmul.f32 %v1807, 1.442695
        %v1836 = vpow.pop %v1835
        %v1837 = vmul.f32 %v1808, 1.442695
        %v1838 = vpow.pop %v1837
        %v1839 = vmul.f32 %v1809, 1.442695
        %v1840 = vpow.pop %v1839
        %v1841 = vmul.f32 %v1810, 1.442695
        %v1842 = vpow.pop %v1841
        %v1843 = vadd.f32 %v1812, 1.0
        %v1844 = vadd.f32 %v1814, 1.0
        %v1845 = vadd.f32 %v1816, 1.0
        %v1846 = vadd.f32 %v1818, 1.0
        %v1847 = vadd.f32 %v1820, 1.0
        %v1848 = vadd.f32 %v1822, 1.0
        %v1849 = vadd.f32 %v1824, 1.0
        %v1850 = vadd.f32 %v1826, 1.0
        %v1851 = vadd.f32 %v1828, 1.0
        %v1852 = vadd.f32 %v1830, 1.0
        %v1853 = vadd.f32 %v1832, 1.0
        %v1854 = vadd.f32 %v1834, 1.0
        %v1855 = vadd.f32 %v1836, 1.0
        %v1856 = vadd.f32 %v1838, 1.0
        %v1857 = vadd.f32 %v1840, 1.0
        %v1858 = vadd.f32 %v1842, 1.0
        %v1859 = vrcp.pop %v1843
        %v1860 = vmul.f32 1.0, %v1859
        %v1861 = vrcp.pop %v1844
        %v1862 = vmul.f32 1.0, %v1861
        %v1863 = vrcp.pop %v1845
        %v1864 = vmul.f32 1.0, %v1863
        %v1865 = vrcp.pop %v1846
        %v1866 = vmul.f32 1.0, %v1865
        %v1867 = vrcp.pop %v1847
        %v1868 = vmul.f32 1.0, %v1867
        %v1869 = vrcp.pop %v1848
        %v1870 = vmul.f32 1.0, %v1869
        %v1871 = vrcp.pop %v1849
        %v1872 = vmul.f32 1.0, %v1871
        %v1873 = vrcp.pop %v1850
        %v1874 = vmul.f32 1.0, %v1873
        %v1875 = vrcp.pop %v1851
        %v1876 = vmul.f32 1.0, %v1875
        %v1877 = vrcp.pop %v1852
        %v1878 = vmul.f32 1.0, %v1877
        %v1879 = vrcp.pop %v1853
        %v1880 = vmul.f32 1.0, %v1879
        %v1881 = vrcp.pop %v1854
        %v1882 = vmul.f32 1.0, %v1881
        %v1883 = vrcp.pop %v1855
        %v1884 = vmul.f32 1.0, %v1883
        %v1885 = vrcp.pop %v1856
        %v1886 = vmul.f32 1.0, %v1885
        %v1887 = vrcp.pop %v1857
        %v1888 = vmul.f32 1.0, %v1887
        %v1889 = vrcp.pop %v1858
        %v1890 = vmul.f32 1.0, %v1889
        %v1891 = vmul.f32 %v1771, %v1860
        %v1892 = vmul.f32 %v1772, %v1862
        %v1893 = vmul.f32 %v1773, %v1864
        %v1894 = vmul.f32 %v1774, %v1866
        %v1895 = vmul.f32 %v1775, %v1868
        %v1896 = vmul.f32 %v1776, %v1870
        %v1897 = vmul.f32 %v1777, %v1872
        %v1898 = vmul.f32 %v1778, %v1874
        %v1899 = vmul.f32 %v1779, %v1876
        %v1900 = vmul.f32 %v1780, %v1878
        %v1901 = vmul.f32 %v1781, %v1880
        %v1902 = vmul.f32 %v1782, %v1882
        %v1903 = vmul.f32 %v1783, %v1884
        %v1904 = vmul.f32 %v1784, %v1886
        %v1905 = vmul.f32 %v1785, %v1888
        %v1906 = vmul.f32 %v1786, %v1890
        %v1908 = vsel %vm1601, %v1787, 0
        %v1911 = vsel %vm1601, %v1788, 0
        %v1914 = vsel %vm1601, %v1789, 0
        %v1917 = vsel %vm1601, %v1790, 0
        %v1920 = vsel %vm1601, %v1791, 0
        %v1923 = vsel %vm1601, %v1792, 0
        %v1926 = vsel %vm1601, %v1793, 0
        %v1929 = vsel %vm1601, %v1794, 0
        %1931 = vmatprep.subr.mxu0 %v1892
        %1932 = vmatpush1.msra.mxu0 %v1891
        %1933 = vmatprep.subr.mxu0 %v1894
        %1934 = vmatpush1.msra.mxu0 %v1893
        %1935 = vmatprep.subr.mxu0 %v1896
        %1936 = vmatpush1.msra.mxu0 %v1895
        %1937 = vmatprep.subr.mxu0 %v1898
        %1938 = vmatpush1.msra.mxu0 %v1897
        %1939 = vmatprep.subr.mxu0 %v1900
        %1940 = vmatpush1.msra.mxu0 %v1899
        %1941 = vmatprep.subr.mxu0 %v1902
        %1942 = vmatpush1.msra.mxu0 %v1901
        %1943 = vmatprep.subr.mxu0 %v1904
        %1944 = vmatpush1.msra.mxu0 %v1903
        %1945 = vmatprep.subr.mxu0 %v1906
        %1946 = vmatpush1.msra.mxu0 %v1905
        %1947 = vmatprep.subr.mxu0 0.0
        %1948 = vmatpush1.msra.mxu0 0.0
        %1949 = vmatprep.subr.mxu0 0.0
        %1950 = vmatpush1.msra.mxu0 0.0
        %1951 = vmatprep.subr.mxu0 0.0
        %1952 = vmatpush1.msra.mxu0 0.0
        %1953 = vmatprep.subr.mxu0 0.0
        %1954 = vmatpush1.msra.mxu0 0.0
        %1955 = vmatprep.subr.mxu0 0.0
        %1956 = vmatpush1.msra.mxu0 0.0
        %1957 = vmatprep.subr.mxu0 0.0
        %1958 = vmatpush1.msra.mxu0 0.0
        %1959 = vmatprep.subr.mxu0 0.0
        %1960 = vmatpush1.msra.mxu0 0.0
        %1961 = vmatprep.subr.mxu0 0.0
        %1962 = vmatpush1.msra.mxu0 0.0
        %1963 = vmatprep.subr.mxu0 0.0
        %1964 = vmatpush1.msra.mxu0 0.0
        %1965 = vmatprep.subr.mxu0 0.0
        %1966 = vmatpush1.msra.mxu0 0.0
        %1967 = vmatprep.subr.mxu0 0.0
        %1968 = vmatpush1.msra.mxu0 0.0
        %1969 = vmatprep.subr.mxu0 0.0
        %1970 = vmatpush1.msra.mxu0 0.0
        %1971 = vmatprep.subr.mxu0 0.0
        %1972 = vmatpush1.msra.mxu0 0.0
        %1973 = vmatprep.subr.mxu0 0.0
        %1974 = vmatpush1.msra.mxu0 0.0
        %1975 = vmatprep.subr.mxu0 0.0
        %1976 = vmatpush1.msra.mxu0 0.0
        %1977 = vmatprep.subr.mxu0 0.0
        %1978 = vmatpush1.msra.mxu0 0.0
        %1979 = vmatprep.subr.mxu0 0.0
        %1980 = vmatpush1.msra.mxu0 0.0
        %1981 = vmatprep.subr.mxu0 0.0
        %1982 = vmatpush1.msra.mxu0 0.0
        %1983 = vmatprep.subr.mxu0 0.0
        %1984 = vmatpush1.msra.mxu0 0.0
        %1985 = vmatprep.subr.mxu0 0.0
        %1986 = vmatpush1.msra.mxu0 0.0
        %1987 = vmatprep.subr.mxu0 0.0
        %1988 = vmatpush1.msra.mxu0 0.0
        %1989 = vmatprep.subr.mxu0 0.0
        %1990 = vmatpush1.msra.mxu0 0.0
        %1991 = vmatprep.subr.mxu0 0.0
        %1992 = vmatpush1.msra.mxu0 0.0
        %1993 = vmatprep.subr.mxu0 0.0
        %1994 = vmatpush1.msra.mxu0 0.0
        %1995 = vmatprep.mubr.f32.mxu0 0.0
        %1996 = vmatmul.mubr.f32.gmra.mrb[0].mxu0 %v1908
        %v1997 = vpop.f32.mrb[0].mxu0
        %v1998 = vadd.f32 0.0, %v1997
        %v1999 = vpop.f32.mrb[0].mxu0
        %v2000 = vadd.f32 0.0, %v1999
        %2001 = vmatprep.mubr.f32.mxu0 0.0
        %2002 = vmatmul.mubr.f32.gmra.mrb[0].mxu0 %v1911
        %v2003 = vpop.f32.mrb[0].mxu0
        %v2004 = vadd.f32 0.0, %v2003
        %v2005 = vpop.f32.mrb[0].mxu0
        %v2006 = vadd.f32 0.0, %v2005
        %2007 = vmatprep.mubr.f32.mxu0 0.0
        %2008 = vmatmul.mubr.f32.gmra.mrb[0].mxu0 %v1914
        %v2009 = vpop.f32.mrb[0].mxu0
        %v2010 = vadd.f32 0.0, %v2009
        %v2011 = vpop.f32.mrb[0].mxu0
        %v2012 = vadd.f32 0.0, %v2011
        %2013 = vmatprep.mubr.f32.mxu0 0.0
        %2014 = vmatmul.mubr.f32.gmra.mrb[0].mxu0 %v1917
        %v2015 = vpop.f32.mrb[0].mxu0
        %v2016 = vadd.f32 0.0, %v2015
        %v2017 = vpop.f32.mrb[0].mxu0
        %v2018 = vadd.f32 0.0, %v2017
        %2019 = vmatprep.mubr.f32.mxu0 0.0
        %2020 = vmatmul.mubr.f32.gmra.mrb[0].mxu0 %v1920
        %v2021 = vpop.f32.mrb[0].mxu0
        %v2022 = vadd.f32 0.0, %v2021
        %v2023 = vpop.f32.mrb[0].mxu0
        %v2024 = vadd.f32 0.0, %v2023
        %2025 = vmatprep.mubr.f32.mxu0 0.0
        %2026 = vmatmul.mubr.f32.gmra.mrb[0].mxu0 %v1923
        %v2027 = vpop.f32.mrb[0].mxu0
        %v2028 = vadd.f32 0.0, %v2027
        %v2029 = vpop.f32.mrb[0].mxu0
        %v2030 = vadd.f32 0.0, %v2029
        %2031 = vmatprep.mubr.f32.mxu0 0.0
        %2032 = vmatmul.mubr.f32.gmra.mrb[0].mxu0 %v1926
        %v2033 = vpop.f32.mrb[0].mxu0
        %v2034 = vadd.f32 0.0, %v2033
        %v2035 = vpop.f32.mrb[0].mxu0
        %v2036 = vadd.f32 0.0, %v2035
        %2037 = vmatprep.mubr.f32.mxu0 0.0
        %2038 = vmatmul.mubr.f32.gmra.mrb[0].mxu0 %v1929
        %v2039 = vpop.f32.mrb[0].mxu0
        %v2040 = vadd.f32 0.0, %v2039
        %v2041 = vpop.f32.mrb[0].mxu0
        %v2042 = vadd.f32 0.0, %v2041
        %2043 = vdwg.mxu0
        %v2044 = vadd.f32 %v858, %v1998
        %v2045 = vadd.f32 %v860, %v2000
        %v2046 = vadd.f32 %v864, %v2004
        %v2047 = vadd.f32 %v866, %v2006
        %v2048 = vadd.f32 %v870, %v2010
        %v2049 = vadd.f32 %v872, %v2012
        %v2050 = vadd.f32 %v876, %v2016
        %v2051 = vadd.f32 %v878, %v2018
        %v2052 = vadd.f32 %v882, %v2022
        %v2053 = vadd.f32 %v884, %v2024
        %v2054 = vadd.f32 %v888, %v2028
        %v2055 = vadd.f32 %v890, %v2030
        %v2056 = vadd.f32 %v894, %v2034
        %v2057 = vadd.f32 %v896, %v2036
        %v2058 = vadd.f32 %v900, %v2040
        %v2059 = vadd.f32 %v902, %v2042
        %v2060 = vld [vmem:[%s7 + $0x40] sm:$0xff]
        %v2061 = vld [vmem:[%s7 + $0x48] sm:$0xff]
        %v2062 = vld [vmem:[%s7 + $0x50] sm:$0xff]
        %v2063 = vld [vmem:[%s7 + $0x58] sm:$0xff]
        %v2064 = vld [vmem:[%s7 + $0x60] sm:$0xff]
        %v2065 = vld [vmem:[%s7 + $0x68] sm:$0xff]
        %v2066 = vld [vmem:[%s7 + $0x70] sm:$0xff]
        %v2067 = vld [vmem:[%s7 + $0x78] sm:$0xff]
        %2069 = vset.pattern.permute.xlu0 0
        %2070 = vperm.xlu0 %2069, %v2060
        %v2071 = vpop.permute.xlu0 %2070
        %2074 = vset.pattern.permute.xlu0 0
        %2075 = vperm.xlu0 %2074, %v2061
        %v2076 = vpop.permute.xlu0 %2075
        %2079 = vset.pattern.permute.xlu0 0
        %2080 = vperm.xlu0 %2079, %v2062
        %v2081 = vpop.permute.xlu0 %2080
        %2084 = vset.pattern.permute.xlu0 0
        %2085 = vperm.xlu0 %2084, %v2063
        %v2086 = vpop.permute.xlu0 %2085
        %2089 = vset.pattern.permute.xlu0 0
        %2090 = vperm.xlu0 %2089, %v2064
        %v2091 = vpop.permute.xlu0 %2090
        %2094 = vset.pattern.permute.xlu0 0
        %2095 = vperm.xlu0 %2094, %v2065
        %v2096 = vpop.permute.xlu0 %2095
        %2099 = vset.pattern.permute.xlu0 0
        %2100 = vperm.xlu0 %2099, %v2066
        %v2101 = vpop.permute.xlu0 %2100
        %2104 = vset.pattern.permute.xlu0 0
        %2105 = vperm.xlu0 %2104, %v2067
        %v2106 = vpop.permute.xlu0 %2105
        %v2108 = vmul.f32 %v2044, %v2071
        %v2109 = vmul.f32 %v2045, %v2071
        %v2110 = vmul.f32 %v2046, %v2076
        %v2111 = vmul.f32 %v2047, %v2076
        %v2112 = vmul.f32 %v2048, %v2081
        %v2113 = vmul.f32 %v2049, %v2081
        %v2114 = vmul.f32 %v2050, %v2086
        %v2115 = vmul.f32 %v2051, %v2086
        %v2116 = vmul.f32 %v2052, %v2091
        %v2117 = vmul.f32 %v2053, %v2091
        %v2118 = vmul.f32 %v2054, %v2096
        %v2119 = vmul.f32 %v2055, %v2096
        %v2120 = vmul.f32 %v2056, %v2101
        %v2121 = vmul.f32 %v2057, %v2101
        %v2122 = vmul.f32 %v2058, %v2106
        %v2123 = vmul.f32 %v2059, %v2106
        %2124 = vset.pattern.permute.xlu0 1
        %2125 = vperm.xlu0 %2124, %v2060
        %v2126 = vpop.permute.xlu0 %2125
        %2128 = vset.pattern.permute.xlu0 1
        %2129 = vperm.xlu0 %2128, %v2061
        %v2130 = vpop.permute.xlu0 %2129
        %2132 = vset.pattern.permute.xlu0 1
        %2133 = vperm.xlu0 %2132, %v2062
        %v2134 = vpop.permute.xlu0 %2133
        %2136 = vset.pattern.permute.xlu0 1
        %2137 = vperm.xlu0 %2136, %v2063
        %v2138 = vpop.permute.xlu0 %2137
        %2140 = vset.pattern.permute.xlu0 1
        %2141 = vperm.xlu0 %2140, %v2064
        %v2142 = vpop.permute.xlu0 %2141
        %2144 = vset.pattern.permute.xlu0 1
        %2145 = vperm.xlu0 %2144, %v2065
        %v2146 = vpop.permute.xlu0 %2145
        %2148 = vset.pattern.permute.xlu0 1
        %2149 = vperm.xlu0 %2148, %v2066
        %v2150 = vpop.permute.xlu0 %2149
        %2152 = vset.pattern.permute.xlu0 1
        %2153 = vperm.xlu0 %2152, %v2067
        %v2154 = vpop.permute.xlu0 %2153
        %v2156 = vadd.f32 %v2108, %v2126
        %v2157 = vadd.f32 %v2109, %v2126
        %v2158 = vadd.f32 %v2110, %v2130
        %v2159 = vadd.f32 %v2111, %v2130
        %v2160 = vadd.f32 %v2112, %v2134
        %v2161 = vadd.f32 %v2113, %v2134
        %v2162 = vadd.f32 %v2114, %v2138
        %v2163 = vadd.f32 %v2115, %v2138
        %v2164 = vadd.f32 %v2116, %v2142
        %v2165 = vadd.f32 %v2117, %v2142
        %v2166 = vadd.f32 %v2118, %v2146
        %v2167 = vadd.f32 %v2119, %v2146
        %v2168 = vadd.f32 %v2120, %v2150
        %v2169 = vadd.f32 %v2121, %v2150
        %v2170 = vadd.f32 %v2122, %v2154
        %v2171 = vadd.f32 %v2123, %v2154
        %v2172 = vxor.u32 %v2156, 2147483648
        %v2173 = vxor.u32 %v2157, 2147483648
        %v2174 = vxor.u32 %v2158, 2147483648
        %v2175 = vxor.u32 %v2159, 2147483648
        %v2176 = vxor.u32 %v2160, 2147483648
        %v2177 = vxor.u32 %v2161, 2147483648
        %v2178 = vxor.u32 %v2162, 2147483648
        %v2179 = vxor.u32 %v2163, 2147483648
        %v2180 = vxor.u32 %v2164, 2147483648
        %v2181 = vxor.u32 %v2165, 2147483648
        %v2182 = vxor.u32 %v2166, 2147483648
        %v2183 = vxor.u32 %v2167, 2147483648
        %v2184 = vxor.u32 %v2168, 2147483648
        %v2185 = vxor.u32 %v2169, 2147483648
        %v2186 = vxor.u32 %v2170, 2147483648
        %v2187 = vxor.u32 %v2171, 2147483648
        %v2188 = vmul.f32 %v2172, 1.442695
        %v2189 = vpow.pop %v2188
        %v2190 = vmul.f32 %v2173, 1.442695
        %v2191 = vpow.pop %v2190
        %v2192 = vmul.f32 %v2174, 1.442695
        %v2193 = vpow.pop %v2192
        %v2194 = vmul.f32 %v2175, 1.442695
        %v2195 = vpow.pop %v2194
        %v2196 = vmul.f32 %v2176, 1.442695
        %v2197 = vpow.pop %v2196
        %v2198 = vmul.f32 %v2177, 1.442695
        %v2199 = vpow.pop %v2198
        %v2200 = vmul.f32 %v2178, 1.442695
        %v2201 = vpow.pop %v2200
        %v2202 = vmul.f32 %v2179, 1.442695
        %v2203 = vpow.pop %v2202
        %v2204 = vmul.f32 %v2180, 1.442695
        %v2205 = vpow.pop %v2204
        %v2206 = vmul.f32 %v2181, 1.442695
        %v2207 = vpow.pop %v2206
        %v2208 = vmul.f32 %v2182, 1.442695
        %v2209 = vpow.pop %v2208
        %v2210 = vmul.f32 %v2183, 1.442695
        %v2211 = vpow.pop %v2210
        %v2212 = vmul.f32 %v2184, 1.442695
        %v2213 = vpow.pop %v2212
        %v2214 = vmul.f32 %v2185, 1.442695
        %v2215 = vpow.pop %v2214
        %v2216 = vmul.f32 %v2186, 1.442695
        %v2217 = vpow.pop %v2216
        %v2218 = vmul.f32 %v2187, 1.442695
        %v2219 = vpow.pop %v2218
        %v2220 = vadd.f32 %v2189, 1.0
        %v2221 = vadd.f32 %v2191, 1.0
        %v2222 = vadd.f32 %v2193, 1.0
        %v2223 = vadd.f32 %v2195, 1.0
        %v2224 = vadd.f32 %v2197, 1.0
        %v2225 = vadd.f32 %v2199, 1.0
        %v2226 = vadd.f32 %v2201, 1.0
        %v2227 = vadd.f32 %v2203, 1.0
        %v2228 = vadd.f32 %v2205, 1.0
        %v2229 = vadd.f32 %v2207, 1.0
        %v2230 = vadd.f32 %v2209, 1.0
        %v2231 = vadd.f32 %v2211, 1.0
        %v2232 = vadd.f32 %v2213, 1.0
        %v2233 = vadd.f32 %v2215, 1.0
        %v2234 = vadd.f32 %v2217, 1.0
        %v2235 = vadd.f32 %v2219, 1.0
        %v2236 = vrcp.pop %v2220
        %v2237 = vmul.f32 1.0, %v2236
        %v2238 = vrcp.pop %v2221
        %v2239 = vmul.f32 1.0, %v2238
        %v2240 = vrcp.pop %v2222
        %v2241 = vmul.f32 1.0, %v2240
        %v2242 = vrcp.pop %v2223
        %v2243 = vmul.f32 1.0, %v2242
        %v2244 = vrcp.pop %v2224
        %v2245 = vmul.f32 1.0, %v2244
        %v2246 = vrcp.pop %v2225
        %v2247 = vmul.f32 1.0, %v2246
        %v2248 = vrcp.pop %v2226
        %v2249 = vmul.f32 1.0, %v2248
        %v2250 = vrcp.pop %v2227
        %v2251 = vmul.f32 1.0, %v2250
        %v2252 = vrcp.pop %v2228
        %v2253 = vmul.f32 1.0, %v2252
        %v2254 = vrcp.pop %v2229
        %v2255 = vmul.f32 1.0, %v2254
        %v2256 = vrcp.pop %v2230
        %v2257 = vmul.f32 1.0, %v2256
        %v2258 = vrcp.pop %v2231
        %v2259 = vmul.f32 1.0, %v2258
        %v2260 = vrcp.pop %v2232
        %v2261 = vmul.f32 1.0, %v2260
        %v2262 = vrcp.pop %v2233
        %v2263 = vmul.f32 1.0, %v2262
        %v2264 = vrcp.pop %v2234
        %v2265 = vmul.f32 1.0, %v2264
        %v2266 = vrcp.pop %v2235
        %v2267 = vmul.f32 1.0, %v2266
        %v2268 = vmul.f32 %v2156, %v2237
        %v2269 = vmul.f32 %v2157, %v2239
        %v2270 = vmul.f32 %v2158, %v2241
        %v2271 = vmul.f32 %v2159, %v2243
        %v2272 = vmul.f32 %v2160, %v2245
        %v2273 = vmul.f32 %v2161, %v2247
        %v2274 = vmul.f32 %v2162, %v2249
        %v2275 = vmul.f32 %v2163, %v2251
        %v2276 = vmul.f32 %v2164, %v2253
        %v2277 = vmul.f32 %v2165, %v2255
        %v2278 = vmul.f32 %v2166, %v2257
        %v2279 = vmul.f32 %v2167, %v2259
        %v2280 = vmul.f32 %v2168, %v2261
        %v2281 = vmul.f32 %v2169, %v2263
        %v2282 = vmul.f32 %v2170, %v2265
        %v2283 = vmul.f32 %v2171, %v2267
        %v2284 = vld [vmem:[%s4 + $0x40] sm:$0xff]
        %v2285 = vld [vmem:[%s4 + $0x48] sm:$0xff]
        %v2286 = vld [vmem:[%s4 + $0x50] sm:$0xff]
        %v2287 = vld [vmem:[%s4 + $0x58] sm:$0xff]
        %v2288 = vld [vmem:[%s4 + $0x60] sm:$0xff]
        %v2289 = vld [vmem:[%s4 + $0x68] sm:$0xff]
        %v2290 = vld [vmem:[%s4 + $0x70] sm:$0xff]
        %v2291 = vld [vmem:[%s4 + $0x78] sm:$0xff]
        %v2292 = vld [vmem:[%s5 + $0x40] sm:$0xff]
        %v2293 = vld [vmem:[%s5 + $0x48] sm:$0xff]
        %v2294 = vld [vmem:[%s5 + $0x50] sm:$0xff]
        %v2295 = vld [vmem:[%s5 + $0x58] sm:$0xff]
        %v2296 = vld [vmem:[%s5 + $0x60] sm:$0xff]
        %v2297 = vld [vmem:[%s5 + $0x68] sm:$0xff]
        %v2298 = vld [vmem:[%s5 + $0x70] sm:$0xff]
        %v2299 = vld [vmem:[%s5 + $0x78] sm:$0xff]
        %v2301 = vsel %vm436, %v2292, 0
        %v2304 = vsel %vm436, %v2293, 0
        %v2307 = vsel %vm436, %v2294, 0
        %v2310 = vsel %vm436, %v2295, 0
        %v2313 = vsel %vm436, %v2296, 0
        %v2316 = vsel %vm436, %v2297, 0
        %v2319 = vsel %vm436, %v2298, 0
        %v2322 = vsel %vm436, %v2299, 0
        %2324 = vmatprep.subr.mxu0 0.0
        %2325 = vmatpush1.xpose.msra.mxu0 %v1393
        %2326 = vmatprep.subr.mxu0 0.0
        %2327 = vmatpush1.xpose.msra.mxu0 %v1396
        %2328 = vmatprep.subr.mxu0 0.0
        %2329 = vmatpush1.xpose.msra.mxu0 %v1399
        %2330 = vmatprep.subr.mxu0 0.0
        %2331 = vmatpush1.xpose.msra.mxu0 %v1402
        %2332 = vmatprep.subr.mxu0 0.0
        %2333 = vmatpush1.xpose.msra.mxu0 %v1405
        %2334 = vmatprep.subr.mxu0 0.0
        %2335 = vmatpush1.xpose.msra.mxu0 %v1408
        %2336 = vmatprep.subr.mxu0 0.0
        %2337 = vmatpush1.xpose.msra.mxu0 %v1411
        %2338 = vmatprep.subr.mxu0 0.0
        %2339 = vmatpush1.xpose.msra.mxu0 %v1414
        %2340 = vmatprep.subr.mxu0 0.0
        %2341 = vmatpush1.xpose.msra.mxu0 %v1417
        %2342 = vmatprep.subr.mxu0 0.0
        %2343 = vmatpush1.xpose.msra.mxu0 %v1420
        %2344 = vmatprep.subr.mxu0 0.0
        %2345 = vmatpush1.xpose.msra.mxu0 %v1423
        %2346 = vmatprep.subr.mxu0 0.0
        %2347 = vmatpush1.xpose.msra.mxu0 %v1426
        %2348 = vmatprep.subr.mxu0 0.0
        %2349 = vmatpush1.xpose.msra.mxu0 %v1429
        %2350 = vmatprep.subr.mxu0 0.0
        %2351 = vmatpush1.xpose.msra.mxu0 %v1432
        %2352 = vmatprep.subr.mxu0 0.0
        %2353 = vmatpush1.xpose.msra.mxu0 %v1435
        %2354 = vmatprep.subr.mxu0 0.0
        %2355 = vmatpush1.xpose.msra.mxu0 %v1438
        %2356 = vmatprep.subr.mxu0 0.0
        %2357 = vmatpush1.xpose.msra.mxu0 %v1441
        %2358 = vmatprep.subr.mxu0 0.0
        %2359 = vmatpush1.xpose.msra.mxu0 %v1444
        %2360 = vmatprep.subr.mxu0 0.0
        %2361 = vmatpush1.xpose.msra.mxu0 %v1447
        %2362 = vmatprep.subr.mxu0 0.0
        %2363 = vmatpush1.xpose.msra.mxu0 %v1450
        %2364 = vmatprep.subr.mxu0 0.0
        %2365 = vmatpush1.xpose.msra.mxu0 %v1453
        %2366 = vmatprep.subr.mxu0 0.0
        %2367 = vmatpush1.xpose.msra.mxu0 %v1456
        %2368 = vmatprep.subr.mxu0 0.0
        %2369 = vmatpush1.xpose.msra.mxu0 %v1459
        %2370 = vmatprep.subr.mxu0 0.0
        %2371 = vmatpush1.xpose.msra.mxu0 %v1462
        %2372 = vmatprep.subr.mxu0 0.0
        %2373 = vmatpush1.xpose.msra.mxu0 %v1465
        %2374 = vmatprep.subr.mxu0 0.0
        %2375 = vmatpush1.xpose.msra.mxu0 %v1468
        %2376 = vmatprep.subr.mxu0 0.0
        %2377 = vmatpush1.xpose.msra.mxu0 %v1471
        %2378 = vmatprep.subr.mxu0 0.0
        %2379 = vmatpush1.xpose.msra.mxu0 %v1474
        %2380 = vmatprep.subr.mxu0 0.0
        %2381 = vmatpush1.xpose.msra.mxu0 %v1477
        %2382 = vmatprep.subr.mxu0 0.0
        %2383 = vmatpush1.xpose.msra.mxu0 %v1480
        %2384 = vmatprep.subr.mxu0 0.0
        %2385 = vmatpush1.xpose.msra.mxu0 %v1483
        %2386 = vmatprep.subr.mxu0 0.0
        %2387 = vmatpush1.xpose.msra.mxu0 %v1486
        %2388 = vmatprep.mubr.f32.mxu0 0.0
        %2389 = vmatmul.mubr.f32.gmra.mrb[0].mxu0 %v2301
        %v2390 = vpop.f32.mrb[0].mxu0
        %v2391 = vadd.f32 0.0, %v2390
        %v2392 = vpop.f32.mrb[0].mxu0
        %v2393 = vadd.f32 0.0, %v2392
        %2394 = vmatprep.mubr.f32.mxu0 0.0
        %2395 = vmatmul.mubr.f32.gmra.mrb[0].mxu0 %v2304
        %v2396 = vpop.f32.mrb[0].mxu0
        %v2397 = vadd.f32 0.0, %v2396
        %v2398 = vpop.f32.mrb[0].mxu0
        %v2399 = vadd.f32 0.0, %v2398
        %2400 = vmatprep.mubr.f32.mxu0 0.0
        %2401 = vmatmul.mubr.f32.gmra.mrb[0].mxu0 %v2307
        %v2402 = vpop.f32.mrb[0].mxu0
        %v2403 = vadd.f32 0.0, %v2402
        %v2404 = vpop.f32.mrb[0].mxu0
        %v2405 = vadd.f32 0.0, %v2404
        %2406 = vmatprep.mubr.f32.mxu0 0.0
        %2407 = vmatmul.mubr.f32.gmra.mrb[0].mxu0 %v2310
        %v2408 = vpop.f32.mrb[0].mxu0
        %v2409 = vadd.f32 0.0, %v2408
        %v2410 = vpop.f32.mrb[0].mxu0
        %v2411 = vadd.f32 0.0, %v2410
        %2412 = vmatprep.mubr.f32.mxu0 0.0
        %2413 = vmatmul.mubr.f32.gmra.mrb[0].mxu0 %v2313
        %v2414 = vpop.f32.mrb[0].mxu0
        %v2415 = vadd.f32 0.0, %v2414
        %v2416 = vpop.f32.mrb[0].mxu0
        %v2417 = vadd.f32 0.0, %v2416
        %2418 = vmatprep.mubr.f32.mxu0 0.0
        %2419 = vmatmul.mubr.f32.gmra.mrb[0].mxu0 %v2316
        %v2420 = vpop.f32.mrb[0].mxu0
        %v2421 = vadd.f32 0.0, %v2420
        %v2422 = vpop.f32.mrb[0].mxu0
        %v2423 = vadd.f32 0.0, %v2422
        %2424 = vmatprep.mubr.f32.mxu0 0.0
        %2425 = vmatmul.mubr.f32.gmra.mrb[0].mxu0 %v2319
        %v2426 = vpop.f32.mrb[0].mxu0
        %v2427 = vadd.f32 0.0, %v2426
        %v2428 = vpop.f32.mrb[0].mxu0
        %v2429 = vadd.f32 0.0, %v2428
        %2430 = vmatprep.mubr.f32.mxu0 0.0
        %2431 = vmatmul.mubr.f32.gmra.mrb[0].mxu0 %v2322
        %v2432 = vpop.f32.mrb[0].mxu0
        %v2433 = vadd.f32 0.0, %v2432
        %v2434 = vpop.f32.mrb[0].mxu0
        %v2435 = vadd.f32 0.0, %v2434
        %2436 = vdwg.mxu0
        %v2438 = vsel %vm1601, %v2284, 0
        %v2441 = vsel %vm1601, %v2285, 0
        %v2444 = vsel %vm1601, %v2286, 0
        %v2447 = vsel %vm1601, %v2287, 0
        %v2450 = vsel %vm1601, %v2288, 0
        %v2453 = vsel %vm1601, %v2289, 0
        %v2456 = vsel %vm1601, %v2290, 0
        %v2459 = vsel %vm1601, %v2291, 0
        %2461 = vmatprep.subr.mxu0 %v2269
        %2462 = vmatpush1.msra.mxu0 %v2268
        %2463 = vmatprep.subr.mxu0 %v2271
        %2464 = vmatpush1.msra.mxu0 %v2270
        %2465 = vmatprep.subr.mxu0 %v2273
        %2466 = vmatpush1.msra.mxu0 %v2272
        %2467 = vmatprep.subr.mxu0 %v2275
        %2468 = vmatpush1.msra.mxu0 %v2274
        %2469 = vmatprep.subr.mxu0 %v2277
        %2470 = vmatpush1.msra.mxu0 %v2276
        %2471 = vmatprep.subr.mxu0 %v2279
        %2472 = vmatpush1.msra.mxu0 %v2278
        %2473 = vmatprep.subr.mxu0 %v2281
        %2474 = vmatpush1.msra.mxu0 %v2280
        %2475 = vmatprep.subr.mxu0 %v2283
        %2476 = vmatpush1.msra.mxu0 %v2282
        %2477 = vmatprep.subr.mxu0 0.0
        %2478 = vmatpush1.msra.mxu0 0.0
        %2479 = vmatprep.subr.mxu0 0.0
        %2480 = vmatpush1.msra.mxu0 0.0
        %2481 = vmatprep.subr.mxu0 0.0
        %2482 = vmatpush1.msra.mxu0 0.0
        %2483 = vmatprep.subr.mxu0 0.0
        %2484 = vmatpush1.msra.mxu0 0.0
        %2485 = vmatprep.subr.mxu0 0.0
        %2486 = vmatpush1.msra.mxu0 0.0
        %2487 = vmatprep.subr.mxu0 0.0
        %2488 = vmatpush1.msra.mxu0 0.0
        %2489 = vmatprep.subr.mxu0 0.0
        %2490 = vmatpush1.msra.mxu0 0.0
        %2491 = vmatprep.subr.mxu0 0.0
        %2492 = vmatpush1.msra.mxu0 0.0
        %2493 = vmatprep.subr.mxu0 0.0
        %2494 = vmatpush1.msra.mxu0 0.0
        %2495 = vmatprep.subr.mxu0 0.0
        %2496 = vmatpush1.msra.mxu0 0.0
        %2497 = vmatprep.subr.mxu0 0.0
        %2498 = vmatpush1.msra.mxu0 0.0
        %2499 = vmatprep.subr.mxu0 0.0
        %2500 = vmatpush1.msra.mxu0 0.0
        %2501 = vmatprep.subr.mxu0 0.0
        %2502 = vmatpush1.msra.mxu0 0.0
        %2503 = vmatprep.subr.mxu0 0.0
        %2504 = vmatpush1.msra.mxu0 0.0
        %2505 = vmatprep.subr.mxu0 0.0
        %2506 = vmatpush1.msra.mxu0 0.0
        %2507 = vmatprep.subr.mxu0 0.0
        %2508 = vmatpush1.msra.mxu0 0.0
        %2509 = vmatprep.subr.mxu0 0.0
        %2510 = vmatpush1.msra.mxu0 0.0
        %2511 = vmatprep.subr.mxu0 0.0
        %2512 = vmatpush1.msra.mxu0 0.0
        %2513 = vmatprep.subr.mxu0 0.0
        %2514 = vmatpush1.msra.mxu0 0.0
        %2515 = vmatprep.subr.mxu0 0.0
        %2516 = vmatpush1.msra.mxu0 0.0
        %2517 = vmatprep.subr.mxu0 0.0
        %2518 = vmatpush1.msra.mxu0 0.0
        %2519 = vmatprep.subr.mxu0 0.0
        %2520 = vmatpush1.msra.mxu0 0.0
        %2521 = vmatprep.subr.mxu0 0.0
        %2522 = vmatpush1.msra.mxu0 0.0
        %2523 = vmatprep.subr.mxu0 0.0
        %2524 = vmatpush1.msra.mxu0 0.0
        %2525 = vmatprep.mubr.f32.mxu0 0.0
        %2526 = vmatmul.mubr.f32.gmra.mrb[0].mxu0 %v2438
        %v2527 = vpop.f32.mrb[0].mxu0
        %v2528 = vadd.f32 %v2391, %v2527
        %v2529 = vpop.f32.mrb[0].mxu0
        %v2530 = vadd.f32 %v2393, %v2529
        %2531 = vmatprep.mubr.f32.mxu0 0.0
        %2532 = vmatmul.mubr.f32.gmra.mrb[0].mxu0 %v2441
        %v2533 = vpop.f32.mrb[0].mxu0
        %v2534 = vadd.f32 %v2397, %v2533
        %v2535 = vpop.f32.mrb[0].mxu0
        %v2536 = vadd.f32 %v2399, %v2535
        %2537 = vmatprep.mubr.f32.mxu0 0.0
        %2538 = vmatmul.mubr.f32.gmra.mrb[0].mxu0 %v2444
        %v2539 = vpop.f32.mrb[0].mxu0
        %v2540 = vadd.f32 %v2403, %v2539
        %v2541 = vpop.f32.mrb[0].mxu0
        %v2542 = vadd.f32 %v2405, %v2541
        %2543 = vmatprep.mubr.f32.mxu0 0.0
        %2544 = vmatmul.mubr.f32.gmra.mrb[0].mxu0 %v2447
        %v2545 = vpop.f32.mrb[0].mxu0
        %v2546 = vadd.f32 %v2409, %v2545
        %v2547 = vpop.f32.mrb[0].mxu0
        %v2548 = vadd.f32 %v2411, %v2547
        %2549 = vmatprep.mubr.f32.mxu0 0.0
        %2550 = vmatmul.mubr.f32.gmra.mrb[0].mxu0 %v2450
        %v2551 = vpop.f32.mrb[0].mxu0
        %v2552 = vadd.f32 %v2415, %v2551
        %v2553 = vpop.f32.mrb[0].mxu0
        %v2554 = vadd.f32 %v2417, %v2553
        %2555 = vmatprep.mubr.f32.mxu0 0.0
        %2556 = vmatmul.mubr.f32.gmra.mrb[0].mxu0 %v2453
        %v2557 = vpop.f32.mrb[0].mxu0
        %v2558 = vadd.f32 %v2421, %v2557
        %v2559 = vpop.f32.mrb[0].mxu0
        %v2560 = vadd.f32 %v2423, %v2559
        %2561 = vmatprep.mubr.f32.mxu0 0.0
        %2562 = vmatmul.mubr.f32.gmra.mrb[0].mxu0 %v2456
        %v2563 = vpop.f32.mrb[0].mxu0
        %v2564 = vadd.f32 %v2427, %v2563
        %v2565 = vpop.f32.mrb[0].mxu0
        %v2566 = vadd.f32 %v2429, %v2565
        %2567 = vmatprep.mubr.f32.mxu0 0.0
        %2568 = vmatmul.mubr.f32.gmra.mrb[0].mxu0 %v2459
        %v2569 = vpop.f32.mrb[0].mxu0
        %v2570 = vadd.f32 %v2433, %v2569
        %v2571 = vpop.f32.mrb[0].mxu0
        %v2572 = vadd.f32 %v2435, %v2571
        %2573 = vdwg.mxu0
        %2574 = vset.pattern.permute.xlu0 2
        %2575 = vperm.xlu0 %2574, %v2060
        %v2576 = vpop.permute.xlu0 %2575
        %2578 = vset.pattern.permute.xlu0 2
        %2579 = vperm.xlu0 %2578, %v2061
        %v2580 = vpop.permute.xlu0 %2579
        %2582 = vset.pattern.permute.xlu0 2
        %2583 = vperm.xlu0 %2582, %v2062
        %v2584 = vpop.permute.xlu0 %2583
        %2586 = vset.pattern.permute.xlu0 2
        %2587 = vperm.xlu0 %2586, %v2063
        %v2588 = vpop.permute.xlu0 %2587
        %2590 = vset.pattern.permute.xlu0 2
        %2591 = vperm.xlu0 %2590, %v2064
        %v2592 = vpop.permute.xlu0 %2591
        %2594 = vset.pattern.permute.xlu0 2
        %2595 = vperm.xlu0 %2594, %v2065
        %v2596 = vpop.permute.xlu0 %2595
        %2598 = vset.pattern.permute.xlu0 2
        %2599 = vperm.xlu0 %2598, %v2066
        %v2600 = vpop.permute.xlu0 %2599
        %2602 = vset.pattern.permute.xlu0 2
        %2603 = vperm.xlu0 %2602, %v2067
        %v2604 = vpop.permute.xlu0 %2603
        %v2606 = vadd.f32 %v2528, %v2576
        %v2607 = vadd.f32 %v2530, %v2576
        %v2608 = vadd.f32 %v2534, %v2580
        %v2609 = vadd.f32 %v2536, %v2580
        %v2610 = vadd.f32 %v2540, %v2584
        %v2611 = vadd.f32 %v2542, %v2584
        %v2612 = vadd.f32 %v2546, %v2588
        %v2613 = vadd.f32 %v2548, %v2588
        %v2614 = vadd.f32 %v2552, %v2592
        %v2615 = vadd.f32 %v2554, %v2592
        %v2616 = vadd.f32 %v2558, %v2596
        %v2617 = vadd.f32 %v2560, %v2596
        %v2618 = vadd.f32 %v2564, %v2600
        %v2619 = vadd.f32 %v2566, %v2600
        %v2620 = vadd.f32 %v2570, %v2604
        %v2621 = vadd.f32 %v2572, %v2604
        %v2622 = vld [vmem:[%s6 + $0x40] sm:$0xff]
        %v2623 = vld [vmem:[%s6 + $0x48] sm:$0xff]
        %v2624 = vld [vmem:[%s6 + $0x50] sm:$0xff]
        %v2625 = vld [vmem:[%s6 + $0x58] sm:$0xff]
        %v2626 = vld [vmem:[%s6 + $0x60] sm:$0xff]
        %v2627 = vld [vmem:[%s6 + $0x68] sm:$0xff]
        %v2628 = vld [vmem:[%s6 + $0x70] sm:$0xff]
        %v2629 = vld [vmem:[%s6 + $0x78] sm:$0xff]
        %v2630 = vxor.u32 %v2606, 2147483648
        %v2631 = vxor.u32 %v2607, 2147483648
        %v2632 = vxor.u32 %v2608, 2147483648
        %v2633 = vxor.u32 %v2609, 2147483648
        %v2634 = vxor.u32 %v2610, 2147483648
        %v2635 = vxor.u32 %v2611, 2147483648
        %v2636 = vxor.u32 %v2612, 2147483648
        %v2637 = vxor.u32 %v2613, 2147483648
        %v2638 = vxor.u32 %v2614, 2147483648
        %v2639 = vxor.u32 %v2615, 2147483648
        %v2640 = vxor.u32 %v2616, 2147483648
        %v2641 = vxor.u32 %v2617, 2147483648
        %v2642 = vxor.u32 %v2618, 2147483648
        %v2643 = vxor.u32 %v2619, 2147483648
        %v2644 = vxor.u32 %v2620, 2147483648
        %v2645 = vxor.u32 %v2621, 2147483648
        %v2646 = vmul.f32 %v2630, 1.442695
        %v2647 = vpow.pop %v2646
        %v2648 = vmul.f32 %v2631, 1.442695
        %v2649 = vpow.pop %v2648
        %v2650 = vmul.f32 %v2632, 1.442695
        %v2651 = vpow.pop %v2650
        %v2652 = vmul.f32 %v2633, 1.442695
        %v2653 = vpow.pop %v2652
        %v2654 = vmul.f32 %v2634, 1.442695
        %v2655 = vpow.pop %v2654
        %v2656 = vmul.f32 %v2635, 1.442695
        %v2657 = vpow.pop %v2656
        %v2658 = vmul.f32 %v2636, 1.442695
        %v2659 = vpow.pop %v2658
        %v2660 = vmul.f32 %v2637, 1.442695
        %v2661 = vpow.pop %v2660
        %v2662 = vmul.f32 %v2638, 1.442695
        %v2663 = vpow.pop %v2662
        %v2664 = vmul.f32 %v2639, 1.442695
        %v2665 = vpow.pop %v2664
        %v2666 = vmul.f32 %v2640, 1.442695
        %v2667 = vpow.pop %v2666
        %v2668 = vmul.f32 %v2641, 1.442695
        %v2669 = vpow.pop %v2668
        %v2670 = vmul.f32 %v2642, 1.442695
        %v2671 = vpow.pop %v2670
        %v2672 = vmul.f32 %v2643, 1.442695
        %v2673 = vpow.pop %v2672
        %v2674 = vmul.f32 %v2644, 1.442695
        %v2675 = vpow.pop %v2674
        %v2676 = vmul.f32 %v2645, 1.442695
        %v2677 = vpow.pop %v2676
        %v2678 = vadd.f32 %v2647, 1.0
        %v2679 = vadd.f32 %v2649, 1.0
        %v2680 = vadd.f32 %v2651, 1.0
        %v2681 = vadd.f32 %v2653, 1.0
        %v2682 = vadd.f32 %v2655, 1.0
        %v2683 = vadd.f32 %v2657, 1.0
        %v2684 = vadd.f32 %v2659, 1.0
        %v2685 = vadd.f32 %v2661, 1.0
        %v2686 = vadd.f32 %v2663, 1.0
        %v2687 = vadd.f32 %v2665, 1.0
        %v2688 = vadd.f32 %v2667, 1.0
        %v2689 = vadd.f32 %v2669, 1.0
        %v2690 = vadd.f32 %v2671, 1.0
        %v2691 = vadd.f32 %v2673, 1.0
        %v2692 = vadd.f32 %v2675, 1.0
        %v2693 = vadd.f32 %v2677, 1.0
        %v2694 = vrcp.pop %v2678
        %v2695 = vmul.f32 1.0, %v2694
        %v2696 = vrcp.pop %v2679
        %v2697 = vmul.f32 1.0, %v2696
        %v2698 = vrcp.pop %v2680
        %v2699 = vmul.f32 1.0, %v2698
        %v2700 = vrcp.pop %v2681
        %v2701 = vmul.f32 1.0, %v2700
        %v2702 = vrcp.pop %v2682
        %v2703 = vmul.f32 1.0, %v2702
        %v2704 = vrcp.pop %v2683
        %v2705 = vmul.f32 1.0, %v2704
        %v2706 = vrcp.pop %v2684
        %v2707 = vmul.f32 1.0, %v2706
        %v2708 = vrcp.pop %v2685
        %v2709 = vmul.f32 1.0, %v2708
        %v2710 = vrcp.pop %v2686
        %v2711 = vmul.f32 1.0, %v2710
        %v2712 = vrcp.pop %v2687
        %v2713 = vmul.f32 1.0, %v2712
        %v2714 = vrcp.pop %v2688
        %v2715 = vmul.f32 1.0, %v2714
        %v2716 = vrcp.pop %v2689
        %v2717 = vmul.f32 1.0, %v2716
        %v2718 = vrcp.pop %v2690
        %v2719 = vmul.f32 1.0, %v2718
        %v2720 = vrcp.pop %v2691
        %v2721 = vmul.f32 1.0, %v2720
        %v2722 = vrcp.pop %v2692
        %v2723 = vmul.f32 1.0, %v2722
        %v2724 = vrcp.pop %v2693
        %v2725 = vmul.f32 1.0, %v2724
        %v2726 = vmul.f32 %v2606, %v2695
        %v2727 = vmul.f32 %v2607, %v2697
        %v2728 = vmul.f32 %v2608, %v2699
        %v2729 = vmul.f32 %v2609, %v2701
        %v2730 = vmul.f32 %v2610, %v2703
        %v2731 = vmul.f32 %v2611, %v2705
        %v2732 = vmul.f32 %v2612, %v2707
        %v2733 = vmul.f32 %v2613, %v2709
        %v2734 = vmul.f32 %v2614, %v2711
        %v2735 = vmul.f32 %v2615, %v2713
        %v2736 = vmul.f32 %v2616, %v2715
        %v2737 = vmul.f32 %v2617, %v2717
        %v2738 = vmul.f32 %v2618, %v2719
        %v2739 = vmul.f32 %v2619, %v2721
        %v2740 = vmul.f32 %v2620, %v2723
        %v2741 = vmul.f32 %v2621, %v2725
        %v2743 = vsel %vm1601, %v2622, 0
        %v2746 = vsel %vm1601, %v2623, 0
        %v2749 = vsel %vm1601, %v2624, 0
        %v2752 = vsel %vm1601, %v2625, 0
        %v2755 = vsel %vm1601, %v2626, 0
        %v2758 = vsel %vm1601, %v2627, 0
        %v2761 = vsel %vm1601, %v2628, 0
        %v2764 = vsel %vm1601, %v2629, 0
        %2766 = vmatprep.subr.mxu0 %v2727
        %2767 = vmatpush1.msra.mxu0 %v2726
        %2768 = vmatprep.subr.mxu0 %v2729
        %2769 = vmatpush1.msra.mxu0 %v2728
        %2770 = vmatprep.subr.mxu0 %v2731
        %2771 = vmatpush1.msra.mxu0 %v2730
        %2772 = vmatprep.subr.mxu0 %v2733
        %2773 = vmatpush1.msra.mxu0 %v2732
        %2774 = vmatprep.subr.mxu0 %v2735
        %2775 = vmatpush1.msra.mxu0 %v2734
        %2776 = vmatprep.subr.mxu0 %v2737
        %2777 = vmatpush1.msra.mxu0 %v2736
        %2778 = vmatprep.subr.mxu0 %v2739
        %2779 = vmatpush1.msra.mxu0 %v2738
        %2780 = vmatprep.subr.mxu0 %v2741
        %2781 = vmatpush1.msra.mxu0 %v2740
        %2782 = vmatprep.subr.mxu0 0.0
        %2783 = vmatpush1.msra.mxu0 0.0
        %2784 = vmatprep.subr.mxu0 0.0
        %2785 = vmatpush1.msra.mxu0 0.0
        %2786 = vmatprep.subr.mxu0 0.0
        %2787 = vmatpush1.msra.mxu0 0.0
        %2788 = vmatprep.subr.mxu0 0.0
        %2789 = vmatpush1.msra.mxu0 0.0
        %2790 = vmatprep.subr.mxu0 0.0
        %2791 = vmatpush1.msra.mxu0 0.0
        %2792 = vmatprep.subr.mxu0 0.0
        %2793 = vmatpush1.msra.mxu0 0.0
        %2794 = vmatprep.subr.mxu0 0.0
        %2795 = vmatpush1.msra.mxu0 0.0
        %2796 = vmatprep.subr.mxu0 0.0
        %2797 = vmatpush1.msra.mxu0 0.0
        %2798 = vmatprep.subr.mxu0 0.0
        %2799 = vmatpush1.msra.mxu0 0.0
        %2800 = vmatprep.subr.mxu0 0.0
        %2801 = vmatpush1.msra.mxu0 0.0
        %2802 = vmatprep.subr.mxu0 0.0
        %2803 = vmatpush1.msra.mxu0 0.0
        %2804 = vmatprep.subr.mxu0 0.0
        %2805 = vmatpush1.msra.mxu0 0.0
        %2806 = vmatprep.subr.mxu0 0.0
        %2807 = vmatpush1.msra.mxu0 0.0
        %2808 = vmatprep.subr.mxu0 0.0
        %2809 = vmatpush1.msra.mxu0 0.0
        %2810 = vmatprep.subr.mxu0 0.0
        %2811 = vmatpush1.msra.mxu0 0.0
        %2812 = vmatprep.subr.mxu0 0.0
        %2813 = vmatpush1.msra.mxu0 0.0
        %2814 = vmatprep.subr.mxu0 0.0
        %2815 = vmatpush1.msra.mxu0 0.0
        %2816 = vmatprep.subr.mxu0 0.0
        %2817 = vmatpush1.msra.mxu0 0.0
        %2818 = vmatprep.subr.mxu0 0.0
        %2819 = vmatpush1.msra.mxu0 0.0
        %2820 = vmatprep.subr.mxu0 0.0
        %2821 = vmatpush1.msra.mxu0 0.0
        %2822 = vmatprep.subr.mxu0 0.0
        %2823 = vmatpush1.msra.mxu0 0.0
        %2824 = vmatprep.subr.mxu0 0.0
        %2825 = vmatpush1.msra.mxu0 0.0
        %2826 = vmatprep.subr.mxu0 0.0
        %2827 = vmatpush1.msra.mxu0 0.0
        %2828 = vmatprep.subr.mxu0 0.0
        %2829 = vmatpush1.msra.mxu0 0.0
        %2830 = vmatprep.mubr.f32.mxu0 0.0
        %2831 = vmatmul.mubr.f32.gmra.mrb[0].mxu0 %v2743
        %v2832 = vpop.f32.mrb[0].mxu0
        %v2833 = vadd.f32 0.0, %v2832
        %v2834 = vpop.f32.mrb[0].mxu0
        %v2835 = vadd.f32 0.0, %v2834
        %2836 = vmatprep.mubr.f32.mxu0 0.0
        %2837 = vmatmul.mubr.f32.gmra.mrb[0].mxu0 %v2746
        %v2838 = vpop.f32.mrb[0].mxu0
        %v2839 = vadd.f32 0.0, %v2838
        %v2840 = vpop.f32.mrb[0].mxu0
        %v2841 = vadd.f32 0.0, %v2840
        %2842 = vmatprep.mubr.f32.mxu0 0.0
        %2843 = vmatmul.mubr.f32.gmra.mrb[0].mxu0 %v2749
        %v2844 = vpop.f32.mrb[0].mxu0
        %v2845 = vadd.f32 0.0, %v2844
        %v2846 = vpop.f32.mrb[0].mxu0
        %v2847 = vadd.f32 0.0, %v2846
        %2848 = vmatprep.mubr.f32.mxu0 0.0
        %2849 = vmatmul.mubr.f32.gmra.mrb[0].mxu0 %v2752
        %v2850 = vpop.f32.mrb[0].mxu0
        %v2851 = vadd.f32 0.0, %v2850
        %v2852 = vpop.f32.mrb[0].mxu0
        %v2853 = vadd.f32 0.0, %v2852
        %2854 = vmatprep.mubr.f32.mxu0 0.0
        %2855 = vmatmul.mubr.f32.gmra.mrb[0].mxu0 %v2755
        %v2856 = vpop.f32.mrb[0].mxu0
        %v2857 = vadd.f32 0.0, %v2856
        %v2858 = vpop.f32.mrb[0].mxu0
        %v2859 = vadd.f32 0.0, %v2858
        %2860 = vmatprep.mubr.f32.mxu0 0.0
        %2861 = vmatmul.mubr.f32.gmra.mrb[0].mxu0 %v2758
        %v2862 = vpop.f32.mrb[0].mxu0
        %v2863 = vadd.f32 0.0, %v2862
        %v2864 = vpop.f32.mrb[0].mxu0
        %v2865 = vadd.f32 0.0, %v2864
        %2866 = vmatprep.mubr.f32.mxu0 0.0
        %2867 = vmatmul.mubr.f32.gmra.mrb[0].mxu0 %v2761
        %v2868 = vpop.f32.mrb[0].mxu0
        %v2869 = vadd.f32 0.0, %v2868
        %v2870 = vpop.f32.mrb[0].mxu0
        %v2871 = vadd.f32 0.0, %v2870
        %2872 = vmatprep.mubr.f32.mxu0 0.0
        %2873 = vmatmul.mubr.f32.gmra.mrb[0].mxu0 %v2764
        %v2874 = vpop.f32.mrb[0].mxu0
        %v2875 = vadd.f32 0.0, %v2874
        %v2876 = vpop.f32.mrb[0].mxu0
        %v2877 = vadd.f32 0.0, %v2876
        %2878 = vdwg.mxu0
        %v2879 = vadd.f32 %v2044, %v2833
        %v2880 = vadd.f32 %v2045, %v2835
        %v2881 = vadd.f32 %v2046, %v2839
        %v2882 = vadd.f32 %v2047, %v2841
        %v2883 = vadd.f32 %v2048, %v2845
        %v2884 = vadd.f32 %v2049, %v2847
        %v2885 = vadd.f32 %v2050, %v2851
        %v2886 = vadd.f32 %v2051, %v2853
        %v2887 = vadd.f32 %v2052, %v2857
        %v2888 = vadd.f32 %v2053, %v2859
        %v2889 = vadd.f32 %v2054, %v2863
        %v2890 = vadd.f32 %v2055, %v2865
        %v2891 = vadd.f32 %v2056, %v2869
        %v2892 = vadd.f32 %v2057, %v2871
        %v2893 = vadd.f32 %v2058, %v2875
        %v2894 = vadd.f32 %v2059, %v2877
        %v2895 = vld [vmem:[%s7 + $0x80] sm:$0xff]
        %v2896 = vld [vmem:[%s7 + $0x88] sm:$0xff]
        %v2897 = vld [vmem:[%s7 + $0x90] sm:$0xff]
        %v2898 = vld [vmem:[%s7 + $0x98] sm:$0xff]
        %v2899 = vld [vmem:[%s7 + $0xa0] sm:$0xff]
        %v2900 = vld [vmem:[%s7 + $0xa8] sm:$0xff]
        %v2901 = vld [vmem:[%s7 + $0xb0] sm:$0xff]
        %v2902 = vld [vmem:[%s7 + $0xb8] sm:$0xff]
        %2904 = vset.pattern.permute.xlu0 0
        %2905 = vperm.xlu0 %2904, %v2895
        %v2906 = vpop.permute.xlu0 %2905
        %2909 = vset.pattern.permute.xlu0 0
        %2910 = vperm.xlu0 %2909, %v2896
        %v2911 = vpop.permute.xlu0 %2910
        %2914 = vset.pattern.permute.xlu0 0
        %2915 = vperm.xlu0 %2914, %v2897
        %v2916 = vpop.permute.xlu0 %2915
        %2919 = vset.pattern.permute.xlu0 0
        %2920 = vperm.xlu0 %2919, %v2898
        %v2921 = vpop.permute.xlu0 %2920
        %2924 = vset.pattern.permute.xlu0 0
        %2925 = vperm.xlu0 %2924, %v2899
        %v2926 = vpop.permute.xlu0 %2925
        %2929 = vset.pattern.permute.xlu0 0
        %2930 = vperm.xlu0 %2929, %v2900
        %v2931 = vpop.permute.xlu0 %2930
        %2934 = vset.pattern.permute.xlu0 0
        %2935 = vperm.xlu0 %2934, %v2901
        %v2936 = vpop.permute.xlu0 %2935
        %2939 = vset.pattern.permute.xlu0 0
        %2940 = vperm.xlu0 %2939, %v2902
        %v2941 = vpop.permute.xlu0 %2940
        %v2943 = vmul.f32 %v2879, %v2906
        %v2944 = vmul.f32 %v2880, %v2906
        %v2945 = vmul.f32 %v2881, %v2911
        %v2946 = vmul.f32 %v2882, %v2911
        %v2947 = vmul.f32 %v2883, %v2916
        %v2948 = vmul.f32 %v2884, %v2916
        %v2949 = vmul.f32 %v2885, %v2921
        %v2950 = vmul.f32 %v2886, %v2921
        %v2951 = vmul.f32 %v2887, %v2926
        %v2952 = vmul.f32 %v2888, %v2926
        %v2953 = vmul.f32 %v2889, %v2931
        %v2954 = vmul.f32 %v2890, %v2931
        %v2955 = vmul.f32 %v2891, %v2936
        %v2956 = vmul.f32 %v2892, %v2936
        %v2957 = vmul.f32 %v2893, %v2941
        %v2958 = vmul.f32 %v2894, %v2941
        %2959 = vset.pattern.permute.xlu0 1
        %2960 = vperm.xlu0 %2959, %v2895
        %v2961 = vpop.permute.xlu0 %2960
        %2963 = vset.pattern.permute.xlu0 1
        %2964 = vperm.xlu0 %2963, %v2896
        %v2965 = vpop.permute.xlu0 %2964
        %2967 = vset.pattern.permute.xlu0 1
        %2968 = vperm.xlu0 %2967, %v2897
        %v2969 = vpop.permute.xlu0 %2968
        %2971 = vset.pattern.permute.xlu0 1
        %2972 = vperm.xlu0 %2971, %v2898
        %v2973 = vpop.permute.xlu0 %2972
        %2975 = vset.pattern.permute.xlu0 1
        %2976 = vperm.xlu0 %2975, %v2899
        %v2977 = vpop.permute.xlu0 %2976
        %2979 = vset.pattern.permute.xlu0 1
        %2980 = vperm.xlu0 %2979, %v2900
        %v2981 = vpop.permute.xlu0 %2980
        %2983 = vset.pattern.permute.xlu0 1
        %2984 = vperm.xlu0 %2983, %v2901
        %v2985 = vpop.permute.xlu0 %2984
        %2987 = vset.pattern.permute.xlu0 1
        %2988 = vperm.xlu0 %2987, %v2902
        %v2989 = vpop.permute.xlu0 %2988
        %v2991 = vadd.f32 %v2943, %v2961
        %v2992 = vadd.f32 %v2944, %v2961
        %v2993 = vadd.f32 %v2945, %v2965
        %v2994 = vadd.f32 %v2946, %v2965
        %v2995 = vadd.f32 %v2947, %v2969
        %v2996 = vadd.f32 %v2948, %v2969
        %v2997 = vadd.f32 %v2949, %v2973
        %v2998 = vadd.f32 %v2950, %v2973
        %v2999 = vadd.f32 %v2951, %v2977
        %v3000 = vadd.f32 %v2952, %v2977
        %v3001 = vadd.f32 %v2953, %v2981
        %v3002 = vadd.f32 %v2954, %v2981
        %v3003 = vadd.f32 %v2955, %v2985
        %v3004 = vadd.f32 %v2956, %v2985
        %v3005 = vadd.f32 %v2957, %v2989
        %v3006 = vadd.f32 %v2958, %v2989
        %v3007 = vxor.u32 %v2991, 2147483648
        %v3008 = vxor.u32 %v2992, 2147483648
        %v3009 = vxor.u32 %v2993, 2147483648
        %v3010 = vxor.u32 %v2994, 2147483648
        %v3011 = vxor.u32 %v2995, 2147483648
        %v3012 = vxor.u32 %v2996, 2147483648
        %v3013 = vxor.u32 %v2997, 2147483648
        %v3014 = vxor.u32 %v2998, 2147483648
        %v3015 = vxor.u32 %v2999, 2147483648
        %v3016 = vxor.u32 %v3000, 2147483648
        %v3017 = vxor.u32 %v3001, 2147483648
        %v3018 = vxor.u32 %v3002, 2147483648
        %v3019 = vxor.u32 %v3003, 2147483648
        %v3020 = vxor.u32 %v3004, 2147483648
        %v3021 = vxor.u32 %v3005, 2147483648
        %v3022 = vxor.u32 %v3006, 2147483648
        %v3023 = vmul.f32 %v3007, 1.442695
        %v3024 = vpow.pop %v3023
        %v3025 = vmul.f32 %v3008, 1.442695
        %v3026 = vpow.pop %v3025
        %v3027 = vmul.f32 %v3009, 1.442695
        %v3028 = vpow.pop %v3027
        %v3029 = vmul.f32 %v3010, 1.442695
        %v3030 = vpow.pop %v3029
        %v3031 = vmul.f32 %v3011, 1.442695
        %v3032 = vpow.pop %v3031
        %v3033 = vmul.f32 %v3012, 1.442695
        %v3034 = vpow.pop %v3033
        %v3035 = vmul.f32 %v3013, 1.442695
        %v3036 = vpow.pop %v3035
        %v3037 = vmul.f32 %v3014, 1.442695
        %v3038 = vpow.pop %v3037
        %v3039 = vmul.f32 %v3015, 1.442695
        %v3040 = vpow.pop %v3039
        %v3041 = vmul.f32 %v3016, 1.442695
        %v3042 = vpow.pop %v3041
        %v3043 = vmul.f32 %v3017, 1.442695
        %v3044 = vpow.pop %v3043
        %v3045 = vmul.f32 %v3018, 1.442695
        %v3046 = vpow.pop %v3045
        %v3047 = vmul.f32 %v3019, 1.442695
        %v3048 = vpow.pop %v3047
        %v3049 = vmul.f32 %v3020, 1.442695
        %v3050 = vpow.pop %v3049
        %v3051 = vmul.f32 %v3021, 1.442695
        %v3052 = vpow.pop %v3051
        %v3053 = vmul.f32 %v3022, 1.442695
        %v3054 = vpow.pop %v3053
        %v3055 = vadd.f32 %v3024, 1.0
        %v3056 = vadd.f32 %v3026, 1.0
        %v3057 = vadd.f32 %v3028, 1.0
        %v3058 = vadd.f32 %v3030, 1.0
        %v3059 = vadd.f32 %v3032, 1.0
        %v3060 = vadd.f32 %v3034, 1.0
        %v3061 = vadd.f32 %v3036, 1.0
        %v3062 = vadd.f32 %v3038, 1.0
        %v3063 = vadd.f32 %v3040, 1.0
        %v3064 = vadd.f32 %v3042, 1.0
        %v3065 = vadd.f32 %v3044, 1.0
        %v3066 = vadd.f32 %v3046, 1.0
        %v3067 = vadd.f32 %v3048, 1.0
        %v3068 = vadd.f32 %v3050, 1.0
        %v3069 = vadd.f32 %v3052, 1.0
        %v3070 = vadd.f32 %v3054, 1.0
        %v3071 = vrcp.pop %v3055
        %v3072 = vmul.f32 1.0, %v3071
        %v3073 = vrcp.pop %v3056
        %v3074 = vmul.f32 1.0, %v3073
        %v3075 = vrcp.pop %v3057
        %v3076 = vmul.f32 1.0, %v3075
        %v3077 = vrcp.pop %v3058
        %v3078 = vmul.f32 1.0, %v3077
        %v3079 = vrcp.pop %v3059
        %v3080 = vmul.f32 1.0, %v3079
        %v3081 = vrcp.pop %v3060
        %v3082 = vmul.f32 1.0, %v3081
        %v3083 = vrcp.pop %v3061
        %v3084 = vmul.f32 1.0, %v3083
        %v3085 = vrcp.pop %v3062
        %v3086 = vmul.f32 1.0, %v3085
        %v3087 = vrcp.pop %v3063
        %v3088 = vmul.f32 1.0, %v3087
        %v3089 = vrcp.pop %v3064
        %v3090 = vmul.f32 1.0, %v3089
        %v3091 = vrcp.pop %v3065
        %v3092 = vmul.f32 1.0, %v3091
        %v3093 = vrcp.pop %v3066
        %v3094 = vmul.f32 1.0, %v3093
        %v3095 = vrcp.pop %v3067
        %v3096 = vmul.f32 1.0, %v3095
        %v3097 = vrcp.pop %v3068
        %v3098 = vmul.f32 1.0, %v3097
        %v3099 = vrcp.pop %v3069
        %v3100 = vmul.f32 1.0, %v3099
        %v3101 = vrcp.pop %v3070
        %v3102 = vmul.f32 1.0, %v3101
        %v3103 = vmul.f32 %v2991, %v3072
        %v3104 = vmul.f32 %v2992, %v3074
        %v3105 = vmul.f32 %v2993, %v3076
        %v3106 = vmul.f32 %v2994, %v3078
        %v3107 = vmul.f32 %v2995, %v3080
        %v3108 = vmul.f32 %v2996, %v3082
        %v3109 = vmul.f32 %v2997, %v3084
        %v3110 = vmul.f32 %v2998, %v3086
        %v3111 = vmul.f32 %v2999, %v3088
        %v3112 = vmul.f32 %v3000, %v3090
        %v3113 = vmul.f32 %v3001, %v3092
        %v3114 = vmul.f32 %v3002, %v3094
        %v3115 = vmul.f32 %v3003, %v3096
        %v3116 = vmul.f32 %v3004, %v3098
        %v3117 = vmul.f32 %v3005, %v3100
        %v3118 = vmul.f32 %v3006, %v3102
        %v3119 = vld [vmem:[%s4 + $0x80] sm:$0xff]
        %v3120 = vld [vmem:[%s4 + $0x88] sm:$0xff]
        %v3121 = vld [vmem:[%s4 + $0x90] sm:$0xff]
        %v3122 = vld [vmem:[%s4 + $0x98] sm:$0xff]
        %v3123 = vld [vmem:[%s4 + $0xa0] sm:$0xff]
        %v3124 = vld [vmem:[%s4 + $0xa8] sm:$0xff]
        %v3125 = vld [vmem:[%s4 + $0xb0] sm:$0xff]
        %v3126 = vld [vmem:[%s4 + $0xb8] sm:$0xff]
        %v3127 = vld [vmem:[%s5 + $0x80] sm:$0xff]
        %v3128 = vld [vmem:[%s5 + $0x88] sm:$0xff]
        %v3129 = vld [vmem:[%s5 + $0x90] sm:$0xff]
        %v3130 = vld [vmem:[%s5 + $0x98] sm:$0xff]
        %v3131 = vld [vmem:[%s5 + $0xa0] sm:$0xff]
        %v3132 = vld [vmem:[%s5 + $0xa8] sm:$0xff]
        %v3133 = vld [vmem:[%s5 + $0xb0] sm:$0xff]
        %v3134 = vld [vmem:[%s5 + $0xb8] sm:$0xff]
        %v3136 = vsel %vm436, %v3127, 0
        %v3139 = vsel %vm436, %v3128, 0
        %v3142 = vsel %vm436, %v3129, 0
        %v3145 = vsel %vm436, %v3130, 0
        %v3148 = vsel %vm436, %v3131, 0
        %v3151 = vsel %vm436, %v3132, 0
        %v3154 = vsel %vm436, %v3133, 0
        %v3157 = vsel %vm436, %v3134, 0
        %3159 = vmatprep.subr.mxu0 0.0
        %3160 = vmatpush1.xpose.msra.mxu0 %v1393
        %3161 = vmatprep.subr.mxu0 0.0
        %3162 = vmatpush1.xpose.msra.mxu0 %v1396
        %3163 = vmatprep.subr.mxu0 0.0
        %3164 = vmatpush1.xpose.msra.mxu0 %v1399
        %3165 = vmatprep.subr.mxu0 0.0
        %3166 = vmatpush1.xpose.msra.mxu0 %v1402
        %3167 = vmatprep.subr.mxu0 0.0
        %3168 = vmatpush1.xpose.msra.mxu0 %v1405
        %3169 = vmatprep.subr.mxu0 0.0
        %3170 = vmatpush1.xpose.msra.mxu0 %v1408
        %3171 = vmatprep.subr.mxu0 0.0
        %3172 = vmatpush1.xpose.msra.mxu0 %v1411
        %3173 = vmatprep.subr.mxu0 0.0
        %3174 = vmatpush1.xpose.msra.mxu0 %v1414
        %3175 = vmatprep.subr.mxu0 0.0
        %3176 = vmatpush1.xpose.msra.mxu0 %v1417
        %3177 = vmatprep.subr.mxu0 0.0
        %3178 = vmatpush1.xpose.msra.mxu0 %v1420
        %3179 = vmatprep.subr.mxu0 0.0
        %3180 = vmatpush1.xpose.msra.mxu0 %v1423
        %3181 = vmatprep.subr.mxu0 0.0
        %3182 = vmatpush1.xpose.msra.mxu0 %v1426
        %3183 = vmatprep.subr.mxu0 0.0
        %3184 = vmatpush1.xpose.msra.mxu0 %v1429
        %3185 = vmatprep.subr.mxu0 0.0
        %3186 = vmatpush1.xpose.msra.mxu0 %v1432
        %3187 = vmatprep.subr.mxu0 0.0
        %3188 = vmatpush1.xpose.msra.mxu0 %v1435
        %3189 = vmatprep.subr.mxu0 0.0
        %3190 = vmatpush1.xpose.msra.mxu0 %v1438
        %3191 = vmatprep.subr.mxu0 0.0
        %3192 = vmatpush1.xpose.msra.mxu0 %v1441
        %3193 = vmatprep.subr.mxu0 0.0
        %3194 = vmatpush1.xpose.msra.mxu0 %v1444
        %3195 = vmatprep.subr.mxu0 0.0
        %3196 = vmatpush1.xpose.msra.mxu0 %v1447
        %3197 = vmatprep.subr.mxu0 0.0
        %3198 = vmatpush1.xpose.msra.mxu0 %v1450
        %3199 = vmatprep.subr.mxu0 0.0
        %3200 = vmatpush1.xpose.msra.mxu0 %v1453
        %3201 = vmatprep.subr.mxu0 0.0
        %3202 = vmatpush1.xpose.msra.mxu0 %v1456
        %3203 = vmatprep.subr.mxu0 0.0
        %3204 = vmatpush1.xpose.msra.mxu0 %v1459
        %3205 = vmatprep.subr.mxu0 0.0
        %3206 = vmatpush1.xpose.msra.mxu0 %v1462
        %3207 = vmatprep.subr.mxu0 0.0
        %3208 = vmatpush1.xpose.msra.mxu0 %v1465
        %3209 = vmatprep.subr.mxu0 0.0
        %3210 = vmatpush1.xpose.msra.mxu0 %v1468
        %3211 = vmatprep.subr.mxu0 0.0
        %3212 = vmatpush1.xpose.msra.mxu0 %v1471
        %3213 = vmatprep.subr.mxu0 0.0
        %3214 = vmatpush1.xpose.msra.mxu0 %v1474
        %3215 = vmatprep.subr.mxu0 0.0
        %3216 = vmatpush1.xpose.msra.mxu0 %v1477
        %3217 = vmatprep.subr.mxu0 0.0
        %3218 = vmatpush1.xpose.msra.mxu0 %v1480
        %3219 = vmatprep.subr.mxu0 0.0
        %3220 = vmatpush1.xpose.msra.mxu0 %v1483
        %3221 = vmatprep.subr.mxu0 0.0
        %3222 = vmatpush1.xpose.msra.mxu0 %v1486
        %3223 = vmatprep.mubr.f32.mxu0 0.0
        %3224 = vmatmul.mubr.f32.gmra.mrb[0].mxu0 %v3136
        %v3225 = vpop.f32.mrb[0].mxu0
        %v3226 = vadd.f32 0.0, %v3225
        %v3227 = vpop.f32.mrb[0].mxu0
        %v3228 = vadd.f32 0.0, %v3227
        %3229 = vmatprep.mubr.f32.mxu0 0.0
        %3230 = vmatmul.mubr.f32.gmra.mrb[0].mxu0 %v3139
        %v3231 = vpop.f32.mrb[0].mxu0
        %v3232 = vadd.f32 0.0, %v3231
        %v3233 = vpop.f32.mrb[0].mxu0
        %v3234 = vadd.f32 0.0, %v3233
        %3235 = vmatprep.mubr.f32.mxu0 0.0
        %3236 = vmatmul.mubr.f32.gmra.mrb[0].mxu0 %v3142
        %v3237 = vpop.f32.mrb[0].mxu0
        %v3238 = vadd.f32 0.0, %v3237
        %v3239 = vpop.f32.mrb[0].mxu0
        %v3240 = vadd.f32 0.0, %v3239
        %3241 = vmatprep.mubr.f32.mxu0 0.0
        %3242 = vmatmul.mubr.f32.gmra.mrb[0].mxu0 %v3145
        %v3243 = vpop.f32.mrb[0].mxu0
        %v3244 = vadd.f32 0.0, %v3243
        %v3245 = vpop.f32.mrb[0].mxu0
        %v3246 = vadd.f32 0.0, %v3245
        %3247 = vmatprep.mubr.f32.mxu0 0.0
        %3248 = vmatmul.mubr.f32.gmra.mrb[0].mxu0 %v3148
        %v3249 = vpop.f32.mrb[0].mxu0
        %v3250 = vadd.f32 0.0, %v3249
        %v3251 = vpop.f32.mrb[0].mxu0
        %v3252 = vadd.f32 0.0, %v3251
        %3253 = vmatprep.mubr.f32.mxu0 0.0
        %3254 = vmatmul.mubr.f32.gmra.mrb[0].mxu0 %v3151
        %v3255 = vpop.f32.mrb[0].mxu0
        %v3256 = vadd.f32 0.0, %v3255
        %v3257 = vpop.f32.mrb[0].mxu0
        %v3258 = vadd.f32 0.0, %v3257
        %3259 = vmatprep.mubr.f32.mxu0 0.0
        %3260 = vmatmul.mubr.f32.gmra.mrb[0].mxu0 %v3154
        %v3261 = vpop.f32.mrb[0].mxu0
        %v3262 = vadd.f32 0.0, %v3261
        %v3263 = vpop.f32.mrb[0].mxu0
        %v3264 = vadd.f32 0.0, %v3263
        %3265 = vmatprep.mubr.f32.mxu0 0.0
        %3266 = vmatmul.mubr.f32.gmra.mrb[0].mxu0 %v3157
        %v3267 = vpop.f32.mrb[0].mxu0
        %v3268 = vadd.f32 0.0, %v3267
        %v3269 = vpop.f32.mrb[0].mxu0
        %v3270 = vadd.f32 0.0, %v3269
        %3271 = vdwg.mxu0
        %v3273 = vsel %vm1601, %v3119, 0
        %v3276 = vsel %vm1601, %v3120, 0
        %v3279 = vsel %vm1601, %v3121, 0
        %v3282 = vsel %vm1601, %v3122, 0
        %v3285 = vsel %vm1601, %v3123, 0
        %v3288 = vsel %vm1601, %v3124, 0
        %v3291 = vsel %vm1601, %v3125, 0
        %v3294 = vsel %vm1601, %v3126, 0
        %3296 = vmatprep.subr.mxu0 %v3104
        %3297 = vmatpush1.msra.mxu0 %v3103
        %3298 = vmatprep.subr.mxu0 %v3106
        %3299 = vmatpush1.msra.mxu0 %v3105
        %3300 = vmatprep.subr.mxu0 %v3108
        %3301 = vmatpush1.msra.mxu0 %v3107
        %3302 = vmatprep.subr.mxu0 %v3110
        %3303 = vmatpush1.msra.mxu0 %v3109
        %3304 = vmatprep.subr.mxu0 %v3112
        %3305 = vmatpush1.msra.mxu0 %v3111
        %3306 = vmatprep.subr.mxu0 %v3114
        %3307 = vmatpush1.msra.mxu0 %v3113
        %3308 = vmatprep.subr.mxu0 %v3116
        %3309 = vmatpush1.msra.mxu0 %v3115
        %3310 = vmatprep.subr.mxu0 %v3118
        %3311 = vmatpush1.msra.mxu0 %v3117
        %3312 = vmatprep.subr.mxu0 0.0
        %3313 = vmatpush1.msra.mxu0 0.0
        %3314 = vmatprep.subr.mxu0 0.0
        %3315 = vmatpush1.msra.mxu0 0.0
        %3316 = vmatprep.subr.mxu0 0.0
        %3317 = vmatpush1.msra.mxu0 0.0
        %3318 = vmatprep.subr.mxu0 0.0
        %3319 = vmatpush1.msra.mxu0 0.0
        %3320 = vmatprep.subr.mxu0 0.0
        %3321 = vmatpush1.msra.mxu0 0.0
        %3322 = vmatprep.subr.mxu0 0.0
        %3323 = vmatpush1.msra.mxu0 0.0
        %3324 = vmatprep.subr.mxu0 0.0
        %3325 = vmatpush1.msra.mxu0 0.0
        %3326 = vmatprep.subr.mxu0 0.0
        %3327 = vmatpush1.msra.mxu0 0.0
        %3328 = vmatprep.subr.mxu0 0.0
        %3329 = vmatpush1.msra.mxu0 0.0
        %3330 = vmatprep.subr.mxu0 0.0
        %3331 = vmatpush1.msra.mxu0 0.0
        %3332 = vmatprep.subr.mxu0 0.0
        %3333 = vmatpush1.msra.mxu0 0.0
        %3334 = vmatprep.subr.mxu0 0.0
        %3335 = vmatpush1.msra.mxu0 0.0
        %3336 = vmatprep.subr.mxu0 0.0
        %3337 = vmatpush1.msra.mxu0 0.0
        %3338 = vmatprep.subr.mxu0 0.0
        %3339 = vmatpush1.msra.mxu0 0.0
        %3340 = vmatprep.subr.mxu0 0.0
        %3341 = vmatpush1.msra.mxu0 0.0
        %3342 = vmatprep.subr.mxu0 0.0
        %3343 = vmatpush1.msra.mxu0 0.0
        %3344 = vmatprep.subr.mxu0 0.0
        %3345 = vmatpush1.msra.mxu0 0.0
        %3346 = vmatprep.subr.mxu0 0.0
        %3347 = vmatpush1.msra.mxu0 0.0
        %3348 = vmatprep.subr.mxu0 0.0
        %3349 = vmatpush1.msra.mxu0 0.0
        %3350 = vmatprep.subr.mxu0 0.0
        %3351 = vmatpush1.msra.mxu0 0.0
        %3352 = vmatprep.subr.mxu0 0.0
        %3353 = vmatpush1.msra.mxu0 0.0
        %3354 = vmatprep.subr.mxu0 0.0
        %3355 = vmatpush1.msra.mxu0 0.0
        %3356 = vmatprep.subr.mxu0 0.0
        %3357 = vmatpush1.msra.mxu0 0.0
        %3358 = vmatprep.subr.mxu0 0.0
        %3359 = vmatpush1.msra.mxu0 0.0
        %3360 = vmatprep.mubr.f32.mxu0 0.0
        %3361 = vmatmul.mubr.f32.gmra.mrb[0].mxu0 %v3273
        %v3362 = vpop.f32.mrb[0].mxu0
        %v3363 = vadd.f32 %v3226, %v3362
        %v3364 = vpop.f32.mrb[0].mxu0
        %v3365 = vadd.f32 %v3228, %v3364
        %3366 = vmatprep.mubr.f32.mxu0 0.0
        %3367 = vmatmul.mubr.f32.gmra.mrb[0].mxu0 %v3276
        %v3368 = vpop.f32.mrb[0].mxu0
        %v3369 = vadd.f32 %v3232, %v3368
        %v3370 = vpop.f32.mrb[0].mxu0
        %v3371 = vadd.f32 %v3234, %v3370
        %3372 = vmatprep.mubr.f32.mxu0 0.0
        %3373 = vmatmul.mubr.f32.gmra.mrb[0].mxu0 %v3279
        %v3374 = vpop.f32.mrb[0].mxu0
        %v3375 = vadd.f32 %v3238, %v3374
        %v3376 = vpop.f32.mrb[0].mxu0
        %v3377 = vadd.f32 %v3240, %v3376
        %3378 = vmatprep.mubr.f32.mxu0 0.0
        %3379 = vmatmul.mubr.f32.gmra.mrb[0].mxu0 %v3282
        %v3380 = vpop.f32.mrb[0].mxu0
        %v3381 = vadd.f32 %v3244, %v3380
        %v3382 = vpop.f32.mrb[0].mxu0
        %v3383 = vadd.f32 %v3246, %v3382
        %3384 = vmatprep.mubr.f32.mxu0 0.0
        %3385 = vmatmul.mubr.f32.gmra.mrb[0].mxu0 %v3285
        %v3386 = vpop.f32.mrb[0].mxu0
        %v3387 = vadd.f32 %v3250, %v3386
        %v3388 = vpop.f32.mrb[0].mxu0
        %v3389 = vadd.f32 %v3252, %v3388
        %3390 = vmatprep.mubr.f32.mxu0 0.0
        %3391 = vmatmul.mubr.f32.gmra.mrb[0].mxu0 %v3288
        %v3392 = vpop.f32.mrb[0].mxu0
        %v3393 = vadd.f32 %v3256, %v3392
        %v3394 = vpop.f32.mrb[0].mxu0
        %v3395 = vadd.f32 %v3258, %v3394
        %3396 = vmatprep.mubr.f32.mxu0 0.0
        %3397 = vmatmul.mubr.f32.gmra.mrb[0].mxu0 %v3291
        %v3398 = vpop.f32.mrb[0].mxu0
        %v3399 = vadd.f32 %v3262, %v3398
        %v3400 = vpop.f32.mrb[0].mxu0
        %v3401 = vadd.f32 %v3264, %v3400
        %3402 = vmatprep.mubr.f32.mxu0 0.0
        %3403 = vmatmul.mubr.f32.gmra.mrb[0].mxu0 %v3294
        %v3404 = vpop.f32.mrb[0].mxu0
        %v3405 = vadd.f32 %v3268, %v3404
        %v3406 = vpop.f32.mrb[0].mxu0
        %v3407 = vadd.f32 %v3270, %v3406
        %3408 = vdwg.mxu0
        %3409 = vset.pattern.permute.xlu0 2
        %3410 = vperm.xlu0 %3409, %v2895
        %v3411 = vpop.permute.xlu0 %3410
        %3413 = vset.pattern.permute.xlu0 2
        %3414 = vperm.xlu0 %3413, %v2896
        %v3415 = vpop.permute.xlu0 %3414
        %3417 = vset.pattern.permute.xlu0 2
        %3418 = vperm.xlu0 %3417, %v2897
        %v3419 = vpop.permute.xlu0 %3418
        %3421 = vset.pattern.permute.xlu0 2
        %3422 = vperm.xlu0 %3421, %v2898
        %v3423 = vpop.permute.xlu0 %3422
        %3425 = vset.pattern.permute.xlu0 2
        %3426 = vperm.xlu0 %3425, %v2899
        %v3427 = vpop.permute.xlu0 %3426
        %3429 = vset.pattern.permute.xlu0 2
        %3430 = vperm.xlu0 %3429, %v2900
        %v3431 = vpop.permute.xlu0 %3430
        %3433 = vset.pattern.permute.xlu0 2
        %3434 = vperm.xlu0 %3433, %v2901
        %v3435 = vpop.permute.xlu0 %3434
        %3437 = vset.pattern.permute.xlu0 2
        %3438 = vperm.xlu0 %3437, %v2902
        %v3439 = vpop.permute.xlu0 %3438
        %v3441 = vadd.f32 %v3363, %v3411
        %v3442 = vadd.f32 %v3365, %v3411
        %v3443 = vadd.f32 %v3369, %v3415
        %v3444 = vadd.f32 %v3371, %v3415
        %v3445 = vadd.f32 %v3375, %v3419
        %v3446 = vadd.f32 %v3377, %v3419
        %v3447 = vadd.f32 %v3381, %v3423
        %v3448 = vadd.f32 %v3383, %v3423
        %v3449 = vadd.f32 %v3387, %v3427
        %v3450 = vadd.f32 %v3389, %v3427
        %v3451 = vadd.f32 %v3393, %v3431
        %v3452 = vadd.f32 %v3395, %v3431
        %v3453 = vadd.f32 %v3399, %v3435
        %v3454 = vadd.f32 %v3401, %v3435
        %v3455 = vadd.f32 %v3405, %v3439
        %v3456 = vadd.f32 %v3407, %v3439
        %v3457 = vld [vmem:[%s6 + $0x80] sm:$0xff]
        %v3458 = vld [vmem:[%s6 + $0x88] sm:$0xff]
        %v3459 = vld [vmem:[%s6 + $0x90] sm:$0xff]
        %v3460 = vld [vmem:[%s6 + $0x98] sm:$0xff]
        %v3461 = vld [vmem:[%s6 + $0xa0] sm:$0xff]
        %v3462 = vld [vmem:[%s6 + $0xa8] sm:$0xff]
        %v3463 = vld [vmem:[%s6 + $0xb0] sm:$0xff]
        %v3464 = vld [vmem:[%s6 + $0xb8] sm:$0xff]
        %v3465 = vxor.u32 %v3441, 2147483648
        %v3466 = vxor.u32 %v3442, 2147483648
        %v3467 = vxor.u32 %v3443, 2147483648
        %v3468 = vxor.u32 %v3444, 2147483648
        %v3469 = vxor.u32 %v3445, 2147483648
        %v3470 = vxor.u32 %v3446, 2147483648
        %v3471 = vxor.u32 %v3447, 2147483648
        %v3472 = vxor.u32 %v3448, 2147483648
        %v3473 = vxor.u32 %v3449, 2147483648
        %v3474 = vxor.u32 %v3450, 2147483648
        %v3475 = vxor.u32 %v3451, 2147483648
        %v3476 = vxor.u32 %v3452, 2147483648
        %v3477 = vxor.u32 %v3453, 2147483648
        %v3478 = vxor.u32 %v3454, 2147483648
        %v3479 = vxor.u32 %v3455, 2147483648
        %v3480 = vxor.u32 %v3456, 2147483648
        %v3481 = vmul.f32 %v3465, 1.442695
        %v3482 = vpow.pop %v3481
        %v3483 = vmul.f32 %v3466, 1.442695
        %v3484 = vpow.pop %v3483
        %v3485 = vmul.f32 %v3467, 1.442695
        %v3486 = vpow.pop %v3485
        %v3487 = vmul.f32 %v3468, 1.442695
        %v3488 = vpow.pop %v3487
        %v3489 = vmul.f32 %v3469, 1.442695
        %v3490 = vpow.pop %v3489
        %v3491 = vmul.f32 %v3470, 1.442695
        %v3492 = vpow.pop %v3491
        %v3493 = vmul.f32 %v3471, 1.442695
        %v3494 = vpow.pop %v3493
        %v3495 = vmul.f32 %v3472, 1.442695
        %v3496 = vpow.pop %v3495
        %v3497 = vmul.f32 %v3473, 1.442695
        %v3498 = vpow.pop %v3497
        %v3499 = vmul.f32 %v3474, 1.442695
        %v3500 = vpow.pop %v3499
        %v3501 = vmul.f32 %v3475, 1.442695
        %v3502 = vpow.pop %v3501
        %v3503 = vmul.f32 %v3476, 1.442695
        %v3504 = vpow.pop %v3503
        %v3505 = vmul.f32 %v3477, 1.442695
        %v3506 = vpow.pop %v3505
        %v3507 = vmul.f32 %v3478, 1.442695
        %v3508 = vpow.pop %v3507
        %v3509 = vmul.f32 %v3479, 1.442695
        %v3510 = vpow.pop %v3509
        %v3511 = vmul.f32 %v3480, 1.442695
        %v3512 = vpow.pop %v3511
        %v3513 = vadd.f32 %v3482, 1.0
        %v3514 = vadd.f32 %v3484, 1.0
        %v3515 = vadd.f32 %v3486, 1.0
        %v3516 = vadd.f32 %v3488, 1.0
        %v3517 = vadd.f32 %v3490, 1.0
        %v3518 = vadd.f32 %v3492, 1.0
        %v3519 = vadd.f32 %v3494, 1.0
        %v3520 = vadd.f32 %v3496, 1.0
        %v3521 = vadd.f32 %v3498, 1.0
        %v3522 = vadd.f32 %v3500, 1.0
        %v3523 = vadd.f32 %v3502, 1.0
        %v3524 = vadd.f32 %v3504, 1.0
        %v3525 = vadd.f32 %v3506, 1.0
        %v3526 = vadd.f32 %v3508, 1.0
        %v3527 = vadd.f32 %v3510, 1.0
        %v3528 = vadd.f32 %v3512, 1.0
        %v3529 = vrcp.pop %v3513
        %v3530 = vmul.f32 1.0, %v3529
        %v3531 = vrcp.pop %v3514
        %v3532 = vmul.f32 1.0, %v3531
        %v3533 = vrcp.pop %v3515
        %v3534 = vmul.f32 1.0, %v3533
        %v3535 = vrcp.pop %v3516
        %v3536 = vmul.f32 1.0, %v3535
        %v3537 = vrcp.pop %v3517
        %v3538 = vmul.f32 1.0, %v3537
        %v3539 = vrcp.pop %v3518
        %v3540 = vmul.f32 1.0, %v3539
        %v3541 = vrcp.pop %v3519
        %v3542 = vmul.f32 1.0, %v3541
        %v3543 = vrcp.pop %v3520
        %v3544 = vmul.f32 1.0, %v3543
        %v3545 = vrcp.pop %v3521
        %v3546 = vmul.f32 1.0, %v3545
        %v3547 = vrcp.pop %v3522
        %v3548 = vmul.f32 1.0, %v3547
        %v3549 = vrcp.pop %v3523
        %v3550 = vmul.f32 1.0, %v3549
        %v3551 = vrcp.pop %v3524
        %v3552 = vmul.f32 1.0, %v3551
        %v3553 = vrcp.pop %v3525
        %v3554 = vmul.f32 1.0, %v3553
        %v3555 = vrcp.pop %v3526
        %v3556 = vmul.f32 1.0, %v3555
        %v3557 = vrcp.pop %v3527
        %v3558 = vmul.f32 1.0, %v3557
        %v3559 = vrcp.pop %v3528
        %v3560 = vmul.f32 1.0, %v3559
        %v3561 = vmul.f32 %v3441, %v3530
        %v3562 = vmul.f32 %v3442, %v3532
        %v3563 = vmul.f32 %v3443, %v3534
        %v3564 = vmul.f32 %v3444, %v3536
        %v3565 = vmul.f32 %v3445, %v3538
        %v3566 = vmul.f32 %v3446, %v3540
        %v3567 = vmul.f32 %v3447, %v3542
        %v3568 = vmul.f32 %v3448, %v3544
        %v3569 = vmul.f32 %v3449, %v3546
        %v3570 = vmul.f32 %v3450, %v3548
        %v3571 = vmul.f32 %v3451, %v3550
        %v3572 = vmul.f32 %v3452, %v3552
        %v3573 = vmul.f32 %v3453, %v3554
        %v3574 = vmul.f32 %v3454, %v3556
        %v3575 = vmul.f32 %v3455, %v3558
        %v3576 = vmul.f32 %v3456, %v3560
        %v3578 = vsel %vm1601, %v3457, 0
        %v3581 = vsel %vm1601, %v3458, 0
        %v3584 = vsel %vm1601, %v3459, 0
        %v3587 = vsel %vm1601, %v3460, 0
        %v3590 = vsel %vm1601, %v3461, 0
        %v3593 = vsel %vm1601, %v3462, 0
        %v3596 = vsel %vm1601, %v3463, 0
        %v3599 = vsel %vm1601, %v3464, 0
        %3601 = vmatprep.subr.mxu0 %v3562
        %3602 = vmatpush1.msra.mxu0 %v3561
        %3603 = vmatprep.subr.mxu0 %v3564
        %3604 = vmatpush1.msra.mxu0 %v3563
        %3605 = vmatprep.subr.mxu0 %v3566
        %3606 = vmatpush1.msra.mxu0 %v3565
        %3607 = vmatprep.subr.mxu0 %v3568
        %3608 = vmatpush1.msra.mxu0 %v3567
        %3609 = vmatprep.subr.mxu0 %v3570
        %3610 = vmatpush1.msra.mxu0 %v3569
        %3611 = vmatprep.subr.mxu0 %v3572
        %3612 = vmatpush1.msra.mxu0 %v3571
        %3613 = vmatprep.subr.mxu0 %v3574
        %3614 = vmatpush1.msra.mxu0 %v3573
        %3615 = vmatprep.subr.mxu0 %v3576
        %3616 = vmatpush1.msra.mxu0 %v3575
        %3617 = vmatprep.subr.mxu0 0.0
        %3618 = vmatpush1.msra.mxu0 0.0
        %3619 = vmatprep.subr.mxu0 0.0
        %3620 = vmatpush1.msra.mxu0 0.0
        %3621 = vmatprep.subr.mxu0 0.0
        %3622 = vmatpush1.msra.mxu0 0.0
        %3623 = vmatprep.subr.mxu0 0.0
        %3624 = vmatpush1.msra.mxu0 0.0
        %3625 = vmatprep.subr.mxu0 0.0
        %3626 = vmatpush1.msra.mxu0 0.0
        %3627 = vmatprep.subr.mxu0 0.0
        %3628 = vmatpush1.msra.mxu0 0.0
        %3629 = vmatprep.subr.mxu0 0.0
        %3630 = vmatpush1.msra.mxu0 0.0
        %3631 = vmatprep.subr.mxu0 0.0
        %3632 = vmatpush1.msra.mxu0 0.0
        %3633 = vmatprep.subr.mxu0 0.0
        %3634 = vmatpush1.msra.mxu0 0.0
        %3635 = vmatprep.subr.mxu0 0.0
        %3636 = vmatpush1.msra.mxu0 0.0
        %3637 = vmatprep.subr.mxu0 0.0
        %3638 = vmatpush1.msra.mxu0 0.0
        %3639 = vmatprep.subr.mxu0 0.0
        %3640 = vmatpush1.msra.mxu0 0.0
        %3641 = vmatprep.subr.mxu0 0.0
        %3642 = vmatpush1.msra.mxu0 0.0
        %3643 = vmatprep.subr.mxu0 0.0
        %3644 = vmatpush1.msra.mxu0 0.0
        %3645 = vmatprep.subr.mxu0 0.0
        %3646 = vmatpush1.msra.mxu0 0.0
        %3647 = vmatprep.subr.mxu0 0.0
        %3648 = vmatpush1.msra.mxu0 0.0
        %3649 = vmatprep.subr.mxu0 0.0
        %3650 = vmatpush1.msra.mxu0 0.0
        %3651 = vmatprep.subr.mxu0 0.0
        %3652 = vmatpush1.msra.mxu0 0.0
        %3653 = vmatprep.subr.mxu0 0.0
        %3654 = vmatpush1.msra.mxu0 0.0
        %3655 = vmatprep.subr.mxu0 0.0
        %3656 = vmatpush1.msra.mxu0 0.0
        %3657 = vmatprep.subr.mxu0 0.0
        %3658 = vmatpush1.msra.mxu0 0.0
        %3659 = vmatprep.subr.mxu0 0.0
        %3660 = vmatpush1.msra.mxu0 0.0
        %3661 = vmatprep.subr.mxu0 0.0
        %3662 = vmatpush1.msra.mxu0 0.0
        %3663 = vmatprep.subr.mxu0 0.0
        %3664 = vmatpush1.msra.mxu0 0.0
        %3665 = vmatprep.mubr.f32.mxu0 0.0
        %3666 = vmatmul.mubr.f32.gmra.mrb[0].mxu0 %v3578
        %v3667 = vpop.f32.mrb[0].mxu0
        %v3668 = vadd.f32 0.0, %v3667
        %v3669 = vpop.f32.mrb[0].mxu0
        %v3670 = vadd.f32 0.0, %v3669
        %3671 = vmatprep.mubr.f32.mxu0 0.0
        %3672 = vmatmul.mubr.f32.gmra.mrb[0].mxu0 %v3581
        %v3673 = vpop.f32.mrb[0].mxu0
        %v3674 = vadd.f32 0.0, %v3673
        %v3675 = vpop.f32.mrb[0].mxu0
        %v3676 = vadd.f32 0.0, %v3675
        %3677 = vmatprep.mubr.f32.mxu0 0.0
        %3678 = vmatmul.mubr.f32.gmra.mrb[0].mxu0 %v3584
        %v3679 = vpop.f32.mrb[0].mxu0
        %v3680 = vadd.f32 0.0, %v3679
        %v3681 = vpop.f32.mrb[0].mxu0
        %v3682 = vadd.f32 0.0, %v3681
        %3683 = vmatprep.mubr.f32.mxu0 0.0
        %3684 = vmatmul.mubr.f32.gmra.mrb[0].mxu0 %v3587
        %v3685 = vpop.f32.mrb[0].mxu0
        %v3686 = vadd.f32 0.0, %v3685
        %v3687 = vpop.f32.mrb[0].mxu0
        %v3688 = vadd.f32 0.0, %v3687
        %3689 = vmatprep.mubr.f32.mxu0 0.0
        %3690 = vmatmul.mubr.f32.gmra.mrb[0].mxu0 %v3590
        %v3691 = vpop.f32.mrb[0].mxu0
        %v3692 = vadd.f32 0.0, %v3691
        %v3693 = vpop.f32.mrb[0].mxu0
        %v3694 = vadd.f32 0.0, %v3693
        %3695 = vmatprep.mubr.f32.mxu0 0.0
        %3696 = vmatmul.mubr.f32.gmra.mrb[0].mxu0 %v3593
        %v3697 = vpop.f32.mrb[0].mxu0
        %v3698 = vadd.f32 0.0, %v3697
        %v3699 = vpop.f32.mrb[0].mxu0
        %v3700 = vadd.f32 0.0, %v3699
        %3701 = vmatprep.mubr.f32.mxu0 0.0
        %3702 = vmatmul.mubr.f32.gmra.mrb[0].mxu0 %v3596
        %v3703 = vpop.f32.mrb[0].mxu0
        %v3704 = vadd.f32 0.0, %v3703
        %v3705 = vpop.f32.mrb[0].mxu0
        %v3706 = vadd.f32 0.0, %v3705
        %3707 = vmatprep.mubr.f32.mxu0 0.0
        %3708 = vmatmul.mubr.f32.gmra.mrb[0].mxu0 %v3599
        %v3709 = vpop.f32.mrb[0].mxu0
        %v3710 = vadd.f32 0.0, %v3709
        %v3711 = vpop.f32.mrb[0].mxu0
        %v3712 = vadd.f32 0.0, %v3711
        %3713 = vdwg.mxu0
        %v3714 = vadd.f32 %v2879, %v3668
        %v3715 = vadd.f32 %v2880, %v3670
        %v3716 = vadd.f32 %v2881, %v3674
        %v3717 = vadd.f32 %v2882, %v3676
        %v3718 = vadd.f32 %v2883, %v3680
        %v3719 = vadd.f32 %v2884, %v3682
        %v3720 = vadd.f32 %v2885, %v3686
        %v3721 = vadd.f32 %v2886, %v3688
        %v3722 = vadd.f32 %v2887, %v3692
        %v3723 = vadd.f32 %v2888, %v3694
        %v3724 = vadd.f32 %v2889, %v3698
        %v3725 = vadd.f32 %v2890, %v3700
        %v3726 = vadd.f32 %v2891, %v3704
        %v3727 = vadd.f32 %v2892, %v3706
        %v3728 = vadd.f32 %v2893, %v3710
        %v3729 = vadd.f32 %v2894, %v3712
        %v3730 = vld [vmem:[%s7 + $0xc0] sm:$0xff]
        %v3731 = vld [vmem:[%s7 + $0xc8] sm:$0xff]
        %v3732 = vld [vmem:[%s7 + $0xd0] sm:$0xff]
        %v3733 = vld [vmem:[%s7 + $0xd8] sm:$0xff]
        %v3734 = vld [vmem:[%s7 + $0xe0] sm:$0xff]
        %v3735 = vld [vmem:[%s7 + $0xe8] sm:$0xff]
        %v3736 = vld [vmem:[%s7 + $0xf0] sm:$0xff]
        %v3737 = vld [vmem:[%s7 + $0xf8] sm:$0xff]
        %3739 = vset.pattern.permute.xlu0 0
        %3740 = vperm.xlu0 %3739, %v3730
        %v3741 = vpop.permute.xlu0 %3740
        %3744 = vset.pattern.permute.xlu0 0
        %3745 = vperm.xlu0 %3744, %v3731
        %v3746 = vpop.permute.xlu0 %3745
        %3749 = vset.pattern.permute.xlu0 0
        %3750 = vperm.xlu0 %3749, %v3732
        %v3751 = vpop.permute.xlu0 %3750
        %3754 = vset.pattern.permute.xlu0 0
        %3755 = vperm.xlu0 %3754, %v3733
        %v3756 = vpop.permute.xlu0 %3755
        %3759 = vset.pattern.permute.xlu0 0
        %3760 = vperm.xlu0 %3759, %v3734
        %v3761 = vpop.permute.xlu0 %3760
        %3764 = vset.pattern.permute.xlu0 0
        %3765 = vperm.xlu0 %3764, %v3735
        %v3766 = vpop.permute.xlu0 %3765
        %3769 = vset.pattern.permute.xlu0 0
        %3770 = vperm.xlu0 %3769, %v3736
        %v3771 = vpop.permute.xlu0 %3770
        %3774 = vset.pattern.permute.xlu0 0
        %3775 = vperm.xlu0 %3774, %v3737
        %v3776 = vpop.permute.xlu0 %3775
        %v3778 = vmul.f32 %v3714, %v3741
        %v3779 = vmul.f32 %v3715, %v3741
        %v3780 = vmul.f32 %v3716, %v3746
        %v3781 = vmul.f32 %v3717, %v3746
        %v3782 = vmul.f32 %v3718, %v3751
        %v3783 = vmul.f32 %v3719, %v3751
        %v3784 = vmul.f32 %v3720, %v3756
        %v3785 = vmul.f32 %v3721, %v3756
        %v3786 = vmul.f32 %v3722, %v3761
        %v3787 = vmul.f32 %v3723, %v3761
        %v3788 = vmul.f32 %v3724, %v3766
        %v3789 = vmul.f32 %v3725, %v3766
        %v3790 = vmul.f32 %v3726, %v3771
        %v3791 = vmul.f32 %v3727, %v3771
        %v3792 = vmul.f32 %v3728, %v3776
        %v3793 = vmul.f32 %v3729, %v3776
        %3794 = vset.pattern.permute.xlu0 1
        %3795 = vperm.xlu0 %3794, %v3730
        %v3796 = vpop.permute.xlu0 %3795
        %3798 = vset.pattern.permute.xlu0 1
        %3799 = vperm.xlu0 %3798, %v3731
        %v3800 = vpop.permute.xlu0 %3799
        %3802 = vset.pattern.permute.xlu0 1
        %3803 = vperm.xlu0 %3802, %v3732
        %v3804 = vpop.permute.xlu0 %3803
        %3806 = vset.pattern.permute.xlu0 1
        %3807 = vperm.xlu0 %3806, %v3733
        %v3808 = vpop.permute.xlu0 %3807
        %3810 = vset.pattern.permute.xlu0 1
        %3811 = vperm.xlu0 %3810, %v3734
        %v3812 = vpop.permute.xlu0 %3811
        %3814 = vset.pattern.permute.xlu0 1
        %3815 = vperm.xlu0 %3814, %v3735
        %v3816 = vpop.permute.xlu0 %3815
        %3818 = vset.pattern.permute.xlu0 1
        %3819 = vperm.xlu0 %3818, %v3736
        %v3820 = vpop.permute.xlu0 %3819
        %3822 = vset.pattern.permute.xlu0 1
        %3823 = vperm.xlu0 %3822, %v3737
        %v3824 = vpop.permute.xlu0 %3823
        %v3826 = vadd.f32 %v3778, %v3796
        %v3827 = vadd.f32 %v3779, %v3796
        %v3828 = vadd.f32 %v3780, %v3800
        %v3829 = vadd.f32 %v3781, %v3800
        %v3830 = vadd.f32 %v3782, %v3804
        %v3831 = vadd.f32 %v3783, %v3804
        %v3832 = vadd.f32 %v3784, %v3808
        %v3833 = vadd.f32 %v3785, %v3808
        %v3834 = vadd.f32 %v3786, %v3812
        %v3835 = vadd.f32 %v3787, %v3812
        %v3836 = vadd.f32 %v3788, %v3816
        %v3837 = vadd.f32 %v3789, %v3816
        %v3838 = vadd.f32 %v3790, %v3820
        %v3839 = vadd.f32 %v3791, %v3820
        %v3840 = vadd.f32 %v3792, %v3824
        %v3841 = vadd.f32 %v3793, %v3824
        %v3842 = vxor.u32 %v3826, 2147483648
        %v3843 = vxor.u32 %v3827, 2147483648
        %v3844 = vxor.u32 %v3828, 2147483648
        %v3845 = vxor.u32 %v3829, 2147483648
        %v3846 = vxor.u32 %v3830, 2147483648
        %v3847 = vxor.u32 %v3831, 2147483648
        %v3848 = vxor.u32 %v3832, 2147483648
        %v3849 = vxor.u32 %v3833, 2147483648
        %v3850 = vxor.u32 %v3834, 2147483648
        %v3851 = vxor.u32 %v3835, 2147483648
        %v3852 = vxor.u32 %v3836, 2147483648
        %v3853 = vxor.u32 %v3837, 2147483648
        %v3854 = vxor.u32 %v3838, 2147483648
        %v3855 = vxor.u32 %v3839, 2147483648
        %v3856 = vxor.u32 %v3840, 2147483648
        %v3857 = vxor.u32 %v3841, 2147483648
        %v3858 = vmul.f32 %v3842, 1.442695
        %v3859 = vpow.pop %v3858
        %v3860 = vmul.f32 %v3843, 1.442695
        %v3861 = vpow.pop %v3860
        %v3862 = vmul.f32 %v3844, 1.442695
        %v3863 = vpow.pop %v3862
        %v3864 = vmul.f32 %v3845, 1.442695
        %v3865 = vpow.pop %v3864
        %v3866 = vmul.f32 %v3846, 1.442695
        %v3867 = vpow.pop %v3866
        %v3868 = vmul.f32 %v3847, 1.442695
        %v3869 = vpow.pop %v3868
        %v3870 = vmul.f32 %v3848, 1.442695
        %v3871 = vpow.pop %v3870
        %v3872 = vmul.f32 %v3849, 1.442695
        %v3873 = vpow.pop %v3872
        %v3874 = vmul.f32 %v3850, 1.442695
        %v3875 = vpow.pop %v3874
        %v3876 = vmul.f32 %v3851, 1.442695
        %v3877 = vpow.pop %v3876
        %v3878 = vmul.f32 %v3852, 1.442695
        %v3879 = vpow.pop %v3878
        %v3880 = vmul.f32 %v3853, 1.442695
        %v3881 = vpow.pop %v3880
        %v3882 = vmul.f32 %v3854, 1.442695
        %v3883 = vpow.pop %v3882
        %v3884 = vmul.f32 %v3855, 1.442695
        %v3885 = vpow.pop %v3884
        %v3886 = vmul.f32 %v3856, 1.442695
        %v3887 = vpow.pop %v3886
        %v3888 = vmul.f32 %v3857, 1.442695
        %v3889 = vpow.pop %v3888
        %v3890 = vadd.f32 %v3859, 1.0
        %v3891 = vadd.f32 %v3861, 1.0
        %v3892 = vadd.f32 %v3863, 1.0
        %v3893 = vadd.f32 %v3865, 1.0
        %v3894 = vadd.f32 %v3867, 1.0
        %v3895 = vadd.f32 %v3869, 1.0
        %v3896 = vadd.f32 %v3871, 1.0
        %v3897 = vadd.f32 %v3873, 1.0
        %v3898 = vadd.f32 %v3875, 1.0
        %v3899 = vadd.f32 %v3877, 1.0
        %v3900 = vadd.f32 %v3879, 1.0
        %v3901 = vadd.f32 %v3881, 1.0
        %v3902 = vadd.f32 %v3883, 1.0
        %v3903 = vadd.f32 %v3885, 1.0
        %v3904 = vadd.f32 %v3887, 1.0
        %v3905 = vadd.f32 %v3889, 1.0
        %v3906 = vrcp.pop %v3890
        %v3907 = vmul.f32 1.0, %v3906
        %v3908 = vrcp.pop %v3891
        %v3909 = vmul.f32 1.0, %v3908
        %v3910 = vrcp.pop %v3892
        %v3911 = vmul.f32 1.0, %v3910
        %v3912 = vrcp.pop %v3893
        %v3913 = vmul.f32 1.0, %v3912
        %v3914 = vrcp.pop %v3894
        %v3915 = vmul.f32 1.0, %v3914
        %v3916 = vrcp.pop %v3895
        %v3917 = vmul.f32 1.0, %v3916
        %v3918 = vrcp.pop %v3896
        %v3919 = vmul.f32 1.0, %v3918
        %v3920 = vrcp.pop %v3897
        %v3921 = vmul.f32 1.0, %v3920
        %v3922 = vrcp.pop %v3898
        %v3923 = vmul.f32 1.0, %v3922
        %v3924 = vrcp.pop %v3899
        %v3925 = vmul.f32 1.0, %v3924
        %v3926 = vrcp.pop %v3900
        %v3927 = vmul.f32 1.0, %v3926
        %v3928 = vrcp.pop %v3901
        %v3929 = vmul.f32 1.0, %v3928
        %v3930 = vrcp.pop %v3902
        %v3931 = vmul.f32 1.0, %v3930
        %v3932 = vrcp.pop %v3903
        %v3933 = vmul.f32 1.0, %v3932
        %v3934 = vrcp.pop %v3904
        %v3935 = vmul.f32 1.0, %v3934
        %v3936 = vrcp.pop %v3905
        %v3937 = vmul.f32 1.0, %v3936
        %v3938 = vmul.f32 %v3826, %v3907
        %v3939 = vmul.f32 %v3827, %v3909
        %v3940 = vmul.f32 %v3828, %v3911
        %v3941 = vmul.f32 %v3829, %v3913
        %v3942 = vmul.f32 %v3830, %v3915
        %v3943 = vmul.f32 %v3831, %v3917
        %v3944 = vmul.f32 %v3832, %v3919
        %v3945 = vmul.f32 %v3833, %v3921
        %v3946 = vmul.f32 %v3834, %v3923
        %v3947 = vmul.f32 %v3835, %v3925
        %v3948 = vmul.f32 %v3836, %v3927
        %v3949 = vmul.f32 %v3837, %v3929
        %v3950 = vmul.f32 %v3838, %v3931
        %v3951 = vmul.f32 %v3839, %v3933
        %v3952 = vmul.f32 %v3840, %v3935
        %v3953 = vmul.f32 %v3841, %v3937
        %v3954 = vld [vmem:[%s4 + $0xc0] sm:$0xff]
        %v3955 = vld [vmem:[%s4 + $0xc8] sm:$0xff]
        %v3956 = vld [vmem:[%s4 + $0xd0] sm:$0xff]
        %v3957 = vld [vmem:[%s4 + $0xd8] sm:$0xff]
        %v3958 = vld [vmem:[%s4 + $0xe0] sm:$0xff]
        %v3959 = vld [vmem:[%s4 + $0xe8] sm:$0xff]
        %v3960 = vld [vmem:[%s4 + $0xf0] sm:$0xff]
        %v3961 = vld [vmem:[%s4 + $0xf8] sm:$0xff]
        %v3962 = vld [vmem:[%s5 + $0xc0] sm:$0xff]
        %v3963 = vld [vmem:[%s5 + $0xc8] sm:$0xff]
        %v3964 = vld [vmem:[%s5 + $0xd0] sm:$0xff]
        %v3965 = vld [vmem:[%s5 + $0xd8] sm:$0xff]
        %v3966 = vld [vmem:[%s5 + $0xe0] sm:$0xff]
        %v3967 = vld [vmem:[%s5 + $0xe8] sm:$0xff]
        %v3968 = vld [vmem:[%s5 + $0xf0] sm:$0xff]
        %v3969 = vld [vmem:[%s5 + $0xf8] sm:$0xff]
        %v3971 = vsel %vm436, %v3962, 0
        %v3974 = vsel %vm436, %v3963, 0
        %v3977 = vsel %vm436, %v3964, 0
        %v3980 = vsel %vm436, %v3965, 0
        %v3983 = vsel %vm436, %v3966, 0
        %v3986 = vsel %vm436, %v3967, 0
        %v3989 = vsel %vm436, %v3968, 0
        %v3992 = vsel %vm436, %v3969, 0
        %3994 = vmatprep.subr.mxu0 0.0
        %3995 = vmatpush1.xpose.msra.mxu0 %v1393
        %3996 = vmatprep.subr.mxu0 0.0
        %3997 = vmatpush1.xpose.msra.mxu0 %v1396
        %3998 = vmatprep.subr.mxu0 0.0
        %3999 = vmatpush1.xpose.msra.mxu0 %v1399
        %4000 = vmatprep.subr.mxu0 0.0
        %4001 = vmatpush1.xpose.msra.mxu0 %v1402
        %4002 = vmatprep.subr.mxu0 0.0
        %4003 = vmatpush1.xpose.msra.mxu0 %v1405
        %4004 = vmatprep.subr.mxu0 0.0
        %4005 = vmatpush1.xpose.msra.mxu0 %v1408
        %4006 = vmatprep.subr.mxu0 0.0
        %4007 = vmatpush1.xpose.msra.mxu0 %v1411
        %4008 = vmatprep.subr.mxu0 0.0
        %4009 = vmatpush1.xpose.msra.mxu0 %v1414
        %4010 = vmatprep.subr.mxu0 0.0
        %4011 = vmatpush1.xpose.msra.mxu0 %v1417
        %4012 = vmatprep.subr.mxu0 0.0
        %4013 = vmatpush1.xpose.msra.mxu0 %v1420
        %4014 = vmatprep.subr.mxu0 0.0
        %4015 = vmatpush1.xpose.msra.mxu0 %v1423
        %4016 = vmatprep.subr.mxu0 0.0
        %4017 = vmatpush1.xpose.msra.mxu0 %v1426
        %4018 = vmatprep.subr.mxu0 0.0
        %4019 = vmatpush1.xpose.msra.mxu0 %v1429
        %4020 = vmatprep.subr.mxu0 0.0
        %4021 = vmatpush1.xpose.msra.mxu0 %v1432
        %4022 = vmatprep.subr.mxu0 0.0
        %4023 = vmatpush1.xpose.msra.mxu0 %v1435
        %4024 = vmatprep.subr.mxu0 0.0
        %4025 = vmatpush1.xpose.msra.mxu0 %v1438
        %4026 = vmatprep.subr.mxu0 0.0
        %4027 = vmatpush1.xpose.msra.mxu0 %v1441
        %4028 = vmatprep.subr.mxu0 0.0
        %4029 = vmatpush1.xpose.msra.mxu0 %v1444
        %4030 = vmatprep.subr.mxu0 0.0
        %4031 = vmatpush1.xpose.msra.mxu0 %v1447
        %4032 = vmatprep.subr.mxu0 0.0
        %4033 = vmatpush1.xpose.msra.mxu0 %v1450
        %4034 = vmatprep.subr.mxu0 0.0
        %4035 = vmatpush1.xpose.msra.mxu0 %v1453
        %4036 = vmatprep.subr.mxu0 0.0
        %4037 = vmatpush1.xpose.msra.mxu0 %v1456
        %4038 = vmatprep.subr.mxu0 0.0
        %4039 = vmatpush1.xpose.msra.mxu0 %v1459
        %4040 = vmatprep.subr.mxu0 0.0
        %4041 = vmatpush1.xpose.msra.mxu0 %v1462
        %4042 = vmatprep.subr.mxu0 0.0
        %4043 = vmatpush1.xpose.msra.mxu0 %v1465
        %4044 = vmatprep.subr.mxu0 0.0
        %4045 = vmatpush1.xpose.msra.mxu0 %v1468
        %4046 = vmatprep.subr.mxu0 0.0
        %4047 = vmatpush1.xpose.msra.mxu0 %v1471
        %4048 = vmatprep.subr.mxu0 0.0
        %4049 = vmatpush1.xpose.msra.mxu0 %v1474
        %4050 = vmatprep.subr.mxu0 0.0
        %4051 = vmatpush1.xpose.msra.mxu0 %v1477
        %4052 = vmatprep.subr.mxu0 0.0
        %4053 = vmatpush1.xpose.msra.mxu0 %v1480
        %4054 = vmatprep.subr.mxu0 0.0
        %4055 = vmatpush1.xpose.msra.mxu0 %v1483
        %4056 = vmatprep.subr.mxu0 0.0
        %4057 = vmatpush1.xpose.msra.mxu0 %v1486
        %4058 = vmatprep.mubr.f32.mxu0 0.0
        %4059 = vmatmul.mubr.f32.gmra.mrb[0].mxu0 %v3971
        %v4060 = vpop.f32.mrb[0].mxu0
        %v4061 = vadd.f32 0.0, %v4060
        %v4062 = vpop.f32.mrb[0].mxu0
        %v4063 = vadd.f32 0.0, %v4062
        %4064 = vmatprep.mubr.f32.mxu0 0.0
        %4065 = vmatmul.mubr.f32.gmra.mrb[0].mxu0 %v3974
        %v4066 = vpop.f32.mrb[0].mxu0
        %v4067 = vadd.f32 0.0, %v4066
        %v4068 = vpop.f32.mrb[0].mxu0
        %v4069 = vadd.f32 0.0, %v4068
        %4070 = vmatprep.mubr.f32.mxu0 0.0
        %4071 = vmatmul.mubr.f32.gmra.mrb[0].mxu0 %v3977
        %v4072 = vpop.f32.mrb[0].mxu0
        %v4073 = vadd.f32 0.0, %v4072
        %v4074 = vpop.f32.mrb[0].mxu0
        %v4075 = vadd.f32 0.0, %v4074
        %4076 = vmatprep.mubr.f32.mxu0 0.0
        %4077 = vmatmul.mubr.f32.gmra.mrb[0].mxu0 %v3980
        %v4078 = vpop.f32.mrb[0].mxu0
        %v4079 = vadd.f32 0.0, %v4078
        %v4080 = vpop.f32.mrb[0].mxu0
        %v4081 = vadd.f32 0.0, %v4080
        %4082 = vmatprep.mubr.f32.mxu0 0.0
        %4083 = vmatmul.mubr.f32.gmra.mrb[0].mxu0 %v3983
        %v4084 = vpop.f32.mrb[0].mxu0
        %v4085 = vadd.f32 0.0, %v4084
        %v4086 = vpop.f32.mrb[0].mxu0
        %v4087 = vadd.f32 0.0, %v4086
        %4088 = vmatprep.mubr.f32.mxu0 0.0
        %4089 = vmatmul.mubr.f32.gmra.mrb[0].mxu0 %v3986
        %v4090 = vpop.f32.mrb[0].mxu0
        %v4091 = vadd.f32 0.0, %v4090
        %v4092 = vpop.f32.mrb[0].mxu0
        %v4093 = vadd.f32 0.0, %v4092
        %4094 = vmatprep.mubr.f32.mxu0 0.0
        %4095 = vmatmul.mubr.f32.gmra.mrb[0].mxu0 %v3989
        %v4096 = vpop.f32.mrb[0].mxu0
        %v4097 = vadd.f32 0.0, %v4096
        %v4098 = vpop.f32.mrb[0].mxu0
        %v4099 = vadd.f32 0.0, %v4098
        %4100 = vmatprep.mubr.f32.mxu0 0.0
        %4101 = vmatmul.mubr.f32.gmra.mrb[0].mxu0 %v3992
        %v4102 = vpop.f32.mrb[0].mxu0
        %v4103 = vadd.f32 0.0, %v4102
        %v4104 = vpop.f32.mrb[0].mxu0
        %v4105 = vadd.f32 0.0, %v4104
        %4106 = vdwg.mxu0
        %v4108 = vsel %vm1601, %v3954, 0
        %v4111 = vsel %vm1601, %v3955, 0
        %v4114 = vsel %vm1601, %v3956, 0
        %v4117 = vsel %vm1601, %v3957, 0
        %v4120 = vsel %vm1601, %v3958, 0
        %v4123 = vsel %vm1601, %v3959, 0
        %v4126 = vsel %vm1601, %v3960, 0
        %v4129 = vsel %vm1601, %v3961, 0
        %4131 = vmatprep.subr.mxu0 %v3939
        %4132 = vmatpush1.msra.mxu0 %v3938
        %4133 = vmatprep.subr.mxu0 %v3941
        %4134 = vmatpush1.msra.mxu0 %v3940
        %4135 = vmatprep.subr.mxu0 %v3943
        %4136 = vmatpush1.msra.mxu0 %v3942
        %4137 = vmatprep.subr.mxu0 %v3945
        %4138 = vmatpush1.msra.mxu0 %v3944
        %4139 = vmatprep.subr.mxu0 %v3947
        %4140 = vmatpush1.msra.mxu0 %v3946
        %4141 = vmatprep.subr.mxu0 %v3949
        %4142 = vmatpush1.msra.mxu0 %v3948
        %4143 = vmatprep.subr.mxu0 %v3951
        %4144 = vmatpush1.msra.mxu0 %v3950
        %4145 = vmatprep.subr.mxu0 %v3953
        %4146 = vmatpush1.msra.mxu0 %v3952
        %4147 = vmatprep.subr.mxu0 0.0
        %4148 = vmatpush1.msra.mxu0 0.0
        %4149 = vmatprep.subr.mxu0 0.0
        %4150 = vmatpush1.msra.mxu0 0.0
        %4151 = vmatprep.subr.mxu0 0.0
        %4152 = vmatpush1.msra.mxu0 0.0
        %4153 = vmatprep.subr.mxu0 0.0
        %4154 = vmatpush1.msra.mxu0 0.0
        %4155 = vmatprep.subr.mxu0 0.0
        %4156 = vmatpush1.msra.mxu0 0.0
        %4157 = vmatprep.subr.mxu0 0.0
        %4158 = vmatpush1.msra.mxu0 0.0
        %4159 = vmatprep.subr.mxu0 0.0
        %4160 = vmatpush1.msra.mxu0 0.0
        %4161 = vmatprep.subr.mxu0 0.0
        %4162 = vmatpush1.msra.mxu0 0.0
        %4163 = vmatprep.subr.mxu0 0.0
        %4164 = vmatpush1.msra.mxu0 0.0
        %4165 = vmatprep.subr.mxu0 0.0
        %4166 = vmatpush1.msra.mxu0 0.0
        %4167 = vmatprep.subr.mxu0 0.0
        %4168 = vmatpush1.msra.mxu0 0.0
        %4169 = vmatprep.subr.mxu0 0.0
        %4170 = vmatpush1.msra.mxu0 0.0
        %4171 = vmatprep.subr.mxu0 0.0
        %4172 = vmatpush1.msra.mxu0 0.0
        %4173 = vmatprep.subr.mxu0 0.0
        %4174 = vmatpush1.msra.mxu0 0.0
        %4175 = vmatprep.subr.mxu0 0.0
        %4176 = vmatpush1.msra.mxu0 0.0
        %4177 = vmatprep.subr.mxu0 0.0
        %4178 = vmatpush1.msra.mxu0 0.0
        %4179 = vmatprep.subr.mxu0 0.0
        %4180 = vmatpush1.msra.mxu0 0.0
        %4181 = vmatprep.subr.mxu0 0.0
        %4182 = vmatpush1.msra.mxu0 0.0
        %4183 = vmatprep.subr.mxu0 0.0
        %4184 = vmatpush1.msra.mxu0 0.0
        %4185 = vmatprep.subr.mxu0 0.0
        %4186 = vmatpush1.msra.mxu0 0.0
        %4187 = vmatprep.subr.mxu0 0.0
        %4188 = vmatpush1.msra.mxu0 0.0
        %4189 = vmatprep.subr.mxu0 0.0
        %4190 = vmatpush1.msra.mxu0 0.0
        %4191 = vmatprep.subr.mxu0 0.0
        %4192 = vmatpush1.msra.mxu0 0.0
        %4193 = vmatprep.subr.mxu0 0.0
        %4194 = vmatpush1.msra.mxu0 0.0
        %4195 = vmatprep.mubr.f32.mxu0 0.0
        %4196 = vmatmul.mubr.f32.gmra.mrb[0].mxu0 %v4108
        %v4197 = vpop.f32.mrb[0].mxu0
        %v4198 = vadd.f32 %v4061, %v4197
        %v4199 = vpop.f32.mrb[0].mxu0
        %v4200 = vadd.f32 %v4063, %v4199
        %4201 = vmatprep.mubr.f32.mxu0 0.0
        %4202 = vmatmul.mubr.f32.gmra.mrb[0].mxu0 %v4111
        %v4203 = vpop.f32.mrb[0].mxu0
        %v4204 = vadd.f32 %v4067, %v4203
        %v4205 = vpop.f32.mrb[0].mxu0
        %v4206 = vadd.f32 %v4069, %v4205
        %4207 = vmatprep.mubr.f32.mxu0 0.0
        %4208 = vmatmul.mubr.f32.gmra.mrb[0].mxu0 %v4114
        %v4209 = vpop.f32.mrb[0].mxu0
        %v4210 = vadd.f32 %v4073, %v4209
        %v4211 = vpop.f32.mrb[0].mxu0
        %v4212 = vadd.f32 %v4075, %v4211
        %4213 = vmatprep.mubr.f32.mxu0 0.0
        %4214 = vmatmul.mubr.f32.gmra.mrb[0].mxu0 %v4117
        %v4215 = vpop.f32.mrb[0].mxu0
        %v4216 = vadd.f32 %v4079, %v4215
        %v4217 = vpop.f32.mrb[0].mxu0
        %v4218 = vadd.f32 %v4081, %v4217
        %4219 = vmatprep.mubr.f32.mxu0 0.0
        %4220 = vmatmul.mubr.f32.gmra.mrb[0].mxu0 %v4120
        %v4221 = vpop.f32.mrb[0].mxu0
        %v4222 = vadd.f32 %v4085, %v4221
        %v4223 = vpop.f32.mrb[0].mxu0
        %v4224 = vadd.f32 %v4087, %v4223
        %4225 = vmatprep.mubr.f32.mxu0 0.0
        %4226 = vmatmul.mubr.f32.gmra.mrb[0].mxu0 %v4123
        %v4227 = vpop.f32.mrb[0].mxu0
        %v4228 = vadd.f32 %v4091, %v4227
        %v4229 = vpop.f32.mrb[0].mxu0
        %v4230 = vadd.f32 %v4093, %v4229
        %4231 = vmatprep.mubr.f32.mxu0 0.0
        %4232 = vmatmul.mubr.f32.gmra.mrb[0].mxu0 %v4126
        %v4233 = vpop.f32.mrb[0].mxu0
        %v4234 = vadd.f32 %v4097, %v4233
        %v4235 = vpop.f32.mrb[0].mxu0
        %v4236 = vadd.f32 %v4099, %v4235
        %4237 = vmatprep.mubr.f32.mxu0 0.0
        %4238 = vmatmul.mubr.f32.gmra.mrb[0].mxu0 %v4129
        %v4239 = vpop.f32.mrb[0].mxu0
        %v4240 = vadd.f32 %v4103, %v4239
        %v4241 = vpop.f32.mrb[0].mxu0
        %v4242 = vadd.f32 %v4105, %v4241
        %4243 = vdwg.mxu0
        %4244 = vset.pattern.permute.xlu0 2
        %4245 = vperm.xlu0 %4244, %v3730
        %v4246 = vpop.permute.xlu0 %4245
        %4248 = vset.pattern.permute.xlu0 2
        %4249 = vperm.xlu0 %4248, %v3731
        %v4250 = vpop.permute.xlu0 %4249
        %4252 = vset.pattern.permute.xlu0 2
        %4253 = vperm.xlu0 %4252, %v3732
        %v4254 = vpop.permute.xlu0 %4253
        %4256 = vset.pattern.permute.xlu0 2
        %4257 = vperm.xlu0 %4256, %v3733
        %v4258 = vpop.permute.xlu0 %4257
        %4260 = vset.pattern.permute.xlu0 2
        %4261 = vperm.xlu0 %4260, %v3734
        %v4262 = vpop.permute.xlu0 %4261
        %4264 = vset.pattern.permute.xlu0 2
        %4265 = vperm.xlu0 %4264, %v3735
        %v4266 = vpop.permute.xlu0 %4265
        %4268 = vset.pattern.permute.xlu0 2
        %4269 = vperm.xlu0 %4268, %v3736
        %v4270 = vpop.permute.xlu0 %4269
        %4272 = vset.pattern.permute.xlu0 2
        %4273 = vperm.xlu0 %4272, %v3737
        %v4274 = vpop.permute.xlu0 %4273
        %v4276 = vadd.f32 %v4198, %v4246
        %v4277 = vadd.f32 %v4200, %v4246
        %v4278 = vadd.f32 %v4204, %v4250
        %v4279 = vadd.f32 %v4206, %v4250
        %v4280 = vadd.f32 %v4210, %v4254
        %v4281 = vadd.f32 %v4212, %v4254
        %v4282 = vadd.f32 %v4216, %v4258
        %v4283 = vadd.f32 %v4218, %v4258
        %v4284 = vadd.f32 %v4222, %v4262
        %v4285 = vadd.f32 %v4224, %v4262
        %v4286 = vadd.f32 %v4228, %v4266
        %v4287 = vadd.f32 %v4230, %v4266
        %v4288 = vadd.f32 %v4234, %v4270
        %v4289 = vadd.f32 %v4236, %v4270
        %v4290 = vadd.f32 %v4240, %v4274
        %v4291 = vadd.f32 %v4242, %v4274
        %v4292 = vld [vmem:[%s6 + $0xc0] sm:$0xff]
        %v4293 = vld [vmem:[%s6 + $0xc8] sm:$0xff]
        %v4294 = vld [vmem:[%s6 + $0xd0] sm:$0xff]
        %v4295 = vld [vmem:[%s6 + $0xd8] sm:$0xff]
        %v4296 = vld [vmem:[%s6 + $0xe0] sm:$0xff]
        %v4297 = vld [vmem:[%s6 + $0xe8] sm:$0xff]
        %v4298 = vld [vmem:[%s6 + $0xf0] sm:$0xff]
        %v4299 = vld [vmem:[%s6 + $0xf8] sm:$0xff]
        %v4300 = vxor.u32 %v4276, 2147483648
        %v4301 = vxor.u32 %v4277, 2147483648
        %v4302 = vxor.u32 %v4278, 2147483648
        %v4303 = vxor.u32 %v4279, 2147483648
        %v4304 = vxor.u32 %v4280, 2147483648
        %v4305 = vxor.u32 %v4281, 2147483648
        %v4306 = vxor.u32 %v4282, 2147483648
        %v4307 = vxor.u32 %v4283, 2147483648
        %v4308 = vxor.u32 %v4284, 2147483648
        %v4309 = vxor.u32 %v4285, 2147483648
        %v4310 = vxor.u32 %v4286, 2147483648
        %v4311 = vxor.u32 %v4287, 2147483648
        %v4312 = vxor.u32 %v4288, 2147483648
        %v4313 = vxor.u32 %v4289, 2147483648
        %v4314 = vxor.u32 %v4290, 2147483648
        %v4315 = vxor.u32 %v4291, 2147483648
        %v4316 = vmul.f32 %v4300, 1.442695
        %v4317 = vpow.pop %v4316
        %v4318 = vmul.f32 %v4301, 1.442695
        %v4319 = vpow.pop %v4318
        %v4320 = vmul.f32 %v4302, 1.442695
        %v4321 = vpow.pop %v4320
        %v4322 = vmul.f32 %v4303, 1.442695
        %v4323 = vpow.pop %v4322
        %v4324 = vmul.f32 %v4304, 1.442695
        %v4325 = vpow.pop %v4324
        %v4326 = vmul.f32 %v4305, 1.442695
        %v4327 = vpow.pop %v4326
        %v4328 = vmul.f32 %v4306, 1.442695
        %v4329 = vpow.pop %v4328
        %v4330 = vmul.f32 %v4307, 1.442695
        %v4331 = vpow.pop %v4330
        %v4332 = vmul.f32 %v4308, 1.442695
        %v4333 = vpow.pop %v4332
        %v4334 = vmul.f32 %v4309, 1.442695
        %v4335 = vpow.pop %v4334
        %v4336 = vmul.f32 %v4310, 1.442695
        %v4337 = vpow.pop %v4336
        %v4338 = vmul.f32 %v4311, 1.442695
        %v4339 = vpow.pop %v4338
        %v4340 = vmul.f32 %v4312, 1.442695
        %v4341 = vpow.pop %v4340
        %v4342 = vmul.f32 %v4313, 1.442695
        %v4343 = vpow.pop %v4342
        %v4344 = vmul.f32 %v4314, 1.442695
        %v4345 = vpow.pop %v4344
        %v4346 = vmul.f32 %v4315, 1.442695
        %v4347 = vpow.pop %v4346
        %v4348 = vadd.f32 %v4317, 1.0
        %v4349 = vadd.f32 %v4319, 1.0
        %v4350 = vadd.f32 %v4321, 1.0
        %v4351 = vadd.f32 %v4323, 1.0
        %v4352 = vadd.f32 %v4325, 1.0
        %v4353 = vadd.f32 %v4327, 1.0
        %v4354 = vadd.f32 %v4329, 1.0
        %v4355 = vadd.f32 %v4331, 1.0
        %v4356 = vadd.f32 %v4333, 1.0
        %v4357 = vadd.f32 %v4335, 1.0
        %v4358 = vadd.f32 %v4337, 1.0
        %v4359 = vadd.f32 %v4339, 1.0
        %v4360 = vadd.f32 %v4341, 1.0
        %v4361 = vadd.f32 %v4343, 1.0
        %v4362 = vadd.f32 %v4345, 1.0
        %v4363 = vadd.f32 %v4347, 1.0
        %v4364 = vrcp.pop %v4348
        %v4365 = vmul.f32 1.0, %v4364
        %v4366 = vrcp.pop %v4349
        %v4367 = vmul.f32 1.0, %v4366
        %v4368 = vrcp.pop %v4350
        %v4369 = vmul.f32 1.0, %v4368
        %v4370 = vrcp.pop %v4351
        %v4371 = vmul.f32 1.0, %v4370
        %v4372 = vrcp.pop %v4352
        %v4373 = vmul.f32 1.0, %v4372
        %v4374 = vrcp.pop %v4353
        %v4375 = vmul.f32 1.0, %v4374
        %v4376 = vrcp.pop %v4354
        %v4377 = vmul.f32 1.0, %v4376
        %v4378 = vrcp.pop %v4355
        %v4379 = vmul.f32 1.0, %v4378
        %v4380 = vrcp.pop %v4356
        %v4381 = vmul.f32 1.0, %v4380
        %v4382 = vrcp.pop %v4357
        %v4383 = vmul.f32 1.0, %v4382
        %v4384 = vrcp.pop %v4358
        %v4385 = vmul.f32 1.0, %v4384
        %v4386 = vrcp.pop %v4359
        %v4387 = vmul.f32 1.0, %v4386
        %v4388 = vrcp.pop %v4360
        %v4389 = vmul.f32 1.0, %v4388
        %v4390 = vrcp.pop %v4361
        %v4391 = vmul.f32 1.0, %v4390
        %v4392 = vrcp.pop %v4362
        %v4393 = vmul.f32 1.0, %v4392
        %v4394 = vrcp.pop %v4363
        %v4395 = vmul.f32 1.0, %v4394
        %v4396 = vmul.f32 %v4276, %v4365
        %v4397 = vmul.f32 %v4277, %v4367
        %v4398 = vmul.f32 %v4278, %v4369
        %v4399 = vmul.f32 %v4279, %v4371
        %v4400 = vmul.f32 %v4280, %v4373
        %v4401 = vmul.f32 %v4281, %v4375
        %v4402 = vmul.f32 %v4282, %v4377
        %v4403 = vmul.f32 %v4283, %v4379
        %v4404 = vmul.f32 %v4284, %v4381
        %v4405 = vmul.f32 %v4285, %v4383
        %v4406 = vmul.f32 %v4286, %v4385
        %v4407 = vmul.f32 %v4287, %v4387
        %v4408 = vmul.f32 %v4288, %v4389
        %v4409 = vmul.f32 %v4289, %v4391
        %v4410 = vmul.f32 %v4290, %v4393
        %v4411 = vmul.f32 %v4291, %v4395
        %v4413 = vsel %vm1601, %v4292, 0
        %v4416 = vsel %vm1601, %v4293, 0
        %v4419 = vsel %vm1601, %v4294, 0
        %v4422 = vsel %vm1601, %v4295, 0
        %v4425 = vsel %vm1601, %v4296, 0
        %v4428 = vsel %vm1601, %v4297, 0
        %v4431 = vsel %vm1601, %v4298, 0
        %v4434 = vsel %vm1601, %v4299, 0
        %4436 = vmatprep.subr.mxu0 %v4397
        %4437 = vmatpush1.msra.mxu0 %v4396
        %4438 = vmatprep.subr.mxu0 %v4399
        %4439 = vmatpush1.msra.mxu0 %v4398
        %4440 = vmatprep.subr.mxu0 %v4401
        %4441 = vmatpush1.msra.mxu0 %v4400
        %4442 = vmatprep.subr.mxu0 %v4403
        %4443 = vmatpush1.msra.mxu0 %v4402
        %4444 = vmatprep.subr.mxu0 %v4405
        %4445 = vmatpush1.msra.mxu0 %v4404
        %4446 = vmatprep.subr.mxu0 %v4407
        %4447 = vmatpush1.msra.mxu0 %v4406
        %4448 = vmatprep.subr.mxu0 %v4409
        %4449 = vmatpush1.msra.mxu0 %v4408
        %4450 = vmatprep.subr.mxu0 %v4411
        %4451 = vmatpush1.msra.mxu0 %v4410
        %4452 = vmatprep.subr.mxu0 0.0
        %4453 = vmatpush1.msra.mxu0 0.0
        %4454 = vmatprep.subr.mxu0 0.0
        %4455 = vmatpush1.msra.mxu0 0.0
        %4456 = vmatprep.subr.mxu0 0.0
        %4457 = vmatpush1.msra.mxu0 0.0
        %4458 = vmatprep.subr.mxu0 0.0
        %4459 = vmatpush1.msra.mxu0 0.0
        %4460 = vmatprep.subr.mxu0 0.0
        %4461 = vmatpush1.msra.mxu0 0.0
        %4462 = vmatprep.subr.mxu0 0.0
        %4463 = vmatpush1.msra.mxu0 0.0
        %4464 = vmatprep.subr.mxu0 0.0
        %4465 = vmatpush1.msra.mxu0 0.0
        %4466 = vmatprep.subr.mxu0 0.0
        %4467 = vmatpush1.msra.mxu0 0.0
        %4468 = vmatprep.subr.mxu0 0.0
        %4469 = vmatpush1.msra.mxu0 0.0
        %4470 = vmatprep.subr.mxu0 0.0
        %4471 = vmatpush1.msra.mxu0 0.0
        %4472 = vmatprep.subr.mxu0 0.0
        %4473 = vmatpush1.msra.mxu0 0.0
        %4474 = vmatprep.subr.mxu0 0.0
        %4475 = vmatpush1.msra.mxu0 0.0
        %4476 = vmatprep.subr.mxu0 0.0
        %4477 = vmatpush1.msra.mxu0 0.0
        %4478 = vmatprep.subr.mxu0 0.0
        %4479 = vmatpush1.msra.mxu0 0.0
        %4480 = vmatprep.subr.mxu0 0.0
        %4481 = vmatpush1.msra.mxu0 0.0
        %4482 = vmatprep.subr.mxu0 0.0
        %4483 = vmatpush1.msra.mxu0 0.0
        %4484 = vmatprep.subr.mxu0 0.0
        %4485 = vmatpush1.msra.mxu0 0.0
        %4486 = vmatprep.subr.mxu0 0.0
        %4487 = vmatpush1.msra.mxu0 0.0
        %4488 = vmatprep.subr.mxu0 0.0
        %4489 = vmatpush1.msra.mxu0 0.0
        %4490 = vmatprep.subr.mxu0 0.0
        %4491 = vmatpush1.msra.mxu0 0.0
        %4492 = vmatprep.subr.mxu0 0.0
        %4493 = vmatpush1.msra.mxu0 0.0
        %4494 = vmatprep.subr.mxu0 0.0
        %4495 = vmatpush1.msra.mxu0 0.0
        %4496 = vmatprep.subr.mxu0 0.0
        %4497 = vmatpush1.msra.mxu0 0.0
        %4498 = vmatprep.subr.mxu0 0.0
        %4499 = vmatpush1.msra.mxu0 0.0
        %4500 = vmatprep.mubr.f32.mxu0 0.0
        %4501 = vmatmul.mubr.f32.gmra.mrb[0].mxu0 %v4413
        %v4502 = vpop.f32.mrb[0].mxu0
        %v4503 = vadd.f32 0.0, %v4502
        %v4504 = vpop.f32.mrb[0].mxu0
        %v4505 = vadd.f32 0.0, %v4504
        %4506 = vmatprep.mubr.f32.mxu0 0.0
        %4507 = vmatmul.mubr.f32.gmra.mrb[0].mxu0 %v4416
        %v4508 = vpop.f32.mrb[0].mxu0
        %v4509 = vadd.f32 0.0, %v4508
        %v4510 = vpop.f32.mrb[0].mxu0
        %v4511 = vadd.f32 0.0, %v4510
        %4512 = vmatprep.mubr.f32.mxu0 0.0
        %4513 = vmatmul.mubr.f32.gmra.mrb[0].mxu0 %v4419
        %v4514 = vpop.f32.mrb[0].mxu0
        %v4515 = vadd.f32 0.0, %v4514
        %v4516 = vpop.f32.mrb[0].mxu0
        %v4517 = vadd.f32 0.0, %v4516
        %4518 = vmatprep.mubr.f32.mxu0 0.0
        %4519 = vmatmul.mubr.f32.gmra.mrb[0].mxu0 %v4422
        %v4520 = vpop.f32.mrb[0].mxu0
        %v4521 = vadd.f32 0.0, %v4520
        %v4522 = vpop.f32.mrb[0].mxu0
        %v4523 = vadd.f32 0.0, %v4522
        %4524 = vmatprep.mubr.f32.mxu0 0.0
        %4525 = vmatmul.mubr.f32.gmra.mrb[0].mxu0 %v4425
        %v4526 = vpop.f32.mrb[0].mxu0
        %v4527 = vadd.f32 0.0, %v4526
        %v4528 = vpop.f32.mrb[0].mxu0
        %v4529 = vadd.f32 0.0, %v4528
        %4530 = vmatprep.mubr.f32.mxu0 0.0
        %4531 = vmatmul.mubr.f32.gmra.mrb[0].mxu0 %v4428
        %v4532 = vpop.f32.mrb[0].mxu0
        %v4533 = vadd.f32 0.0, %v4532
        %v4534 = vpop.f32.mrb[0].mxu0
        %v4535 = vadd.f32 0.0, %v4534
        %4536 = vmatprep.mubr.f32.mxu0 0.0
        %4537 = vmatmul.mubr.f32.gmra.mrb[0].mxu0 %v4431
        %v4538 = vpop.f32.mrb[0].mxu0
        %v4539 = vadd.f32 0.0, %v4538
        %v4540 = vpop.f32.mrb[0].mxu0
        %v4541 = vadd.f32 0.0, %v4540
        %4542 = vmatprep.mubr.f32.mxu0 0.0
        %4543 = vmatmul.mubr.f32.gmra.mrb[0].mxu0 %v4434
        %v4544 = vpop.f32.mrb[0].mxu0
        %v4545 = vadd.f32 0.0, %v4544
        %v4546 = vpop.f32.mrb[0].mxu0
        %v4547 = vadd.f32 0.0, %v4546
        %4548 = vdwg.mxu0
        %v4549 = vadd.f32 %v3714, %v4503
        %v4550 = vadd.f32 %v3715, %v4505
        %v4551 = vadd.f32 %v3716, %v4509
        %v4552 = vadd.f32 %v3717, %v4511
        %v4553 = vadd.f32 %v3718, %v4515
        %v4554 = vadd.f32 %v3719, %v4517
        %v4555 = vadd.f32 %v3720, %v4521
        %v4556 = vadd.f32 %v3721, %v4523
        %v4557 = vadd.f32 %v3722, %v4527
        %v4558 = vadd.f32 %v3723, %v4529
        %v4559 = vadd.f32 %v3724, %v4533
        %v4560 = vadd.f32 %v3725, %v4535
        %v4561 = vadd.f32 %v3726, %v4539
        %v4562 = vadd.f32 %v3727, %v4541
        %v4563 = vadd.f32 %v3728, %v4545
        %v4564 = vadd.f32 %v3729, %v4547
        %v4565 = vld [vmem:[%s8] sm:$0xff]
        %v4566 = vxor.u32 %v4549, 2147483648
        %v4567 = vxor.u32 %v4550, 2147483648
        %v4568 = vxor.u32 %v4551, 2147483648
        %v4569 = vxor.u32 %v4552, 2147483648
        %v4570 = vxor.u32 %v4553, 2147483648
        %v4571 = vxor.u32 %v4554, 2147483648
        %v4572 = vxor.u32 %v4555, 2147483648
        %v4573 = vxor.u32 %v4556, 2147483648
        %v4574 = vxor.u32 %v4557, 2147483648
        %v4575 = vxor.u32 %v4558, 2147483648
        %v4576 = vxor.u32 %v4559, 2147483648
        %v4577 = vxor.u32 %v4560, 2147483648
        %v4578 = vxor.u32 %v4561, 2147483648
        %v4579 = vxor.u32 %v4562, 2147483648
        %v4580 = vxor.u32 %v4563, 2147483648
        %v4581 = vxor.u32 %v4564, 2147483648
        %v4582 = vmul.f32 %v4566, 1.442695
        %v4583 = vpow.pop %v4582
        %v4584 = vmul.f32 %v4567, 1.442695
        %v4585 = vpow.pop %v4584
        %v4586 = vmul.f32 %v4568, 1.442695
        %v4587 = vpow.pop %v4586
        %v4588 = vmul.f32 %v4569, 1.442695
        %v4589 = vpow.pop %v4588
        %v4590 = vmul.f32 %v4570, 1.442695
        %v4591 = vpow.pop %v4590
        %v4592 = vmul.f32 %v4571, 1.442695
        %v4593 = vpow.pop %v4592
        %v4594 = vmul.f32 %v4572, 1.442695
        %v4595 = vpow.pop %v4594
        %v4596 = vmul.f32 %v4573, 1.442695
        %v4597 = vpow.pop %v4596
        %v4598 = vmul.f32 %v4574, 1.442695
        %v4599 = vpow.pop %v4598
        %v4600 = vmul.f32 %v4575, 1.442695
        %v4601 = vpow.pop %v4600
        %v4602 = vmul.f32 %v4576, 1.442695
        %v4603 = vpow.pop %v4602
        %v4604 = vmul.f32 %v4577, 1.442695
        %v4605 = vpow.pop %v4604
        %v4606 = vmul.f32 %v4578, 1.442695
        %v4607 = vpow.pop %v4606
        %v4608 = vmul.f32 %v4579, 1.442695
        %v4609 = vpow.pop %v4608
        %v4610 = vmul.f32 %v4580, 1.442695
        %v4611 = vpow.pop %v4610
        %v4612 = vmul.f32 %v4581, 1.442695
        %v4613 = vpow.pop %v4612
        %v4614 = vadd.f32 %v4583, 1.0
        %v4615 = vadd.f32 %v4585, 1.0
        %v4616 = vadd.f32 %v4587, 1.0
        %v4617 = vadd.f32 %v4589, 1.0
        %v4618 = vadd.f32 %v4591, 1.0
        %v4619 = vadd.f32 %v4593, 1.0
        %v4620 = vadd.f32 %v4595, 1.0
        %v4621 = vadd.f32 %v4597, 1.0
        %v4622 = vadd.f32 %v4599, 1.0
        %v4623 = vadd.f32 %v4601, 1.0
        %v4624 = vadd.f32 %v4603, 1.0
        %v4625 = vadd.f32 %v4605, 1.0
        %v4626 = vadd.f32 %v4607, 1.0
        %v4627 = vadd.f32 %v4609, 1.0
        %v4628 = vadd.f32 %v4611, 1.0
        %v4629 = vadd.f32 %v4613, 1.0
        %v4630 = vrcp.pop %v4614
        %v4631 = vmul.f32 1.0, %v4630
        %v4632 = vrcp.pop %v4615
        %v4633 = vmul.f32 1.0, %v4632
        %v4634 = vrcp.pop %v4616
        %v4635 = vmul.f32 1.0, %v4634
        %v4636 = vrcp.pop %v4617
        %v4637 = vmul.f32 1.0, %v4636
        %v4638 = vrcp.pop %v4618
        %v4639 = vmul.f32 1.0, %v4638
        %v4640 = vrcp.pop %v4619
        %v4641 = vmul.f32 1.0, %v4640
        %v4642 = vrcp.pop %v4620
        %v4643 = vmul.f32 1.0, %v4642
        %v4644 = vrcp.pop %v4621
        %v4645 = vmul.f32 1.0, %v4644
        %v4646 = vrcp.pop %v4622
        %v4647 = vmul.f32 1.0, %v4646
        %v4648 = vrcp.pop %v4623
        %v4649 = vmul.f32 1.0, %v4648
        %v4650 = vrcp.pop %v4624
        %v4651 = vmul.f32 1.0, %v4650
        %v4652 = vrcp.pop %v4625
        %v4653 = vmul.f32 1.0, %v4652
        %v4654 = vrcp.pop %v4626
        %v4655 = vmul.f32 1.0, %v4654
        %v4656 = vrcp.pop %v4627
        %v4657 = vmul.f32 1.0, %v4656
        %v4658 = vrcp.pop %v4628
        %v4659 = vmul.f32 1.0, %v4658
        %v4660 = vrcp.pop %v4629
        %v4661 = vmul.f32 1.0, %v4660
        %v4662 = vmul.f32 %v4549, %v4631
        %v4663 = vmul.f32 %v4550, %v4633
        %v4664 = vmul.f32 %v4551, %v4635
        %v4665 = vmul.f32 %v4552, %v4637
        %v4666 = vmul.f32 %v4553, %v4639
        %v4667 = vmul.f32 %v4554, %v4641
        %v4668 = vmul.f32 %v4555, %v4643
        %v4669 = vmul.f32 %v4556, %v4645
        %v4670 = vmul.f32 %v4557, %v4647
        %v4671 = vmul.f32 %v4558, %v4649
        %v4672 = vmul.f32 %v4559, %v4651
        %v4673 = vmul.f32 %v4560, %v4653
        %v4674 = vmul.f32 %v4561, %v4655
        %v4675 = vmul.f32 %v4562, %v4657
        %v4676 = vmul.f32 %v4563, %v4659
        %v4677 = vmul.f32 %v4564, %v4661
        %v4679 = vsel %vm1601, %v4565, 0
        %4681 = vmatprep.subr.mxu0 %v4663
        %4682 = vmatpush1.msra.mxu0 %v4662
        %4683 = vmatprep.subr.mxu0 %v4665
        %4684 = vmatpush1.msra.mxu0 %v4664
        %4685 = vmatprep.subr.mxu0 %v4667
        %4686 = vmatpush1.msra.mxu0 %v4666
        %4687 = vmatprep.subr.mxu0 %v4669
        %4688 = vmatpush1.msra.mxu0 %v4668
        %4689 = vmatprep.subr.mxu0 %v4671
        %4690 = vmatpush1.msra.mxu0 %v4670
        %4691 = vmatprep.subr.mxu0 %v4673
        %4692 = vmatpush1.msra.mxu0 %v4672
        %4693 = vmatprep.subr.mxu0 %v4675
        %4694 = vmatpush1.msra.mxu0 %v4674
        %4695 = vmatprep.subr.mxu0 %v4677
        %4696 = vmatpush1.msra.mxu0 %v4676
        %4697 = vmatprep.subr.mxu0 0.0
        %4698 = vmatpush1.msra.mxu0 0.0
        %4699 = vmatprep.subr.mxu0 0.0
        %4700 = vmatpush1.msra.mxu0 0.0
        %4701 = vmatprep.subr.mxu0 0.0
        %4702 = vmatpush1.msra.mxu0 0.0
        %4703 = vmatprep.subr.mxu0 0.0
        %4704 = vmatpush1.msra.mxu0 0.0
        %4705 = vmatprep.subr.mxu0 0.0
        %4706 = vmatpush1.msra.mxu0 0.0
        %4707 = vmatprep.subr.mxu0 0.0
        %4708 = vmatpush1.msra.mxu0 0.0
        %4709 = vmatprep.subr.mxu0 0.0
        %4710 = vmatpush1.msra.mxu0 0.0
        %4711 = vmatprep.subr.mxu0 0.0
        %4712 = vmatpush1.msra.mxu0 0.0
        %4713 = vmatprep.subr.mxu0 0.0
        %4714 = vmatpush1.msra.mxu0 0.0
        %4715 = vmatprep.subr.mxu0 0.0
        %4716 = vmatpush1.msra.mxu0 0.0
        %4717 = vmatprep.subr.mxu0 0.0
        %4718 = vmatpush1.msra.mxu0 0.0
        %4719 = vmatprep.subr.mxu0 0.0
        %4720 = vmatpush1.msra.mxu0 0.0
        %4721 = vmatprep.subr.mxu0 0.0
        %4722 = vmatpush1.msra.mxu0 0.0
        %4723 = vmatprep.subr.mxu0 0.0
        %4724 = vmatpush1.msra.mxu0 0.0
        %4725 = vmatprep.subr.mxu0 0.0
        %4726 = vmatpush1.msra.mxu0 0.0
        %4727 = vmatprep.subr.mxu0 0.0
        %4728 = vmatpush1.msra.mxu0 0.0
        %4729 = vmatprep.subr.mxu0 0.0
        %4730 = vmatpush1.msra.mxu0 0.0
        %4731 = vmatprep.subr.mxu0 0.0
        %4732 = vmatpush1.msra.mxu0 0.0
        %4733 = vmatprep.subr.mxu0 0.0
        %4734 = vmatpush1.msra.mxu0 0.0
        %4735 = vmatprep.subr.mxu0 0.0
        %4736 = vmatpush1.msra.mxu0 0.0
        %4737 = vmatprep.subr.mxu0 0.0
        %4738 = vmatpush1.msra.mxu0 0.0
        %4739 = vmatprep.subr.mxu0 0.0
        %4740 = vmatpush1.msra.mxu0 0.0
        %4741 = vmatprep.subr.mxu0 0.0
        %4742 = vmatpush1.msra.mxu0 0.0
        %4743 = vmatprep.subr.mxu0 0.0
        %4744 = vmatpush1.msra.mxu0 0.0
        %4745 = vmatprep.mubr.f32.mxu0 0.0
        %4746 = vmatmul.mubr.f32.gmra.mrb[0].mxu0 %v4679
        %v4747 = vpop.f32.mrb[0].mxu0
        %v4748 = vadd.f32 0.0, %v4747
        %v4749 = vpop.f32.mrb[0].mxu0
        %v4750 = vadd.f32 0.0, %v4749
        %4751 = vdwg.mxu0
        %4752 = vst [vmem:[%s342] sm:$0xff] %v4748
        %4753 = vst [vmem:[%s342 + $0x8] sm:$0xff] %v4750
        %s4754 = sand.u32 %s230, 1
        %s4755 = scalar_lea.sflag [#allocation3], %s4754
        %s4756 = sand.u32 %s230, 1
        %s4757 = smul.addr %s4756, 16
        %s4758 = scalar_lea.vmem [#allocation2], %s4757
        // Predicated region
        $region57: #{model_forward.1} parent=55 // pred_check
          %p4759 = pneg %p240
        $region58: #{model_forward.1} parent=55 // pred_check_branch
          %4761 = sbr.rel (%p4759) target = $region60
        $region59: #{model_forward.1} parent=55 // pred_region
          %s4762 = smul.u32 2, %s23
          %s4764 = ssub.s32 256, 256
          %4765 = vsyncadd %s4755, %s4764
          %s4766 = smul.addr %s4762, 128
          %s4767 = scalar_lea.hbm %s9, %s4766
          %s4769 = sshll.u32 %s4758, 4
          %s4770 = int_to_ptr.vmem [resolvable:$true] %s4769
          %4772 = dma.vmem_to_hbm [thread:$0]  %s4770, 256, %s4767, %s4755
        $region60: #{model_forward.1} parent=55 // pred_fallthru
          _
      $region56: #{model_forward.1} parent=5 // pred_fallthru
        _
      %p4773 = scmp.le.s32.totalorder 2, %s18
      // Predicated region
      $region61: #{model_forward.1} parent=5 // pred_check
        %p4774 = pneg %p4773
      $region62: #{model_forward.1} parent=5 // pred_check_branch
        %4776 = sbr.rel (%p4774) target = $region64
      $region63: #{model_forward.1} parent=5 // pred_region
        %s4777 = ssub.s32 %s18, 2
        // Predicated region
        $region65: #{model_forward.1} parent=63 // pred_check
          %p4778 = pneg %p246
        $region66: #{model_forward.1} parent=63 // pred_check_branch
          %4780 = sbr.rel (%p4778) target = $region68
        $region67: #{model_forward.1} parent=63 // pred_region
          %s4781 = sand.u32 %s231, 1
          %s4782 = scalar_lea.sflag [#allocation3], %s4781
          %s4783 = sand.u32 %s231, 1
          %s4784 = smul.addr %s4783, 16
          %s4785 = scalar_lea.vmem [#allocation2], %s4784
          %4786 = dma.done %s4782, 256
        $region68: #{model_forward.1} parent=63 // pred_fallthru
          _
      $region64: #{model_forward.1} parent=5 // pred_fallthru
        _
    $region6: #{model_forward.1} parent=1 // loop_footer
      %s22 = sadd.s32 1, %s18
    $region7: #{model_forward.1} parent=1 // loop_footer_branch
      %17 = sbr.rel target = $region3
    $region8: #{model_forward.1} parent=1 // loop_exit
      _
    %4787 = vsyncpa [#allocation3], 1
    %s4788 = scalar_lea.sflag [#allocation3], 1
    %4789 = vsyncpa %s4788, 1

</llo_original>
